<compile_context>
chip_gen: v7x
topology: tpu7x:2x2x1
jax: 0.10.0
libtpu: 0.0.40
codegen_flags: <defaults>
</compile_context>

<pallas_src>
import numpy as np
import jax
import jax.numpy as jnp
from jax.experimental import pallas as pl
from jax.experimental.pallas import tpu as pltpu

RRELU_SLOPE = (1.0 / 8.0 + 1.0 / 3.0) / 2.0   # F.rrelu, eval mode
LANE = 128


def _round_up(x, m):
    return (x + m - 1) // m * m


def _l2_normalize_rows(x):
    # F.normalize(x, dim=-1): one EUP rsqrt instead of sqrt + divide.
    # (PyTorch clamps the norm at 1e-12; near-zero rows differ negligibly.)
    ss = jnp.sum(x * x, axis=-1, keepdims=True)
    return x * jax.lax.rsqrt(ss + 1e-24)


# ----------------------------- fused kernel ----------------------------------
def make_fused_forward(num_ents, num_rels, h_dim, num_layers, seq_len):
    N = num_ents
    R2 = 2 * num_rels
    HP = _round_up(h_dim, LANE)          # lane-padded feature width
    KP = _round_up(N + R2, LANE)         # padded [entities ; relations] K width
    # bf16 staging scratch packs 16 rows/sublane-tile; keep offsets aligned.
    assert N % 16 == 0 and R2 % 16 == 0, "entity/relation counts must be sublane aligned"

    def kernel(dyn_ref, embrel_ref,                       # normalized dyn (HBM), emb_rel
               acat_ref, ragg_ref, mask_ref,              # per-timestep graph operators
               wih_er_ref, wih_xm_ref, whh_ref, bih_ref, bhh_ref,   # GRUCell
               wnb_ref, wloop_ref, tgb_ref,               # RGCN + time-gate weights
               hist_ref, h0_out_ref,                      # outputs
               h_sc, h0_sc, hr_sc, xis_sc):               # carried VMEM state
        t = pl.program_id(0)

        @pl.when(t == 0)
        def _init():
            # self.h = F.normalize(self.dynamic_emb) (pre-normalized outside);
            # DMA it straight into the carried entity-state scratch.
            pltpu.sync_copy(dyn_ref, h_sc)
            # GRU hidden starts at emb_rel.
            h0_sc[...] = embrel_ref[...]
            # zero padded rows of the staging buffer once (acat pad cols are 0).
            hr_sc[...] = jnp.zeros_like(hr_sc)
            # hoisted static GRU term: emb_rel @ W_ih(er half) + b_ih.
            xis_sc[...] = (jnp.dot(embrel_ref[...].astype(jnp.bfloat16),
                                   wih_er_ref[...],
                                   preferred_element_type=jnp.float32)
                           + bih_ref[...])

        h_prev = h_sc[...]                        # (N, HP) entity state (f32)
        h_prev_bf = h_prev.astype(jnp.bfloat16)   # cast once, reused everywhere
        hp = h0_sc[...]                           # (R2, HP) GRU hidden state

        # ---- relation mean aggregation + GRUCell + normalize -----------------
        x_mean = jnp.dot(ragg_ref[...], h_prev_bf,
                         preferred_element_type=jnp.float32)          # (R2, HP)
        xi = jnp.dot(x_mean.astype(jnp.bfloat16), wih_xm_ref[...],
                     preferred_element_type=jnp.float32) + xis_sc[...]
        hh = jnp.dot(hp.astype(jnp.bfloat16), whh_ref[...],
                     preferred_element_type=jnp.float32) + bhh_ref[...]
        # gate slices land on 128-lane tile boundaries (per-gate padded blocks)
        r = jax.nn.sigmoid(xi[:, 0:HP] + hh[:, 0:HP])
        z = jax.nn.sigmoid(xi[:, HP:2 * HP] + hh[:, HP:2 * HP])
        n = jnp.tanh(xi[:, 2 * HP:3 * HP] + r * hh[:, 2 * HP:3 * HP])
        h0 = _l2_normalize_rows((1.0 - z) * n + z * hp)
        h0_sc[...] = h0

        @pl.when(t == pl.num_programs(0) - 1)
        def _store_final_rel_state():
            h0_out_ref[...] = h0                  # only the last value is needed

        # ---- RGCN layers (UnionRGCNLayer x num_layers) -----------------------
        mask = mask_ref[...]                      # (N, 1), 1.0 where in-degree > 0
        hr_sc[N:N + R2, :] = h0.astype(jnp.bfloat16)     # relation rows of [cur ; h_0]
        cur = h_prev
        cur_bf = h_prev_bf
        tw = None
        for l in range(num_layers):
            hr_sc[0:N, :] = cur_bf
            # agg = A_n @ cur + A_r @ h_0 as ONE MXU pass over [A_n | A_r | 0].
            agg = jnp.dot(acat_ref[...], hr_sc[...],
                          preferred_element_type=jnp.float32)
            msg = jnp.dot(agg.astype(jnp.bfloat16), wnb_ref[l],
                          preferred_element_type=jnp.float32)
            if l == 0:
                # self-loop + time gate: one MXU pass over
                # [loop_W | evolve_loop_W | time_gate_W]  (cur == h_prev here).
                lm = jnp.dot(cur_bf, wloop_ref[l],
                             preferred_element_type=jnp.float32)      # (N, 3*HP)
                tw = jax.nn.sigmoid(lm[:, 2 * HP:3 * HP] + tgb_ref[...])
            else:
                lm = jnp.dot(cur_bf, wloop_ref[l, :, 0:2 * HP],
                             preferred_element_type=jnp.float32)      # (N, 2*HP)
            loop = mask * lm[:, 0:HP] + (1.0 - mask) * lm[:, HP:2 * HP]
            x = msg + loop
            cur = jnp.where(x >= 0, x, x * RRELU_SLOPE)               # F.rrelu (eval)
            cur_bf = cur.astype(jnp.bfloat16)

        # ---- normalize(current_h) + time gate --------------------------------
        cur_n = _l2_normalize_rows(cur)
        h_new = tw * cur_n + (1.0 - tw) * h_prev
        h_sc[...] = h_new
        hist_ref[...] = h_new.astype(hist_ref.dtype)   # bf16 HBM writeback

    # ---- explicit VMEM budget (2 bufs on streamed/resident blocks + scratch) --
    resident = (2 * R2 * HP * 4                       # emb_rel
                + 2 * 3 * HP * 3 * HP * 2             # W_ih_er, W_ih_xm, W_hh (bf16)
                + 2 * (2 * 3 * HP * 4 + HP * 4)       # biases
                + 2 * num_layers * HP * HP * 2        # W_neighbor
                + 2 * num_layers * HP * 3 * HP * 2)   # [loop|evolve|tg]
    per_step = 2 * (N * KP * 2 + R2 * N * 2 + N * LANE * 4 + N * HP * 2)
    outs = 2 * R2 * HP * 4
    scratch = N * HP * 4 + R2 * HP * 4 + KP * HP * 2 + R2 * 3 * HP * 4
    vmem_limit = min(max(resident + per_step + outs + scratch + (8 << 20),
                         32 << 20), 100 << 20)

    grid_spec = pltpu.PrefetchScalarGridSpec(
        num_scalar_prefetch=0,
        grid=(seq_len,),
        in_specs=[
            pl.BlockSpec(memory_space=pl.ANY),                     # normalized dynamic_emb (HBM)
            pl.BlockSpec((R2, HP), lambda t: (0, 0)),              # emb_rel (read at t==0)
            pl.BlockSpec((None, N, KP), lambda t: (t, 0, 0)),      # [A_n | A_r | 0]
            pl.BlockSpec((None, R2, N), lambda t: (t, 0, 0)),      # R_agg
            pl.BlockSpec((None, N, 1), lambda t: (t, 0, 0)),       # in-degree mask column
            pl.BlockSpec((HP, 3 * HP), lambda t: (0, 0)),          # GRU W_ih (emb_rel half)
            pl.BlockSpec((HP, 3 * HP), lambda t: (0, 0)),          # GRU W_ih (x_mean half)
            pl.BlockSpec((HP, 3 * HP), lambda t: (0, 0)),          # GRU W_hh
            pl.BlockSpec((1, 3 * HP), lambda t: (0, 0)),           # GRU b_ih
            pl.BlockSpec((1, 3 * HP), lambda t: (0, 0)),           # GRU b_hh
            pl.BlockSpec((num_layers, HP, HP), lambda t: (0, 0, 0)),        # W_neighbor
            pl.BlockSpec((num_layers, HP, 3 * HP), lambda t: (0, 0, 0)),    # [loop|evolve|tg]
            pl.BlockSpec((1, HP), lambda t: (0, 0)),               # time-gate bias
        ],
        out_specs=(
            pl.BlockSpec((None, N, HP), lambda t: (t, 0, 0)),      # history (bf16)
            pl.BlockSpec((R2, HP), lambda t: (0, 0)),              # final h_0 (f32)
        ),
        scratch_shapes=[
            pltpu.VMEM((N, HP), jnp.float32),       # entity state across timesteps
            pltpu.VMEM((R2, HP), jnp.float32),      # relation hidden across timesteps
            pltpu.VMEM((KP, HP), jnp.bfloat16),     # [cur ; h_0 ; 0] staging (bf16)
            pltpu.VMEM((R2, 3 * HP), jnp.float32),  # hoisted xi_static
        ],
    )

    fwd = pl.pallas_call(
        kernel,
        out_shape=(jax.ShapeDtypeStruct((seq_len, N, HP), jnp.bfloat16),
                   jax.ShapeDtypeStruct((R2, HP), jnp.float32)),
        grid_spec=grid_spec,
        compiler_params=pltpu.CompilerParams(
            dimension_semantics=("arbitrary",),     # state carried across timesteps
            vmem_limit_bytes=vmem_limit),
    )
    return fwd, HP, KP


# ----------------------------- parameter init ---------------------------------
def init_params(key, num_ents, num_rels, h_dim, num_layers, h_pad):
    H, HP = h_dim, h_pad
    R2 = num_rels * 2
    ks = jax.random.split(key, 8)

    def xavier_normal(k, shape):
        std = np.sqrt(2.0 / (shape[0] + shape[1]))
        return np.asarray(jax.random.normal(k, shape, jnp.float32)) * std

    def xavier_uniform_relu(k, shape):
        bound = np.sqrt(2.0) * np.sqrt(6.0 / (shape[0] + shape[1]))
        return np.asarray(jax.random.uniform(k, shape, jnp.float32, -bound, bound))

    def pad2(a, rows, cols):
        out = np.zeros((rows, cols), np.float32)
        out[:a.shape[0], :a.shape[1]] = a
        return out

    emb_rel = xavier_normal(ks[0], (R2, H))
    dyn = np.asarray(jax.random.normal(ks[1], (num_ents, H), jnp.float32))
    tg_w = xavier_uniform_relu(ks[2], (H, H))

    # nn.GRUCell(2*h, h): weight_ih (3h, 2h), weight_hh (3h, h), biases (3h,)
    kk = 1.0 / np.sqrt(H)
    w_ih = np.asarray(jax.random.uniform(ks[3], (3 * H, 2 * H), jnp.float32, -kk, kk))
    w_hh = np.asarray(jax.random.uniform(ks[4], (3 * H, H), jnp.float32, -kk, kk))
    b_ih = np.asarray(jax.random.uniform(ks[5], (3 * H,), jnp.float32, -kk, kk))
    b_hh = np.asarray(jax.random.uniform(ks[6], (3 * H,), jnp.float32, -kk, kk))

    lk = jax.random.split(ks[7], num_layers * 3)
    w_nb = [xavier_uniform_relu(lk[3 * l + 0], (H, H)) for l in range(num_layers)]
    w_loop = [xavier_uniform_relu(lk[3 * l + 1], (H, H)) for l in range(num_layers)]
    w_evo = [xavier_uniform_relu(lk[3 * l + 2], (H, H)) for l in range(num_layers)]

    # GRU weights transposed, split into the emb_rel half and the x_mean half,
    # with per-gate padded blocks so gate boundaries land on 128-lane tiles.
    wih_t, whh_t = w_ih.T, w_hh.T                # (2H, 3H), (H, 3H); gate order r,z,n
    wih_er = np.zeros((HP, 3 * HP), np.float32)
    wih_xm = np.zeros((HP, 3 * HP), np.float32)
    whh_p = np.zeros((HP, 3 * HP), np.float32)
    bih_p = np.zeros((1, 3 * HP), np.float32)
    bhh_p = np.zeros((1, 3 * HP), np.float32)
    for g in range(3):
        wih_er[0:H, g * HP:g * HP + H] = wih_t[0:H, g * H:(g + 1) * H]      # emb_rel part
        wih_xm[0:H, g * HP:g * HP + H] = wih_t[H:2 * H, g * H:(g + 1) * H]  # x_mean part
        whh_p[0:H, g * HP:g * HP + H] = whh_t[:, g * H:(g + 1) * H]
        bih_p[0, g * HP:g * HP + H] = b_ih[g * H:(g + 1) * H]
        bhh_p[0, g * HP:g * HP + H] = b_hh[g * H:(g + 1) * H]

    wnb_p = np.stack([pad2(w, HP, HP) for w in w_nb])
    # [loop_W | evolve_loop_W | time_gate_W(layer 0 only)] so the layer-0
    # self-loop matmul also produces the time-gate pre-activation.
    wloop_p = np.zeros((num_layers, HP, 3 * HP), np.float32)
    for l in range(num_layers):
        wloop_p[l, :, 0:HP] = pad2(w_loop[l], HP, HP)
        wloop_p[l, :, HP:2 * HP] = pad2(w_evo[l], HP, HP)
    wloop_p[0, :, 2 * HP:3 * HP] = pad2(tg_w, HP, HP)

    return dict(
        dynamic_emb=jnp.asarray(pad2(dyn, num_ents, HP)),
        emb_rel=jnp.asarray(pad2(emb_rel, R2, HP)),
        gru_w_ih_er=jnp.asarray(wih_er, jnp.bfloat16),
        gru_w_ih_xm=jnp.asarray(wih_xm, jnp.bfloat16),
        gru_w_hh=jnp.asarray(whh_p, jnp.bfloat16),
        gru_b_ih=jnp.asarray(bih_p),
        gru_b_hh=jnp.asarray(bhh_p),
        rgcn_w_neighbor=jnp.asarray(wnb_p, jnp.bfloat16),
        rgcn_w_loopcat=jnp.asarray(wloop_p, jnp.bfloat16),
        time_gate_bias=jnp.zeros((1, HP), jnp.float32),
    )


# ----------------------------- graph glue --------------------------------------
def build_graph(key, num_ents, num_rels, num_base_edges):
    """One DGL snapshot as dense operators (numpy):
       A_n (N,N), A_r (N,2R) normalized adjacencies, in-degree mask (N,),
       R_agg (2R,N) relation->entity mean operator (RE-GCN r_to_e / r_len)."""
    k1, k2, k3 = jax.random.split(key, 3)
    src = np.array(jax.random.randint(k1, (num_base_edges,), 0, num_ents))
    dst = np.array(jax.random.randint(k2, (num_base_edges,), 0, num_ents))
    rel = np.array(jax.random.randint(k3, (num_base_edges,), 0, num_rels))

    # RE-GCN builds the graph with inverse edges appended.
    src_all = np.concatenate([src, dst])
    dst_all = np.concatenate([dst, src])
    rel_all = np.concatenate([rel, rel + num_rels])

    N, R2 = num_ents, 2 * num_rels
    a_cnt = np.zeros((N, N), np.float32)
    r_cnt = np.zeros((N, R2), np.float32)
    for s, d, r in zip(src_all, dst_all, rel_all):
        a_cnt[d, s] += 1.0
        r_cnt[d, r] += 1.0
    in_deg = a_cnt.sum(axis=1)
    norm = np.where(in_deg > 0, 1.0 / np.maximum(in_deg, 1.0), 0.0).astype(np.float32)
    A_n = norm[:, None] * a_cnt
    A_r = norm[:, None] * r_cnt
    mask = (in_deg > 0).astype(np.float32)

    R_agg = np.zeros((R2, N), np.float32)
    for r in range(num_rels):
        sel = rel == r
        if not sel.any():
            continue
        ents = np.unique(np.concatenate([src[sel], dst[sel]]))
        w = 1.0 / len(ents)
        R_agg[r, ents] = w
        R_agg[r + num_rels, ents] = w
    return A_n, A_r, mask, R_agg


def stack_graphs(graphs, num_ents, num_rels, k_pad):
    """Stack per-timestep operators into padded, kernel-ready arrays."""
    # Note: bf16 graph operators quantize the 1/deg weights (~0.3% rel. error)
    # in exchange for half the per-timestep DMA bytes.
    N, R2, T = num_ents, 2 * num_rels, len(graphs)
    acat = np.zeros((T, N, k_pad), np.float32)     # [A_n | A_r | 0]
    ragg = np.zeros((T, R2, N), np.float32)
    maskc = np.zeros((T, N, 1), np.float32)        # in-degree>0 column mask
    for t, (A_n, A_r, mask, R_agg) in enumerate(graphs):
        acat[t, :, :N] = A_n
        acat[t, :, N:N + R2] = A_r
        ragg[t] = R_agg
        maskc[t, :, 0] = mask
    return (jnp.asarray(acat, jnp.bfloat16),
            jnp.asarray(ragg, jnp.bfloat16),
            jnp.asarray(maskc, jnp.float32))


# ----------------------------- forward ------------------------------------------
def recurrent_rgcn_forward(fwd_call, params, graph_ops, h_dim):
    """Mirrors RecurrentRGCN.forward(g_list, static_graph=None, use_cuda=False)
       with use_static=False, layer_norm=True; one fused pallas_call."""
    acat, ragg, maskc = graph_ops
    dyn = params["dynamic_emb"]
    # self.h = F.normalize(self.dynamic_emb): done once here so dynamic_emb
    # does not occupy resident VMEM in the kernel (DMA'd into scratch at t==0).
    dyn_norm = dyn * jax.lax.rsqrt(jnp.sum(dyn * dyn, axis=-1, keepdims=True) + 1e-24)
    hist_p, h0_p = fwd_call(
        dyn_norm, params["emb_rel"],
        acat, ragg, maskc,
        params["gru_w_ih_er"], params["gru_w_ih_xm"], params["gru_w_hh"],
        params["gru_b_ih"], params["gru_b_hh"],
        params["rgcn_w_neighbor"], params["rgcn_w_loopcat"],
        params["time_gate_bias"])
    history_embs = [hist_p[t, :, :h_dim] for t in range(hist_p.shape[0])]
    h_0 = h0_p[:, :h_dim]
    static_emb = None          # use_static=False
    gate_list, degree_list = [], []
    return history_embs, static_emb, h_0, gate_list, degree_list


# ----------------------------- main ----------------------------------------------
if __name__ == "__main__":
    NUM_ENTS = 64
    NUM_RELS = 8          # base relations; model uses 2 * NUM_RELS
    H_DIM = 32
    SEQ_LEN = 3
    NUM_LAYERS = 2
    NUM_BASE_EDGES = 96

    fwd, H_PAD, K_PAD = make_fused_forward(NUM_ENTS, NUM_RELS, H_DIM,
                                           NUM_LAYERS, SEQ_LEN)

    root = jax.random.PRNGKey(0)
    pkey, gkey = jax.random.split(root)
    params = init_params(pkey, NUM_ENTS, NUM_RELS, H_DIM, NUM_LAYERS, H_PAD)

    gkeys = jax.random.split(gkey, SEQ_LEN)
    graphs = [build_graph(gkeys[t], NUM_ENTS, NUM_RELS, NUM_BASE_EDGES)
              for t in range(SEQ_LEN)]
    graph_ops = stack_graphs(graphs, NUM_ENTS, NUM_RELS, K_PAD)

    history_embs, static_emb, h_0, gate_list, degree_list = recurrent_rgcn_forward(
        fwd, params, graph_ops, H_DIM)

    jax.block_until_ready(history_embs[-1])
    jax.block_until_ready(h_0)

    assert len(history_embs) == SEQ_LEN
    assert history_embs[-1].shape == (NUM_ENTS, H_DIM)
    assert h_0.shape == (2 * NUM_RELS, H_DIM)
    assert bool(jnp.all(jnp.isfinite(history_embs[-1].astype(jnp.float32))))
    assert bool(jnp.all(jnp.isfinite(h_0)))
    print("KERNEL_OK")
</pallas_src>

<mosaic_0001>
module attributes {stable_mosaic.version = 11 : i64} {
  func.func @kernel(%arg0: i32, %arg1: memref<64x128xf32, #tpu.memory_space<any>>, %arg2: memref<16x128xf32, #tpu.memory_space<vmem>>, %arg3: memref<1x64x128xbf16, #tpu.memory_space<vmem>>, %arg4: memref<1x16x64xbf16, #tpu.memory_space<vmem>>, %arg5: memref<1x64x1xf32, #tpu.memory_space<vmem>>, %arg6: memref<128x384xbf16, #tpu.memory_space<vmem>>, %arg7: memref<128x384xbf16, #tpu.memory_space<vmem>>, %arg8: memref<128x384xbf16, #tpu.memory_space<vmem>>, %arg9: memref<1x384xf32, #tpu.memory_space<vmem>>, %arg10: memref<1x384xf32, #tpu.memory_space<vmem>>, %arg11: memref<2x128x128xbf16, #tpu.memory_space<vmem>>, %arg12: memref<2x128x384xbf16, #tpu.memory_space<vmem>>, %arg13: memref<1x128xf32, #tpu.memory_space<vmem>>, %arg14: memref<1x64x128xbf16, #tpu.memory_space<vmem>>, %arg15: memref<16x128xf32, #tpu.memory_space<vmem>>, %arg16: memref<64x128xf32, #tpu.memory_space<vmem>>, %arg17: memref<16x128xf32, #tpu.memory_space<vmem>>, %arg18: memref<128x128xbf16, #tpu.memory_space<vmem>>, %arg19: memref<16x384xf32, #tpu.memory_space<vmem>>) attributes {dimension_semantics = [#tpu.dimension_semantics<arbitrary>], iteration_bounds = array<i64: 3>, scalar_prefetch = 0 : i64, scratch_operands = 4 : i64, tpu.core_type = #tpu.core_type<tc>, window_params = [{}, {pipeline_mode = #tpu.pipeline_mode<synchronous>, transform_indices = @transform_1, window_bounds = array<i64: 16, 128>}, {transform_indices = @transform_2, window_bounds = array<i64: 1, 64, 128>}, {transform_indices = @transform_3, window_bounds = array<i64: 1, 16, 64>}, {transform_indices = @transform_4, window_bounds = array<i64: 1, 64, 1>}, {pipeline_mode = #tpu.pipeline_mode<synchronous>, transform_indices = @transform_5, window_bounds = array<i64: 128, 384>}, {pipeline_mode = #tpu.pipeline_mode<synchronous>, transform_indices = @transform_6, window_bounds = array<i64: 128, 384>}, {pipeline_mode = #tpu.pipeline_mode<synchronous>, transform_indices = @transform_7, window_bounds = array<i64: 128, 384>}, {pipeline_mode = #tpu.pipeline_mode<synchronous>, transform_indices = @transform_8, window_bounds = array<i64: 1, 384>}, {pipeline_mode = #tpu.pipeline_mode<synchronous>, transform_indices = @transform_9, window_bounds = array<i64: 1, 384>}, {pipeline_mode = #tpu.pipeline_mode<synchronous>, transform_indices = @transform_10, window_bounds = array<i64: 2, 128, 128>}, {pipeline_mode = #tpu.pipeline_mode<synchronous>, transform_indices = @transform_11, window_bounds = array<i64: 2, 128, 384>}, {pipeline_mode = #tpu.pipeline_mode<synchronous>, transform_indices = @transform_12, window_bounds = array<i64: 1, 128>}, {transform_indices = @transform_13, window_bounds = array<i64: 1, 64, 128>}, {pipeline_mode = #tpu.pipeline_mode<synchronous>, transform_indices = @transform_14, window_bounds = array<i64: 16, 128>}]} {
    %c0_i32 = arith.constant 0 : i32
    %0 = arith.cmpi eq, %arg0, %c0_i32 : i32
    %1 = arith.extui %0 : i1 to i32
    %c0_i32_0 = arith.constant 0 : i32
    %2 = arith.cmpi ne, %1, %c0_i32_0 : i32
    scf.if %2 {
      "tpu.region"() ({
        %156 = tpu.sem_alloc : memref<!tpu.dma_semaphore, #tpu.memory_space<semaphore_mem>>
        tpu.enqueue_dma source(%arg1 : memref<64x128xf32, #tpu.memory_space<any>>) target(%arg16 : memref<64x128xf32, #tpu.memory_space<vmem>>) target_semaphore(%156 : memref<!tpu.dma_semaphore, #tpu.memory_space<semaphore_mem>>)
        tpu.wait_dma2 semaphore(%156 : memref<!tpu.dma_semaphore, #tpu.memory_space<semaphore_mem>>) src(%arg1 : memref<64x128xf32, #tpu.memory_space<any>>) dst(%arg16 : memref<64x128xf32, #tpu.memory_space<vmem>>)
        tpu.yield
      }) : () -> ()
      %c0_77 = arith.constant 0 : index
      %c0_78 = arith.constant 0 : index
      %144 = vector.load %arg2[%c0_77, %c0_78] : memref<16x128xf32, #tpu.memory_space<vmem>>, vector<16x128xf32>
      %c0_79 = arith.constant 0 : index
      %c0_80 = arith.constant 0 : index
      %145 = vector.load %arg17[%c0_79, %c0_80] : memref<16x128xf32, #tpu.memory_space<vmem>>, vector<16x128xf32>
      tpu.vector_store %arg17[%c0_79, %c0_80], %144 {strides = array<i32>} : memref<16x128xf32, #tpu.memory_space<vmem>>, vector<16x128xf32>,
      %cst_81 = arith.constant 0.000000e+00 : bf16
      %146 = vector.broadcast %cst_81 : bf16 to vector<128x128xbf16>
      %c0_82 = arith.constant 0 : index
      %c0_83 = arith.constant 0 : index
      %147 = vector.load %arg18[%c0_82, %c0_83] : memref<128x128xbf16, #tpu.memory_space<vmem>>, vector<128x128xbf16>
      tpu.vector_store %arg18[%c0_82, %c0_83], %146 {strides = array<i32>} : memref<128x128xbf16, #tpu.memory_space<vmem>>, vector<128x128xbf16>,
      %c0_84 = arith.constant 0 : index
      %c0_85 = arith.constant 0 : index
      %148 = vector.load %arg2[%c0_84, %c0_85] : memref<16x128xf32, #tpu.memory_space<vmem>>, vector<16x128xf32>
      %149 = arith.truncf %148 : vector<16x128xf32> to vector<16x128xbf16>
      %c0_86 = arith.constant 0 : index
      %c0_87 = arith.constant 0 : index
      %150 = vector.load %arg6[%c0_86, %c0_87] : memref<128x384xbf16, #tpu.memory_space<vmem>>, vector<128x384xbf16>
      %cst_88 = arith.constant dense<0.000000e+00> : vector<16x384xf32>
      %151 = tpu.matmul %149, %150, %cst_88 {dimension_numbers = #tpu.dot_dimension_numbers<[1], [0], [0], [1], [0, 0, 1, 1], [], []>} : vector<16x128xbf16>, vector<128x384xbf16>, vector<16x384xf32> -> vector<16x384xf32>
      %c0_89 = arith.constant 0 : index
      %c0_90 = arith.constant 0 : index
      %152 = vector.load %arg9[%c0_89, %c0_90] : memref<1x384xf32, #tpu.memory_space<vmem>>, vector<1x384xf32>
      %153 = vector.broadcast %152 : vector<1x384xf32> to vector<16x384xf32>
      %154 = arith.addf %151, %153 : vector<16x384xf32>
      %c0_91 = arith.constant 0 : index
      %c0_92 = arith.constant 0 : index
      %155 = vector.load %arg19[%c0_91, %c0_92] : memref<16x384xf32, #tpu.memory_space<vmem>>, vector<16x384xf32>
      tpu.vector_store %arg19[%c0_91, %c0_92], %154 {strides = array<i32>} : memref<16x384xf32, #tpu.memory_space<vmem>>, vector<16x384xf32>,
    } else {
    }
    %c0 = arith.constant 0 : index
    %c0_1 = arith.constant 0 : index
    %3 = vector.load %arg16[%c0, %c0_1] : memref<64x128xf32, #tpu.memory_space<vmem>>, vector<64x128xf32>
    %4 = arith.truncf %3 : vector<64x128xf32> to vector<64x128xbf16>
    %c0_2 = arith.constant 0 : index
    %c0_3 = arith.constant 0 : index
    %5 = vector.load %arg17[%c0_2, %c0_3] : memref<16x128xf32, #tpu.memory_space<vmem>>, vector<16x128xf32>
    %c0_4 = arith.constant 0 : index
    %c0_5 = arith.constant 0 : index
    %c0_6 = arith.constant 0 : index
    %6 = vector.load %arg4[%c0_4, %c0_5, %c0_6] : memref<1x16x64xbf16, #tpu.memory_space<vmem>>, vector<1x16x64xbf16>
    %7 = vector.shape_cast %6 : vector<1x16x64xbf16> to vector<16x64xbf16>
    %cst = arith.constant dense<0.000000e+00> : vector<16x128xf32>
    %8 = tpu.matmul %7, %4, %cst {dimension_numbers = #tpu.dot_dimension_numbers<[1], [0], [0], [1], [0, 0, 1, 1], [], []>} : vector<16x64xbf16>, vector<64x128xbf16>, vector<16x128xf32> -> vector<16x128xf32>
    %9 = arith.truncf %8 : vector<16x128xf32> to vector<16x128xbf16>
    %c0_7 = arith.constant 0 : index
    %c0_8 = arith.constant 0 : index
    %10 = vector.load %arg7[%c0_7, %c0_8] : memref<128x384xbf16, #tpu.memory_space<vmem>>, vector<128x384xbf16>
    %cst_9 = arith.constant dense<0.000000e+00> : vector<16x384xf32>
    %11 = tpu.matmul %9, %10, %cst_9 {dimension_numbers = #tpu.dot_dimension_numbers<[1], [0], [0], [1], [0, 0, 1, 1], [], []>} : vector<16x128xbf16>, vector<128x384xbf16>, vector<16x384xf32> -> vector<16x384xf32>
    %c0_10 = arith.constant 0 : index
    %c0_11 = arith.constant 0 : index
    %12 = vector.load %arg19[%c0_10, %c0_11] : memref<16x384xf32, #tpu.memory_space<vmem>>, vector<16x384xf32>
    %13 = arith.addf %11, %12 : vector<16x384xf32>
    %14 = arith.truncf %5 : vector<16x128xf32> to vector<16x128xbf16>
    %c0_12 = arith.constant 0 : index
    %c0_13 = arith.constant 0 : index
    %15 = vector.load %arg8[%c0_12, %c0_13] : memref<128x384xbf16, #tpu.memory_space<vmem>>, vector<128x384xbf16>
    %cst_14 = arith.constant dense<0.000000e+00> : vector<16x384xf32>
    %16 = tpu.matmul %14, %15, %cst_14 {dimension_numbers = #tpu.dot_dimension_numbers<[1], [0], [0], [1], [0, 0, 1, 1], [], []>} : vector<16x128xbf16>, vector<128x384xbf16>, vector<16x384xf32> -> vector<16x384xf32>
    %c0_15 = arith.constant 0 : index
    %c0_16 = arith.constant 0 : index
    %17 = vector.load %arg10[%c0_15, %c0_16] : memref<1x384xf32, #tpu.memory_space<vmem>>, vector<1x384xf32>
    %18 = vector.broadcast %17 : vector<1x384xf32> to vector<16x384xf32>
    %19 = arith.addf %16, %18 : vector<16x384xf32>
    %20 = vector.extract_strided_slice %13 {offsets = [0, 0], sizes = [16, 128], strides = [1, 1]} : vector<16x384xf32> to vector<16x128xf32>
    %21 = vector.extract_strided_slice %19 {offsets = [0, 0], sizes = [16, 128], strides = [1, 1]} : vector<16x384xf32> to vector<16x128xf32>
    %22 = arith.addf %20, %21 : vector<16x128xf32>
    %23 = arith.negf %22 : vector<16x128xf32>
    %24 = math.exp %23 : vector<16x128xf32>
    %cst_17 = arith.constant 1.000000e+00 : f32
    %25 = vector.broadcast %cst_17 : f32 to vector<16x128xf32>
    %26 = arith.addf %25, %24 : vector<16x128xf32>
    %27 = arith.divf %25, %26 : vector<16x128xf32>
    %28 = vector.extract_strided_slice %13 {offsets = [0, 128], sizes = [16, 128], strides = [1, 1]} : vector<16x384xf32> to vector<16x128xf32>
    %29 = vector.extract_strided_slice %19 {offsets = [0, 128], sizes = [16, 128], strides = [1, 1]} : vector<16x384xf32> to vector<16x128xf32>
    %30 = arith.addf %28, %29 : vector<16x128xf32>
    %31 = arith.negf %30 : vector<16x128xf32>
    %32 = math.exp %31 : vector<16x128xf32>
    %cst_18 = arith.constant 1.000000e+00 : f32
    %33 = vector.broadcast %cst_18 : f32 to vector<16x128xf32>
    %34 = arith.addf %33, %32 : vector<16x128xf32>
    %35 = arith.divf %33, %34 : vector<16x128xf32>
    %36 = vector.extract_strided_slice %13 {offsets = [0, 256], sizes = [16, 128], strides = [1, 1]} : vector<16x384xf32> to vector<16x128xf32>
    %37 = vector.extract_strided_slice %19 {offsets = [0, 256], sizes = [16, 128], strides = [1, 1]} : vector<16x384xf32> to vector<16x128xf32>
    %38 = arith.mulf %27, %37 : vector<16x128xf32>
    %39 = arith.addf %36, %38 : vector<16x128xf32>
    %40 = math.tanh %39 : vector<16x128xf32>
    %cst_19 = arith.constant 1.000000e+00 : f32
    %41 = vector.broadcast %cst_19 : f32 to vector<16x128xf32>
    %42 = arith.subf %41, %35 : vector<16x128xf32>
    %43 = arith.mulf %42, %40 : vector<16x128xf32>
    %44 = arith.mulf %35, %5 : vector<16x128xf32>
    %45 = arith.addf %43, %44 : vector<16x128xf32>
    %46 = arith.mulf %45, %45 : vector<16x128xf32>
    %cst_20 = arith.constant dense<0.000000e+00> : vector<16xf32>
    %47 = vector.multi_reduction <add>, %46, %cst_20 [1] : vector<16x128xf32> to vector<16xf32>
    %48 = vector.shape_cast %47 : vector<16xf32> to vector<16x1xf32>
    %cst_21 = arith.constant 1.000000e-24 : f32
    %49 = vector.broadcast %cst_21 : f32 to vector<16x1xf32>
    %50 = arith.addf %48, %49 : vector<16x1xf32>
    %51 = math.rsqrt %50 : vector<16x1xf32>
    %52 = vector.broadcast %51 : vector<16x1xf32> to vector<16x128xf32>
    %53 = arith.mulf %45, %52 : vector<16x128xf32>
    %c0_22 = arith.constant 0 : index
    %c0_23 = arith.constant 0 : index
    %54 = vector.load %arg17[%c0_22, %c0_23] : memref<16x128xf32, #tpu.memory_space<vmem>>, vector<16x128xf32>
    tpu.vector_store %arg17[%c0_22, %c0_23], %53 {strides = array<i32>} : memref<16x128xf32, #tpu.memory_space<vmem>>, vector<16x128xf32>,
    %c2_i32 = arith.constant 2 : i32
    %55 = arith.cmpi eq, %arg0, %c2_i32 : i32
    %56 = arith.extui %55 : i1 to i32
    %c0_i32_24 = arith.constant 0 : i32
    %57 = arith.cmpi ne, %56, %c0_i32_24 : i32
    scf.if %57 {
      %c0_77 = arith.constant 0 : index
      %c0_78 = arith.constant 0 : index
      %144 = vector.load %arg15[%c0_77, %c0_78] : memref<16x128xf32, #tpu.memory_space<vmem>>, vector<16x128xf32>
      tpu.vector_store %arg15[%c0_77, %c0_78], %53 {strides = array<i32>} : memref<16x128xf32, #tpu.memory_space<vmem>>, vector<16x128xf32>,
    } else {
    }
    %c0_25 = arith.constant 0 : index
    %c0_26 = arith.constant 0 : index
    %c0_27 = arith.constant 0 : index
    %58 = vector.load %arg5[%c0_25, %c0_26, %c0_27] : memref<1x64x1xf32, #tpu.memory_space<vmem>>, vector<1x64x1xf32>
    %59 = vector.shape_cast %58 : vector<1x64x1xf32> to vector<64x1xf32>
    %60 = arith.truncf %53 : vector<16x128xf32> to vector<16x128xbf16>
    %c64 = arith.constant 64 : index
    %c0_28 = arith.constant 0 : index
    %61 = vector.load %arg18[%c64, %c0_28] : memref<128x128xbf16, #tpu.memory_space<vmem>>, vector<16x128xbf16>
    tpu.vector_store %arg18[%c64, %c0_28], %60 {strides = array<i32>} : memref<128x128xbf16, #tpu.memory_space<vmem>>, vector<16x128xbf16>,
    %c0_29 = arith.constant 0 : index
    %c0_30 = arith.constant 0 : index
    %62 = vector.load %arg18[%c0_29, %c0_30] : memref<128x128xbf16, #tpu.memory_space<vmem>>, vector<64x128xbf16>
    tpu.vector_store %arg18[%c0_29, %c0_30], %4 {strides = array<i32>} : memref<128x128xbf16, #tpu.memory_space<vmem>>, vector<64x128xbf16>,
    %c0_31 = arith.constant 0 : index
    %c0_32 = arith.constant 0 : index
    %c0_33 = arith.constant 0 : index
    %63 = vector.load %arg3[%c0_31, %c0_32, %c0_33] : memref<1x64x128xbf16, #tpu.memory_space<vmem>>, vector<1x64x128xbf16>
    %64 = vector.shape_cast %63 : vector<1x64x128xbf16> to vector<64x128xbf16>
    %c0_34 = arith.constant 0 : index
    %c0_35 = arith.constant 0 : index
    %65 = vector.load %arg18[%c0_34, %c0_35] : memref<128x128xbf16, #tpu.memory_space<vmem>>, vector<128x128xbf16>
    %cst_36 = arith.constant dense<0.000000e+00> : vector<64x128xf32>
    %66 = tpu.matmul %64, %65, %cst_36 {dimension_numbers = #tpu.dot_dimension_numbers<[1], [0], [0], [1], [0, 0, 1, 1], [], []>} : vector<64x128xbf16>, vector<128x128xbf16>, vector<64x128xf32> -> vector<64x128xf32>
    %67 = arith.truncf %66 : vector<64x128xf32> to vector<64x128xbf16>
    %c0_37 = arith.constant 0 : index
    %c0_38 = arith.constant 0 : index
    %c0_39 = arith.constant 0 : index
    %68 = vector.load %arg11[%c0_37, %c0_38, %c0_39] : memref<2x128x128xbf16, #tpu.memory_space<vmem>>, vector<1x128x128xbf16>
    %69 = vector.shape_cast %68 : vector<1x128x128xbf16> to vector<128x128xbf16>
    %cst_40 = arith.constant dense<0.000000e+00> : vector<64x128xf32>
    %70 = tpu.matmul %67, %69, %cst_40 {dimension_numbers = #tpu.dot_dimension_numbers<[1], [0], [0], [1], [0, 0, 1, 1], [], []>} : vector<64x128xbf16>, vector<128x128xbf16>, vector<64x128xf32> -> vector<64x128xf32>
    %c0_41 = arith.constant 0 : index
    %c0_42 = arith.constant 0 : index
    %c0_43 = arith.constant 0 : index
    %71 = vector.load %arg12[%c0_41, %c0_42, %c0_43] : memref<2x128x384xbf16, #tpu.memory_space<vmem>>, vector<1x128x384xbf16>
    %72 = vector.shape_cast %71 : vector<1x128x384xbf16> to vector<128x384xbf16>
    %cst_44 = arith.constant dense<0.000000e+00> : vector<64x384xf32>
    %73 = tpu.matmul %4, %72, %cst_44 {dimension_numbers = #tpu.dot_dimension_numbers<[1], [0], [0], [1], [0, 0, 1, 1], [], []>} : vector<64x128xbf16>, vector<128x384xbf16>, vector<64x384xf32> -> vector<64x384xf32>
    %74 = vector.extract_strided_slice %73 {offsets = [0, 256], sizes = [64, 128], strides = [1, 1]} : vector<64x384xf32> to vector<64x128xf32>
    %c0_45 = arith.constant 0 : index
    %c0_46 = arith.constant 0 : index
    %75 = vector.load %arg13[%c0_45, %c0_46] : memref<1x128xf32, #tpu.memory_space<vmem>>, vector<1x128xf32>
    %76 = vector.broadcast %75 : vector<1x128xf32> to vector<64x128xf32>
    %77 = arith.addf %74, %76 : vector<64x128xf32>
    %78 = arith.negf %77 : vector<64x128xf32>
    %79 = math.exp %78 : vector<64x128xf32>
    %cst_47 = arith.constant 1.000000e+00 : f32
    %80 = vector.broadcast %cst_47 : f32 to vector<64x128xf32>
    %81 = arith.addf %80, %79 : vector<64x128xf32>
    %82 = arith.divf %80, %81 : vector<64x128xf32>
    %83 = vector.extract_strided_slice %73 {offsets = [0, 0], sizes = [64, 128], strides = [1, 1]} : vector<64x384xf32> to vector<64x128xf32>
    %84 = vector.broadcast %59 : vector<64x1xf32> to vector<64x128xf32>
    %85 = arith.mulf %84, %83 : vector<64x128xf32>
    %cst_48 = arith.constant 1.000000e+00 : f32
    %86 = vector.broadcast %cst_48 : f32 to vector<64x1xf32>
    %87 = arith.subf %86, %59 : vector<64x1xf32>
    %88 = vector.extract_strided_slice %73 {offsets = [0, 128], sizes = [64, 128], strides = [1, 1]} : vector<64x384xf32> to vector<64x128xf32>
    %89 = vector.broadcast %87 : vector<64x1xf32> to vector<64x128xf32>
    %90 = arith.mulf %89, %88 : vector<64x128xf32>
    %91 = arith.addf %85, %90 : vector<64x128xf32>
    %92 = arith.addf %70, %91 : vector<64x128xf32>
    %cst_49 = arith.constant 0.000000e+00 : f32
    %93 = vector.broadcast %cst_49 : f32 to vector<64x128xf32>
    %94 = arith.cmpf oge, %92, %93 : vector<64x128xf32>
    %cst_50 = arith.constant 0.229166672 : f32
    %95 = vector.broadcast %cst_50 : f32 to vector<64x128xf32>
    %96 = arith.mulf %92, %95 : vector<64x128xf32>
    %97 = arith.select %94, %92, %96 : vector<64x128xi1>, vector<64x128xf32>
    %98 = arith.truncf %97 : vector<64x128xf32> to vector<64x128xbf16>
    %c0_51 = arith.constant 0 : index
    %c0_52 = arith.constant 0 : index
    %99 = vector.load %arg18[%c0_51, %c0_52] : memref<128x128xbf16, #tpu.memory_space<vmem>>, vector<64x128xbf16>
    tpu.vector_store %arg18[%c0_51, %c0_52], %98 {strides = array<i32>} : memref<128x128xbf16, #tpu.memory_space<vmem>>, vector<64x128xbf16>,
    %c0_53 = arith.constant 0 : index
    %c0_54 = arith.constant 0 : index
    %c0_55 = arith.constant 0 : index
    %100 = vector.load %arg3[%c0_53, %c0_54, %c0_55] : memref<1x64x128xbf16, #tpu.memory_space<vmem>>, vector<1x64x128xbf16>
    %101 = vector.shape_cast %100 : vector<1x64x128xbf16> to vector<64x128xbf16>
    %c0_56 = arith.constant 0 : index
    %c0_57 = arith.constant 0 : index
    %102 = vector.load %arg18[%c0_56, %c0_57] : memref<128x128xbf16, #tpu.memory_space<vmem>>, vector<128x128xbf16>
    %cst_58 = arith.constant dense<0.000000e+00> : vector<64x128xf32>
    %103 = tpu.matmul %101, %102, %cst_58 {dimension_numbers = #tpu.dot_dimension_numbers<[1], [0], [0], [1], [0, 0, 1, 1], [], []>} : vector<64x128xbf16>, vector<128x128xbf16>, vector<64x128xf32> -> vector<64x128xf32>
    %104 = arith.truncf %103 : vector<64x128xf32> to vector<64x128xbf16>
    %c1 = arith.constant 1 : index
    %c0_59 = arith.constant 0 : index
    %c0_60 = arith.constant 0 : index
    %105 = vector.load %arg11[%c1, %c0_59, %c0_60] : memref<2x128x128xbf16, #tpu.memory_space<vmem>>, vector<1x128x128xbf16>
    %106 = vector.shape_cast %105 : vector<1x128x128xbf16> to vector<128x128xbf16>
    %cst_61 = arith.constant dense<0.000000e+00> : vector<64x128xf32>
    %107 = tpu.matmul %104, %106, %cst_61 {dimension_numbers = #tpu.dot_dimension_numbers<[1], [0], [0], [1], [0, 0, 1, 1], [], []>} : vector<64x128xbf16>, vector<128x128xbf16>, vector<64x128xf32> -> vector<64x128xf32>
    %c1_62 = arith.constant 1 : index
    %c0_63 = arith.constant 0 : index
    %c0_64 = arith.constant 0 : index
    %108 = vector.load %arg12[%c1_62, %c0_63, %c0_64] : memref<2x128x384xbf16, #tpu.memory_space<vmem>>, vector<1x128x256xbf16>
    %109 = vector.shape_cast %108 : vector<1x128x256xbf16> to vector<128x256xbf16>
    %cst_65 = arith.constant dense<0.000000e+00> : vector<64x256xf32>
    %110 = tpu.matmul %98, %109, %cst_65 {dimension_numbers = #tpu.dot_dimension_numbers<[1], [0], [0], [1], [0, 0, 1, 1], [], []>} : vector<64x128xbf16>, vector<128x256xbf16>, vector<64x256xf32> -> vector<64x256xf32>
    %111 = vector.extract_strided_slice %110 {offsets = [0, 0], sizes = [64, 128], strides = [1, 1]} : vector<64x256xf32> to vector<64x128xf32>
    %112 = vector.broadcast %59 : vector<64x1xf32> to vector<64x128xf32>
    %113 = arith.mulf %112, %111 : vector<64x128xf32>
    %cst_66 = arith.constant 1.000000e+00 : f32
    %114 = vector.broadcast %cst_66 : f32 to vector<64x1xf32>
    %115 = arith.subf %114, %59 : vector<64x1xf32>
    %116 = vector.extract_strided_slice %110 {offsets = [0, 128], sizes = [64, 128], strides = [1, 1]} : vector<64x256xf32> to vector<64x128xf32>
    %117 = vector.broadcast %115 : vector<64x1xf32> to vector<64x128xf32>
    %118 = arith.mulf %117, %116 : vector<64x128xf32>
    %119 = arith.addf %113, %118 : vector<64x128xf32>
    %120 = arith.addf %107, %119 : vector<64x128xf32>
    %cst_67 = arith.constant 0.000000e+00 : f32
    %121 = vector.broadcast %cst_67 : f32 to vector<64x128xf32>
    %122 = arith.cmpf oge, %120, %121 : vector<64x128xf32>
    %cst_68 = arith.constant 0.229166672 : f32
    %123 = vector.broadcast %cst_68 : f32 to vector<64x128xf32>
    %124 = arith.mulf %120, %123 : vector<64x128xf32>
    %125 = arith.select %122, %120, %124 : vector<64x128xi1>, vector<64x128xf32>
    %126 = arith.mulf %125, %125 : vector<64x128xf32>
    %cst_69 = arith.constant dense<0.000000e+00> : vector<64xf32>
    %127 = vector.multi_reduction <add>, %126, %cst_69 [1] : vector<64x128xf32> to vector<64xf32>
    %128 = vector.shape_cast %127 : vector<64xf32> to vector<64x1xf32>
    %cst_70 = arith.constant 1.000000e-24 : f32
    %129 = vector.broadcast %cst_70 : f32 to vector<64x1xf32>
    %130 = arith.addf %128, %129 : vector<64x1xf32>
    %131 = math.rsqrt %130 : vector<64x1xf32>
    %132 = vector.broadcast %131 : vector<64x1xf32> to vector<64x128xf32>
    %133 = arith.mulf %125, %132 : vector<64x128xf32>
    %134 = arith.mulf %82, %133 : vector<64x128xf32>
    %cst_71 = arith.constant 1.000000e+00 : f32
    %135 = vector.broadcast %cst_71 : f32 to vector<64x128xf32>
    %136 = arith.subf %135, %82 : vector<64x128xf32>
    %137 = arith.mulf %136, %3 : vector<64x128xf32>
    %138 = arith.addf %134, %137 : vector<64x128xf32>
    %c0_72 = arith.constant 0 : index
    %c0_73 = arith.constant 0 : index
    %139 = vector.load %arg16[%c0_72, %c0_73] : memref<64x128xf32, #tpu.memory_space<vmem>>, vector<64x128xf32>
    tpu.vector_store %arg16[%c0_72, %c0_73], %138 {strides = array<i32>} : memref<64x128xf32, #tpu.memory_space<vmem>>, vector<64x128xf32>,
    %140 = arith.truncf %138 : vector<64x128xf32> to vector<64x128xbf16>
    %c0_74 = arith.constant 0 : index
    %c0_75 = arith.constant 0 : index
    %c0_76 = arith.constant 0 : index
    %141 = vector.load %arg14[%c0_74, %c0_75, %c0_76] : memref<1x64x128xbf16, #tpu.memory_space<vmem>>, vector<1x64x128xbf16>
    %142 = vector.shape_cast %141 : vector<1x64x128xbf16> to vector<64x128xbf16>
    %143 = vector.shape_cast %140 : vector<64x128xbf16> to vector<1x64x128xbf16>
    tpu.vector_store %arg14[%c0_74, %c0_75, %c0_76], %143 {strides = array<i32>} : memref<1x64x128xbf16, #tpu.memory_space<vmem>>, vector<1x64x128xbf16>,
    return
  }
  func.func @transform_1(%arg0: i32) -> (i32, i32) {
    %c0_i32 = arith.constant 0 : i32
    %c0_i32_0 = arith.constant 0 : i32
    %c0_i32_1 = arith.constant 0 : i32
    return %c0_i32, %c0_i32_0 : i32, i32
  }
  func.func @transform_2(%arg0: i32) -> (i32, i32, i32) {
    %c0_i32 = arith.constant 0 : i32
    %c0_i32_0 = arith.constant 0 : i32
    %c0_i32_1 = arith.constant 0 : i32
    return %arg0, %c0_i32, %c0_i32_0 : i32, i32, i32
  }
  func.func @transform_3(%arg0: i32) -> (i32, i32, i32) {
    %c0_i32 = arith.constant 0 : i32
    %c0_i32_0 = arith.constant 0 : i32
    %c0_i32_1 = arith.constant 0 : i32
    return %arg0, %c0_i32, %c0_i32_0 : i32, i32, i32
  }
  func.func @transform_4(%arg0: i32) -> (i32, i32, i32) {
    %c0_i32 = arith.constant 0 : i32
    %c0_i32_0 = arith.constant 0 : i32
    %c0_i32_1 = arith.constant 0 : i32
    return %arg0, %c0_i32, %c0_i32_0 : i32, i32, i32
  }
  func.func @transform_5(%arg0: i32) -> (i32, i32) {
    %c0_i32 = arith.constant 0 : i32
    %c0_i32_0 = arith.constant 0 : i32
    %c0_i32_1 = arith.constant 0 : i32
    return %c0_i32, %c0_i32_0 : i32, i32
  }
  func.func @transform_6(%arg0: i32) -> (i32, i32) {
    %c0_i32 = arith.constant 0 : i32
    %c0_i32_0 = arith.constant 0 : i32
    %c0_i32_1 = arith.constant 0 : i32
    return %c0_i32, %c0_i32_0 : i32, i32
  }
  func.func @transform_7(%arg0: i32) -> (i32, i32) {
    %c0_i32 = arith.constant 0 : i32
    %c0_i32_0 = arith.constant 0 : i32
    %c0_i32_1 = arith.constant 0 : i32
    return %c0_i32, %c0_i32_0 : i32, i32
  }
  func.func @transform_8(%arg0: i32) -> (i32, i32) {
    %c0_i32 = arith.constant 0 : i32
    %c0_i32_0 = arith.constant 0 : i32
    %c0_i32_1 = arith.constant 0 : i32
    return %c0_i32, %c0_i32_0 : i32, i32
  }
  func.func @transform_9(%arg0: i32) -> (i32, i32) {
    %c0_i32 = arith.constant 0 : i32
    %c0_i32_0 = arith.constant 0 : i32
    %c0_i32_1 = arith.constant 0 : i32
    return %c0_i32, %c0_i32_0 : i32, i32
  }
  func.func @transform_10(%arg0: i32) -> (i32, i32, i32) {
    %c0_i32 = arith.constant 0 : i32
    %c0_i32_0 = arith.constant 0 : i32
    %c0_i32_1 = arith.constant 0 : i32
    %c0_i32_2 = arith.constant 0 : i32
    return %c0_i32, %c0_i32_0, %c0_i32_1 : i32, i32, i32
  }
  func.func @transform_11(%arg0: i32) -> (i32, i32, i32) {
    %c0_i32 = arith.constant 0 : i32
    %c0_i32_0 = arith.constant 0 : i32
    %c0_i32_1 = arith.constant 0 : i32
    %c0_i32_2 = arith.constant 0 : i32
    return %c0_i32, %c0_i32_0, %c0_i32_1 : i32, i32, i32
  }
  func.func @transform_12(%arg0: i32) -> (i32, i32) {
    %c0_i32 = arith.constant 0 : i32
    %c0_i32_0 = arith.constant 0 : i32
    %c0_i32_1 = arith.constant 0 : i32
    return %c0_i32, %c0_i32_0 : i32, i32
  }
  func.func @transform_13(%arg0: i32) -> (i32, i32, i32) {
    %c0_i32 = arith.constant 0 : i32
    %c0_i32_0 = arith.constant 0 : i32
    %c0_i32_1 = arith.constant 0 : i32
    return %arg0, %c0_i32, %c0_i32_0 : i32, i32, i32
  }
  func.func @transform_14(%arg0: i32) -> (i32, i32) {
    %c0_i32 = arith.constant 0 : i32
    %c0_i32_0 = arith.constant 0 : i32
    %c0_i32_1 = arith.constant 0 : i32
    return %c0_i32, %c0_i32_0 : i32, i32
  }
}

</mosaic_0001>

<llo_original>
// kernel: tpu_custom_call.1
$region0: #{tpu_custom_call.1}
  #allocation0 [shape = 'u32[]', space=smem, size = 0x4, offset = 0x4, fixed_abs, tag = 'smem constant byte address 0x4 - core index']
  #allocation1 [shape = 'u32[144,128]{1,0:T(1,128)}', space=vmem, size = 0x12000, scoped, tag = 'internal scratch']
  #allocation2 [shape = 'f32[64,128]{1,0:T(8,128)}', space=vmem, size = 0x8000, scoped, tag = 'scratch operand']
  #allocation3 [shape = 'f32[16,128]{1,0:T(8,128)}', space=vmem, size = 0x2000, scoped, tag = 'scratch operand']
  #allocation4 [shape = 'bf16[128,128]{1,0:T(16,128)(2,1)}', space=vmem, size = 0x8000, scoped, tag = 'scratch operand']
  #allocation5 [shape = 'f32[16,384]{1,0:T(8,128)}', space=vmem, size = 0x6000, scoped, tag = 'scratch operand']
  #allocation21 [shape = 's32[]', space=sflag, size = 0x4, offset = 0, fixed_abs, tag = 'sflag constant byte address 0x0 - dummy sync flag']
  #allocation22 [shape = 's32[]', space=sflag, size = 0x4, offset = 0, fixed_abs, tag = 'sflag constant byte address 0x0 - dummy sync flag']
  #allocation23 [shape = 'u32[]', space=smem, size = 0x4, offset = 0x44, fixed_abs, tag = 'smem constant byte address 0x44 - assertion arg 0']
  #allocation24 [shape = 'u32[]', space=smem, size = 0x4, offset = 0x48, fixed_abs, tag = 'smem constant byte address 0x48 - assertion arg 1']
  %s0 = inlined_call_operand.hbm [shape: f32[64,128], index: 0, kind: input, shape index: {}]
  %s1 = inlined_call_operand.vmem [shape: f32[16,128], index: 1, kind: input, shape index: {}]
  %s2 = inlined_call_operand.hbm [shape: bf16[3,64,128], index: 2, kind: input, shape index: {}]
  %s3 = inlined_call_operand.hbm [shape: bf16[3,16,64], index: 3, kind: input, shape index: {}]
  %s4 = inlined_call_operand.vmem [shape: f32[3,64,1], index: 4, kind: input, shape index: {}]
  %s5 = inlined_call_operand.vmem [shape: bf16[128,384], index: 5, kind: input, shape index: {}]
  %s6 = inlined_call_operand.hbm [shape: bf16[128,384], index: 6, kind: input, shape index: {}]
  %s7 = inlined_call_operand.hbm [shape: bf16[128,384], index: 7, kind: input, shape index: {}]
  %s8 = inlined_call_operand.vmem [shape: f32[1,384], index: 8, kind: input, shape index: {}]
  %s9 = inlined_call_operand.vmem [shape: f32[1,384], index: 9, kind: input, shape index: {}]
  %s10 = inlined_call_operand.hbm [shape: bf16[2,128,128], index: 10, kind: input, shape index: {}]
  %s11 = inlined_call_operand.hbm [shape: bf16[2,128,384], index: 11, kind: input, shape index: {}]
  %s12 = inlined_call_operand.vmem [shape: f32[1,128], index: 12, kind: input, shape index: {}]
  %s13 = inlined_call_operand.hbm [shape: bf16[3,64,128], index: 13, kind: output, shape index: {0}]
  %s14 = inlined_call_operand.hbm [shape: f32[16,128], index: 14, kind: output, shape index: {1}]
  %15 = xla_tuple %s13, %s14
  %s16 = sld [smem:[#allocation0]]
  $region126: #{tpu_custom_call.1} parent=0
    _
  %s18 = ssub.s32 1, %s16
  %s19 = scalar_select 0, %s18, %s16
  $region1: #{tpu_custom_call.1} parent=0
    #allocation6 [shape = 'u8[32768]{0}', space=vmem, size = 0x8000, scoped, tag = 'input window, operand 2']
    #allocation7 [shape = 's32[2]{0}', space=sflag, size = 0x8, scoped, tag = 'scoped memory for tpu_custom_call.1']
    #allocation8 [shape = 's32[2]{0}', space=sflag, size = 0x8, scoped, tag = 'scoped memory for tpu_custom_call.1']
    #allocation9 [shape = 'u8[8192]{0}', space=vmem, size = 0x2000, scoped, tag = 'input window, operand 3']
    #allocation10 [shape = 's32[2]{0}', space=sflag, size = 0x8, scoped, tag = 'scoped memory for tpu_custom_call.1']
    #allocation11 [shape = 'u8[98304]{0}', space=vmem, size = 0x18000, scoped, tag = 'input window, operand 6, single buffered']
    #allocation12 [shape = 'u8[98304]{0}', space=vmem, size = 0x18000, scoped, tag = 'input window, operand 7, single buffered']
    #allocation13 [shape = 's32[1]{0}', space=sflag, size = 0x4, scoped, tag = 'scoped memory for tpu_custom_call.1']
    #allocation14 [shape = 'u8[65536]{0}', space=vmem, size = 0x10000, scoped, tag = 'input window, operand 10, single buffered']
    #allocation15 [shape = 'u8[196608]{0}', space=vmem, size = 0x30000, scoped, tag = 'input window, operand 11, single buffered']
    #allocation16 [shape = 's32[1]{0}', space=sflag, size = 0x4, scoped, tag = 'scoped memory for tpu_custom_call.1']
    #allocation17 [shape = 'u8[32768]{0}', space=vmem, size = 0x8000, scoped, tag = 'output window, operand 0']
    #allocation18 [shape = 'u8[8192]{0}', space=vmem, size = 0x2000, scoped, tag = 'output window, operand 1, single buffered']
    #allocation19 [shape = 's32[1]{0}', space=sflag, size = 0x4, scoped, tag = 'scoped memory for tpu_custom_call.1']
    %20 = vsyncpa [#allocation7], 0
    %s21 = scalar_lea.sflag [#allocation7], 1
    %22 = vsyncpa %s21, 0
    %23 = vsyncpa [#allocation10], 0
    %s24 = scalar_lea.sflag [#allocation10], 1
    %25 = vsyncpa %s24, 0
    %26 = vsyncpa [#allocation13], 0
    %27 = vsyncpa [#allocation16], 0
    %28 = vsyncpa [#allocation8], 0
    %s29 = scalar_lea.sflag [#allocation8], 1
    %30 = vsyncpa %s29, 0
    %31 = vsyncpa [#allocation19], 0
    loop: start=0, step=1, limit=5
    $region2: #{tpu_custom_call.1} parent=1 // loop_pre_header
      _
    $region3: #{tpu_custom_call.1} parent=1 // loop_header
      %s33 = sphi 0, %s37
      %p34 = scmp.ge.s32.totalorder %s33, 5
      %s41 = sphi 0, %s41
      %s43 = sphi 0, %s41
      %s44 = sphi 0, %s43
      %s58 = sphi 0, %s44
      %s64 = sphi 0, %s66
      %s67 = sphi 0, %s64
      %s68 = sphi 0, %s67
      %s84 = sphi 0, %s68
      %s90 = sphi 0, %s92
      %s93 = sphi 0, %s90
      %s94 = sphi 0, %s93
      %s110 = sphi 0, %s94
      %s116 = sphi 0, %s118
      %s119 = sphi 0, %s116
      %s120 = sphi 0, %s119
      %s136 = sphi 0, %s120
      %s140 = sphi 0, %s140
      %s142 = sphi 0, %s140
      %s143 = sphi 0, %s142
      %s157 = sphi 0, %s143
      %s161 = sphi 0, %s161
      %s163 = sphi 0, %s161
      %s164 = sphi 0, %s163
      %s178 = sphi 0, %s164
      %s182 = sphi 0, %s182
      %s184 = sphi 0, %s182
      %s185 = sphi 0, %s184
      %s199 = sphi 0, %s185
      %s203 = sphi 0, %s203
      %s205 = sphi 0, %s203
      %s206 = sphi 0, %s205
      %s220 = sphi 0, %s206
      %s224 = sphi 0, %s224
      %s226 = sphi 0, %s224
      %s227 = sphi 0, %s226
      %s241 = sphi 0, %s227
      %s245 = sphi 0, %s245
      %s247 = sphi 0, %s245
      %s248 = sphi 0, %s247
      %s262 = sphi 0, %s248
      %s266 = sphi 0, %s266
      %s268 = sphi 0, %s266
      %s269 = sphi 0, %s268
      %s283 = sphi 0, %s269
      %s287 = sphi 0, %s287
      %s289 = sphi 0, %s287
      %s290 = sphi 0, %s289
      %s304 = sphi 0, %s290
      %s310 = sphi 0, %s312
      %s313 = sphi 0, %s310
      %s314 = sphi 0, %s313
      %s330 = sphi 0, %s314
      %s334 = sphi 0, %s334
      %s336 = sphi 0, %s334
      %s337 = sphi 0, %s336
      %s351 = sphi 0, %s337
    $region4: #{tpu_custom_call.1} parent=1 // loop_header_branch
      %36 = sbr.rel (%p34) target = $region8
    $region5: #{tpu_custom_call.1} parent=1 // loop_body
      %s38 = ssub.s32 %s33, 1
      %s39 = ssub.s32 %s33, 2
      %s40 = sadd.s32 %s33, 1
      %s42 = sadd.s32 %s41, 1
      %p45 = scmp.eq.s32.totalorder %s33, 2
      %p46 = scmp.ne.s32.totalorder %s41, %s43
      %p47 = scmp.eq.s32.totalorder %s33, 0
      %p48 = por %p46, %p47
      %p49 = scmp.ne.s32.totalorder %s41, %s43
      %p50 = scmp.eq.s32.totalorder %s38, 2
      %p51 = por %p49, %p50
      %p52 = scmp.ne.s32.totalorder %s43, %s44
      %p53 = scmp.eq.s32.totalorder %s38, 0
      %p54 = por %p52, %p53
      %p55 = scmp.ne.s32.totalorder %s43, %s44
      %p56 = scmp.eq.s32.totalorder %s39, 2
      %p57 = por %p55, %p56
      %p59 = scmp.ne.s32.totalorder %s44, %s58
      %p60 = scmp.eq.s32.totalorder %s39, 0
      %p61 = por %p59, %p60
      %s62 = ssub.s32 %s33, %s40
      %p63 = scmp.eq.s32.totalorder %s62, 0
      %s65 = sadd.s32 %s64, 1
      %s66 = scalar_select %p63, %s64, %s65
      %p69 = pneg %p63
      %p70 = scmp.eq.s32.totalorder %s33, 2
      %p71 = por %p69, %p70
      %p72 = scmp.ne.s32.totalorder %s64, %s67
      %p73 = scmp.eq.s32.totalorder %s33, 0
      %p74 = por %p72, %p73
      %p75 = scmp.ne.s32.totalorder %s64, %s67
      %p76 = scmp.eq.s32.totalorder %s38, 2
      %p77 = por %p75, %p76
      %p78 = scmp.ne.s32.totalorder %s67, %s68
      %p79 = scmp.eq.s32.totalorder %s38, 0
      %p80 = por %p78, %p79
      %p81 = scmp.ne.s32.totalorder %s67, %s68
      %p82 = scmp.eq.s32.totalorder %s39, 2
      %p83 = por %p81, %p82
      %p85 = scmp.ne.s32.totalorder %s68, %s84
      %p86 = scmp.eq.s32.totalorder %s39, 0
      %p87 = por %p85, %p86
      %s88 = ssub.s32 %s33, %s40
      %p89 = scmp.eq.s32.totalorder %s88, 0
      %s91 = sadd.s32 %s90, 1
      %s92 = scalar_select %p89, %s90, %s91
      %p95 = pneg %p89
      %p96 = scmp.eq.s32.totalorder %s33, 2
      %p97 = por %p95, %p96
      %p98 = scmp.ne.s32.totalorder %s90, %s93
      %p99 = scmp.eq.s32.totalorder %s33, 0
      %p100 = por %p98, %p99
      %p101 = scmp.ne.s32.totalorder %s90, %s93
      %p102 = scmp.eq.s32.totalorder %s38, 2
      %p103 = por %p101, %p102
      %p104 = scmp.ne.s32.totalorder %s93, %s94
      %p105 = scmp.eq.s32.totalorder %s38, 0
      %p106 = por %p104, %p105
      %p107 = scmp.ne.s32.totalorder %s93, %s94
      %p108 = scmp.eq.s32.totalorder %s39, 2
      %p109 = por %p107, %p108
      %p111 = scmp.ne.s32.totalorder %s94, %s110
      %p112 = scmp.eq.s32.totalorder %s39, 0
      %p113 = por %p111, %p112
      %s114 = ssub.s32 %s33, %s40
      %p115 = scmp.eq.s32.totalorder %s114, 0
      %s117 = sadd.s32 %s116, 1
      %s118 = scalar_select %p115, %s116, %s117
      %p121 = pneg %p115
      %p122 = scmp.eq.s32.totalorder %s33, 2
      %p123 = por %p121, %p122
      %p124 = scmp.ne.s32.totalorder %s116, %s119
      %p125 = scmp.eq.s32.totalorder %s33, 0
      %p126 = por %p124, %p125
      %p127 = scmp.ne.s32.totalorder %s116, %s119
      %p128 = scmp.eq.s32.totalorder %s38, 2
      %p129 = por %p127, %p128
      %p130 = scmp.ne.s32.totalorder %s119, %s120
      %p131 = scmp.eq.s32.totalorder %s38, 0
      %p132 = por %p130, %p131
      %p133 = scmp.ne.s32.totalorder %s119, %s120
      %p134 = scmp.eq.s32.totalorder %s39, 2
      %p135 = por %p133, %p134
      %p137 = scmp.ne.s32.totalorder %s120, %s136
      %p138 = scmp.eq.s32.totalorder %s39, 0
      %p139 = por %p137, %p138
      %s141 = sadd.s32 %s140, 1
      %p144 = scmp.eq.s32.totalorder %s33, 2
      %p145 = scmp.ne.s32.totalorder %s140, %s142
      %p146 = scmp.eq.s32.totalorder %s33, 0
      %p147 = por %p145, %p146
      %p148 = scmp.ne.s32.totalorder %s140, %s142
      %p149 = scmp.eq.s32.totalorder %s38, 2
      %p150 = por %p148, %p149
      %p151 = scmp.ne.s32.totalorder %s142, %s143
      %p152 = scmp.eq.s32.totalorder %s38, 0
      %p153 = por %p151, %p152
      %p154 = scmp.ne.s32.totalorder %s142, %s143
      %p155 = scmp.eq.s32.totalorder %s39, 2
      %p156 = por %p154, %p155
      %p158 = scmp.ne.s32.totalorder %s143, %s157
      %p159 = scmp.eq.s32.totalorder %s39, 0
      %p160 = por %p158, %p159
      %s162 = sadd.s32 %s161, 1
      %p165 = scmp.eq.s32.totalorder %s33, 2
      %p166 = scmp.ne.s32.totalorder %s161, %s163
      %p167 = scmp.eq.s32.totalorder %s33, 0
      %p168 = por %p166, %p167
      %p169 = scmp.ne.s32.totalorder %s161, %s163
      %p170 = scmp.eq.s32.totalorder %s38, 2
      %p171 = por %p169, %p170
      %p172 = scmp.ne.s32.totalorder %s163, %s164
      %p173 = scmp.eq.s32.totalorder %s38, 0
      %p174 = por %p172, %p173
      %p175 = scmp.ne.s32.totalorder %s163, %s164
      %p176 = scmp.eq.s32.totalorder %s39, 2
      %p177 = por %p175, %p176
      %p179 = scmp.ne.s32.totalorder %s164, %s178
      %p180 = scmp.eq.s32.totalorder %s39, 0
      %p181 = por %p179, %p180
      %s183 = sadd.s32 %s182, 1
      %p186 = scmp.eq.s32.totalorder %s33, 2
      %p187 = scmp.ne.s32.totalorder %s182, %s184
      %p188 = scmp.eq.s32.totalorder %s33, 0
      %p189 = por %p187, %p188
      %p190 = scmp.ne.s32.totalorder %s182, %s184
      %p191 = scmp.eq.s32.totalorder %s38, 2
      %p192 = por %p190, %p191
      %p193 = scmp.ne.s32.totalorder %s184, %s185
      %p194 = scmp.eq.s32.totalorder %s38, 0
      %p195 = por %p193, %p194
      %p196 = scmp.ne.s32.totalorder %s184, %s185
      %p197 = scmp.eq.s32.totalorder %s39, 2
      %p198 = por %p196, %p197
      %p200 = scmp.ne.s32.totalorder %s185, %s199
      %p201 = scmp.eq.s32.totalorder %s39, 0
      %p202 = por %p200, %p201
      %s204 = sadd.s32 %s203, 1
      %p207 = scmp.eq.s32.totalorder %s33, 2
      %p208 = scmp.ne.s32.totalorder %s203, %s205
      %p209 = scmp.eq.s32.totalorder %s33, 0
      %p210 = por %p208, %p209
      %p211 = scmp.ne.s32.totalorder %s203, %s205
      %p212 = scmp.eq.s32.totalorder %s38, 2
      %p213 = por %p211, %p212
      %p214 = scmp.ne.s32.totalorder %s205, %s206
      %p215 = scmp.eq.s32.totalorder %s38, 0
      %p216 = por %p214, %p215
      %p217 = scmp.ne.s32.totalorder %s205, %s206
      %p218 = scmp.eq.s32.totalorder %s39, 2
      %p219 = por %p217, %p218
      %p221 = scmp.ne.s32.totalorder %s206, %s220
      %p222 = scmp.eq.s32.totalorder %s39, 0
      %p223 = por %p221, %p222
      %s225 = sadd.s32 %s224, 1
      %p228 = scmp.eq.s32.totalorder %s33, 2
      %p229 = scmp.ne.s32.totalorder %s224, %s226
      %p230 = scmp.eq.s32.totalorder %s33, 0
      %p231 = por %p229, %p230
      %p232 = scmp.ne.s32.totalorder %s224, %s226
      %p233 = scmp.eq.s32.totalorder %s38, 2
      %p234 = por %p232, %p233
      %p235 = scmp.ne.s32.totalorder %s226, %s227
      %p236 = scmp.eq.s32.totalorder %s38, 0
      %p237 = por %p235, %p236
      %p238 = scmp.ne.s32.totalorder %s226, %s227
      %p239 = scmp.eq.s32.totalorder %s39, 2
      %p240 = por %p238, %p239
      %p242 = scmp.ne.s32.totalorder %s227, %s241
      %p243 = scmp.eq.s32.totalorder %s39, 0
      %p244 = por %p242, %p243
      %s246 = sadd.s32 %s245, 1
      %p249 = scmp.eq.s32.totalorder %s33, 2
      %p250 = scmp.ne.s32.totalorder %s245, %s247
      %p251 = scmp.eq.s32.totalorder %s33, 0
      %p252 = por %p250, %p251
      %p253 = scmp.ne.s32.totalorder %s245, %s247
      %p254 = scmp.eq.s32.totalorder %s38, 2
      %p255 = por %p253, %p254
      %p256 = scmp.ne.s32.totalorder %s247, %s248
      %p257 = scmp.eq.s32.totalorder %s38, 0
      %p258 = por %p256, %p257
      %p259 = scmp.ne.s32.totalorder %s247, %s248
      %p260 = scmp.eq.s32.totalorder %s39, 2
      %p261 = por %p259, %p260
      %p263 = scmp.ne.s32.totalorder %s248, %s262
      %p264 = scmp.eq.s32.totalorder %s39, 0
      %p265 = por %p263, %p264
      %s267 = sadd.s32 %s266, 1
      %p270 = scmp.eq.s32.totalorder %s33, 2
      %p271 = scmp.ne.s32.totalorder %s266, %s268
      %p272 = scmp.eq.s32.totalorder %s33, 0
      %p273 = por %p271, %p272
      %p274 = scmp.ne.s32.totalorder %s266, %s268
      %p275 = scmp.eq.s32.totalorder %s38, 2
      %p276 = por %p274, %p275
      %p277 = scmp.ne.s32.totalorder %s268, %s269
      %p278 = scmp.eq.s32.totalorder %s38, 0
      %p279 = por %p277, %p278
      %p280 = scmp.ne.s32.totalorder %s268, %s269
      %p281 = scmp.eq.s32.totalorder %s39, 2
      %p282 = por %p280, %p281
      %p284 = scmp.ne.s32.totalorder %s269, %s283
      %p285 = scmp.eq.s32.totalorder %s39, 0
      %p286 = por %p284, %p285
      %s288 = sadd.s32 %s287, 1
      %p291 = scmp.eq.s32.totalorder %s33, 2
      %p292 = scmp.ne.s32.totalorder %s287, %s289
      %p293 = scmp.eq.s32.totalorder %s33, 0
      %p294 = por %p292, %p293
      %p295 = scmp.ne.s32.totalorder %s287, %s289
      %p296 = scmp.eq.s32.totalorder %s38, 2
      %p297 = por %p295, %p296
      %p298 = scmp.ne.s32.totalorder %s289, %s290
      %p299 = scmp.eq.s32.totalorder %s38, 0
      %p300 = por %p298, %p299
      %p301 = scmp.ne.s32.totalorder %s289, %s290
      %p302 = scmp.eq.s32.totalorder %s39, 2
      %p303 = por %p301, %p302
      %p305 = scmp.ne.s32.totalorder %s290, %s304
      %p306 = scmp.eq.s32.totalorder %s39, 0
      %p307 = por %p305, %p306
      %s308 = ssub.s32 %s33, %s40
      %p309 = scmp.eq.s32.totalorder %s308, 0
      %s311 = sadd.s32 %s310, 1
      %s312 = scalar_select %p309, %s310, %s311
      %p315 = pneg %p309
      %p316 = scmp.eq.s32.totalorder %s33, 2
      %p317 = por %p315, %p316
      %p318 = scmp.ne.s32.totalorder %s310, %s313
      %p319 = scmp.eq.s32.totalorder %s33, 0
      %p320 = por %p318, %p319
      %p321 = scmp.ne.s32.totalorder %s310, %s313
      %p322 = scmp.eq.s32.totalorder %s38, 2
      %p323 = por %p321, %p322
      %p324 = scmp.ne.s32.totalorder %s313, %s314
      %p325 = scmp.eq.s32.totalorder %s38, 0
      %p326 = por %p324, %p325
      %p327 = scmp.ne.s32.totalorder %s313, %s314
      %p328 = scmp.eq.s32.totalorder %s39, 2
      %p329 = por %p327, %p328
      %p331 = scmp.ne.s32.totalorder %s314, %s330
      %p332 = scmp.eq.s32.totalorder %s39, 0
      %p333 = por %p331, %p332
      %s335 = sadd.s32 %s334, 1
      %p338 = scmp.eq.s32.totalorder %s33, 2
      %p339 = scmp.ne.s32.totalorder %s334, %s336
      %p340 = scmp.eq.s32.totalorder %s33, 0
      %p341 = por %p339, %p340
      %p342 = scmp.ne.s32.totalorder %s334, %s336
      %p343 = scmp.eq.s32.totalorder %s38, 2
      %p344 = por %p342, %p343
      %p345 = scmp.ne.s32.totalorder %s336, %s337
      %p346 = scmp.eq.s32.totalorder %s38, 0
      %p347 = por %p345, %p346
      %p348 = scmp.ne.s32.totalorder %s336, %s337
      %p349 = scmp.eq.s32.totalorder %s39, 2
      %p350 = por %p348, %p349
      %p352 = scmp.ne.s32.totalorder %s337, %s351
      %p353 = scmp.eq.s32.totalorder %s39, 0
      %p354 = por %p352, %p353
      %p355 = scmp.le.s32.totalorder 1, %s33
      %p356 = scmp.lt.s32.totalorder %s33, 4
      %p357 = pnand %p355, %p356
      %p358 = pneg %p357
      // Predicated region
      $region9: #{tpu_custom_call.1} parent=5 // pred_check
        _
      $region10: #{tpu_custom_call.1} parent=5 // pred_check_branch
        %360 = sbr.rel (%p357) target = $region12
      $region11: #{tpu_custom_call.1} parent=5 // pred_region
        %s361 = ssub.s32 %s33, 1
        // Predicated region
        $region13: #{tpu_custom_call.1} parent=11 // pred_check
          %p362 = pneg %p54
        $region14: #{tpu_custom_call.1} parent=11 // pred_check_branch
          %364 = sbr.rel (%p362) target = $region16
        $region15: #{tpu_custom_call.1} parent=11 // pred_region
          _
        $region16: #{tpu_custom_call.1} parent=11 // pred_fallthru
          _
        // Predicated region
        $region17: #{tpu_custom_call.1} parent=11 // pred_check
          %p365 = pneg %p153
        $region18: #{tpu_custom_call.1} parent=11 // pred_check_branch
          %367 = sbr.rel (%p365) target = $region20
        $region19: #{tpu_custom_call.1} parent=11 // pred_region
          _
        $region20: #{tpu_custom_call.1} parent=11 // pred_fallthru
          _
        // Predicated region
        $region21: #{tpu_custom_call.1} parent=11 // pred_check
          %p368 = pneg %p174
        $region22: #{tpu_custom_call.1} parent=11 // pred_check_branch
          %370 = sbr.rel (%p368) target = $region24
        $region23: #{tpu_custom_call.1} parent=11 // pred_region
          %s372 = ssub.s32 3072, 3072
          %373 = vsyncadd [#allocation10], %s372
          %s374 = sshll.u32 [#allocation11], 4
          %s375 = int_to_ptr.vmem [resolvable:$true] %s374
          %380 = dma.hbm_to_vmem [thread:$0]  %s6, 3072, %s375, [#allocation10], 192, 192, 12
        $region24: #{tpu_custom_call.1} parent=11 // pred_fallthru
          _
        // Predicated region
        $region25: #{tpu_custom_call.1} parent=11 // pred_check
          %p381 = pneg %p195
        $region26: #{tpu_custom_call.1} parent=11 // pred_check_branch
          %383 = sbr.rel (%p381) target = $region28
        $region27: #{tpu_custom_call.1} parent=11 // pred_region
          %s385 = ssub.s32 3072, 3072
          %386 = vsyncadd [#allocation13], %s385
          %s387 = sshll.u32 [#allocation12], 4
          %s388 = int_to_ptr.vmem [resolvable:$true] %s387
          %393 = dma.hbm_to_vmem [thread:$0]  %s7, 3072, %s388, [#allocation13], 192, 192, 12
        $region28: #{tpu_custom_call.1} parent=11 // pred_fallthru
          _
        // Predicated region
        $region29: #{tpu_custom_call.1} parent=11 // pred_check
          %p394 = pneg %p216
        $region30: #{tpu_custom_call.1} parent=11 // pred_check_branch
          %396 = sbr.rel (%p394) target = $region32
        $region31: #{tpu_custom_call.1} parent=11 // pred_region
          _
        $region32: #{tpu_custom_call.1} parent=11 // pred_fallthru
          _
        // Predicated region
        $region33: #{tpu_custom_call.1} parent=11 // pred_check
          %p397 = pneg %p237
        $region34: #{tpu_custom_call.1} parent=11 // pred_check_branch
          %399 = sbr.rel (%p397) target = $region36
        $region35: #{tpu_custom_call.1} parent=11 // pred_region
          _
        $region36: #{tpu_custom_call.1} parent=11 // pred_fallthru
          _
        // Predicated region
        $region37: #{tpu_custom_call.1} parent=11 // pred_check
          %p400 = pneg %p258
        $region38: #{tpu_custom_call.1} parent=11 // pred_check_branch
          %402 = sbr.rel (%p400) target = $region40
        $region39: #{tpu_custom_call.1} parent=11 // pred_region
          %s404 = ssub.s32 2048, 2048
          %405 = vsyncadd [#allocation13], %s404
          %s406 = sshll.u32 [#allocation14], 4
          %s407 = int_to_ptr.vmem [resolvable:$true] %s406
          %412 = dma.hbm_to_vmem [thread:$0]  %s10, 2048, %s407, [#allocation13], 64, 64, 4
        $region40: #{tpu_custom_call.1} parent=11 // pred_fallthru
          _
        // Predicated region
        $region41: #{tpu_custom_call.1} parent=11 // pred_check
          %p413 = pneg %p279
        $region42: #{tpu_custom_call.1} parent=11 // pred_check_branch
          %415 = sbr.rel (%p413) target = $region44
        $region43: #{tpu_custom_call.1} parent=11 // pred_region
          %s417 = ssub.s32 6144, 6144
          %418 = vsyncadd [#allocation16], %s417
          %s419 = sshll.u32 [#allocation15], 4
          %s420 = int_to_ptr.vmem [resolvable:$true] %s419
          %425 = dma.hbm_to_vmem [thread:$0]  %s11, 6144, %s420, [#allocation16], 192, 192, 12
        $region44: #{tpu_custom_call.1} parent=11 // pred_fallthru
          _
        // Predicated region
        $region45: #{tpu_custom_call.1} parent=11 // pred_check
          %p426 = pneg %p300
        $region46: #{tpu_custom_call.1} parent=11 // pred_check_branch
          %428 = sbr.rel (%p426) target = $region48
        $region47: #{tpu_custom_call.1} parent=11 // pred_region
          _
        $region48: #{tpu_custom_call.1} parent=11 // pred_fallthru
          _
      $region12: #{tpu_custom_call.1} parent=5 // pred_fallthru
        _
      %p429 = scmp.lt.s32.totalorder %s33, 3
      // Predicated region
      $region49: #{tpu_custom_call.1} parent=5 // pred_check
        %p430 = pneg %p429
      $region50: #{tpu_custom_call.1} parent=5 // pred_check_branch
        %432 = sbr.rel (%p430) target = $region52
      $region51: #{tpu_custom_call.1} parent=5 // pred_region
        // Predicated region
        $region53: #{tpu_custom_call.1} parent=51 // pred_check
          %p433 = pneg %p74
        $region54: #{tpu_custom_call.1} parent=51 // pred_check_branch
          %435 = sbr.rel (%p433) target = $region56
        $region55: #{tpu_custom_call.1} parent=51 // pred_region
          %s436 = sand.u32 %s64, 1
          %s437 = scalar_lea.sflag [#allocation7], %s436
          %s438 = sand.u32 %s64, 1
          %s439 = smul.addr %s438, 32
          %s440 = scalar_lea.vmem [#allocation6], %s439
          %s442 = ssub.s32 512, 512
          %443 = vsyncadd %s437, %s442
          %s444 = smul.addr %s33, 8
          %s445 = smul.addr %s444, 64
          %s446 = scalar_lea.hbm %s2, %s445
          %s447 = sshll.u32 %s440, 4
          %s448 = int_to_ptr.vmem [resolvable:$true] %s447
          %453 = dma.hbm_to_vmem [thread:$0]  %s446, 512, %s448, %s437, 64, 64, 4
        $region56: #{tpu_custom_call.1} parent=51 // pred_fallthru
          _
        // Predicated region
        $region57: #{tpu_custom_call.1} parent=51 // pred_check
          %p454 = pneg %p100
        $region58: #{tpu_custom_call.1} parent=51 // pred_check_branch
          %456 = sbr.rel (%p454) target = $region60
        $region59: #{tpu_custom_call.1} parent=51 // pred_region
          %s457 = sand.u32 %s33, 1
          %s458 = scalar_lea.sflag [#allocation10], %s457
          %s459 = sand.u32 %s90, 1
          %s460 = smul.addr %s459, 8
          %s461 = scalar_lea.vmem [#allocation9], %s460
          %s463 = ssub.s32 128, 128
          %464 = vsyncadd %s458, %s463
          %s465 = smul.addr %s33, 2
          %s466 = smul.addr %s465, 64
          %s467 = scalar_lea.hbm %s3, %s466
          %s468 = sshll.u32 %s461, 4
          %s469 = int_to_ptr.vmem [resolvable:$true] %s468
          %474 = dma.hbm_to_vmem [thread:$0]  %s467, 128, %s469, %s458, 64, 64, 4
        $region60: #{tpu_custom_call.1} parent=51 // pred_fallthru
          _
        // Predicated region
        $region61: #{tpu_custom_call.1} parent=51 // pred_check
          %p475 = pneg %p126
        $region62: #{tpu_custom_call.1} parent=51 // pred_check_branch
          %477 = sbr.rel (%p475) target = $region64
        $region63: #{tpu_custom_call.1} parent=51 // pred_region
          %p478 = scmp.lt.s32.totalorder %s33, 2
          %s479 = scalar_select %p478, %s33, 2
          %s480 = smul.addr %s479, 8
          %s481 = smul.addr %s480, 8
          %s482 = scalar_lea.vmem %s4, %s481
        $region64: #{tpu_custom_call.1} parent=51 // pred_fallthru
          _
      $region52: #{tpu_custom_call.1} parent=5 // pred_fallthru
        _
      %p483 = scmp.le.s32.totalorder 1, %s33
      %p484 = scmp.lt.s32.totalorder %s33, 4
      %p485 = pnand %p483, %p484
      %p486 = pneg %p485
      // Predicated region
      $region65: #{tpu_custom_call.1} parent=5 // pred_check
        _
      $region66: #{tpu_custom_call.1} parent=5 // pred_check_branch
        %488 = sbr.rel (%p485) target = $region68
      $region67: #{tpu_custom_call.1} parent=5 // pred_region
        %s489 = ssub.s32 %s33, 1
        %s490 = sand.u32 %s67, 1
        %s491 = scalar_lea.sflag [#allocation7], %s490
        %s492 = sand.u32 %s67, 1
        %s493 = smul.addr %s492, 32
        %s494 = scalar_lea.vmem [#allocation6], %s493
        // Predicated region
        $region69: #{tpu_custom_call.1} parent=67 // pred_check
          %p495 = pneg %p80
        $region70: #{tpu_custom_call.1} parent=67 // pred_check_branch
          %497 = sbr.rel (%p495) target = $region72
        $region71: #{tpu_custom_call.1} parent=67 // pred_region
          %498 = dma.done %s491, 512
        $region72: #{tpu_custom_call.1} parent=67 // pred_fallthru
          _
        %s499 = sand.u32 %s38, 1
        %s500 = scalar_lea.sflag [#allocation10], %s499
        %s501 = sand.u32 %s93, 1
        %s502 = smul.addr %s501, 8
        %s503 = scalar_lea.vmem [#allocation9], %s502
        // Predicated region
        $region73: #{tpu_custom_call.1} parent=67 // pred_check
          %p504 = pneg %p106
        $region74: #{tpu_custom_call.1} parent=67 // pred_check_branch
          %506 = sbr.rel (%p504) target = $region76
        $region75: #{tpu_custom_call.1} parent=67 // pred_region
          %507 = dma.done %s500, 128
        $region76: #{tpu_custom_call.1} parent=67 // pred_fallthru
          _
        // Predicated region
        $region77: #{tpu_custom_call.1} parent=67 // pred_check
          %p508 = pneg %p174
        $region78: #{tpu_custom_call.1} parent=67 // pred_check_branch
          %510 = sbr.rel (%p508) target = $region80
        $region79: #{tpu_custom_call.1} parent=67 // pred_region
          %511 = dma.done [#allocation10], 3072
        $region80: #{tpu_custom_call.1} parent=67 // pred_fallthru
          _
        // Predicated region
        $region81: #{tpu_custom_call.1} parent=67 // pred_check
          %p512 = pneg %p195
        $region82: #{tpu_custom_call.1} parent=67 // pred_check_branch
          %514 = sbr.rel (%p512) target = $region84
        $region83: #{tpu_custom_call.1} parent=67 // pred_region
          %515 = dma.done [#allocation13], 3072
        $region84: #{tpu_custom_call.1} parent=67 // pred_fallthru
          _
        // Predicated region
        $region85: #{tpu_custom_call.1} parent=67 // pred_check
          %p516 = pneg %p258
        $region86: #{tpu_custom_call.1} parent=67 // pred_check_branch
          %518 = sbr.rel (%p516) target = $region88
        $region87: #{tpu_custom_call.1} parent=67 // pred_region
          %519 = dma.done [#allocation13], 2048
        $region88: #{tpu_custom_call.1} parent=67 // pred_fallthru
          _
        // Predicated region
        $region89: #{tpu_custom_call.1} parent=67 // pred_check
          %p520 = pneg %p279
        $region90: #{tpu_custom_call.1} parent=67 // pred_check_branch
          %522 = sbr.rel (%p520) target = $region92
        $region91: #{tpu_custom_call.1} parent=67 // pred_region
          %523 = dma.done [#allocation16], 6144
        $region92: #{tpu_custom_call.1} parent=67 // pred_fallthru
          _
        %p524 = pneg %p54
        %p525 = pneg %p51
        %s526 = sand.u32 %s67, 1
        %s527 = scalar_lea.sflag [#allocation7], %s526
        %s528 = sand.u32 %s67, 1
        %s529 = smul.addr %s528, 32
        %s530 = scalar_lea.vmem [#allocation6], %s529
        %p531 = pneg %p80
        %p532 = pneg %p77
        %s533 = sand.u32 %s38, 1
        %s534 = scalar_lea.sflag [#allocation10], %s533
        %s535 = sand.u32 %s93, 1
        %s536 = smul.addr %s535, 8
        %s537 = scalar_lea.vmem [#allocation9], %s536
        %p538 = pneg %p106
        %p539 = pneg %p103
        %p540 = scmp.lt.s32.totalorder %s38, 2
        %s541 = scalar_select %p540, %s38, 2
        %s542 = smul.addr %s541, 8
        %s543 = smul.addr %s542, 8
        %s544 = scalar_lea.vmem %s4, %s543
        %p545 = pneg %p132
        %p546 = pneg %p129
        %p547 = pneg %p153
        %p548 = pneg %p150
        %p549 = pneg %p174
        %p550 = pneg %p171
        %p551 = pneg %p195
        %p552 = pneg %p192
        %p553 = pneg %p216
        %p554 = pneg %p213
        %p555 = pneg %p237
        %p556 = pneg %p234
        %p557 = pneg %p258
        %p558 = pneg %p255
        %p559 = pneg %p279
        %p560 = pneg %p276
        %p561 = pneg %p300
        %p562 = pneg %p297
        %p563 = pneg %p326
        %p564 = pneg %p323
        %s565 = sand.u32 %s313, 1
        %s566 = scalar_lea.sflag [#allocation8], %s565
        %s567 = sand.u32 %s313, 1
        %s568 = smul.addr %s567, 32
        %s569 = scalar_lea.vmem [#allocation17], %s568
        %p570 = pneg %p347
        %p571 = pneg %p344
        %p572 = scmp.lt.s32.totalorder %s38, 2
        %s573 = scalar_select %p572, %s38, 2
        %s574 = smul.addr %s573, 8
        %s575 = smul.addr %s574, 8
        %s576 = scalar_lea.vmem %s4, %s575
        %p578 = scmp.eq.s32.totalorder %s38, 0
        // Predicated region
        $region93: #{tpu_custom_call.1} parent=67 // pred_check
          %p579 = pneg %p578
        $region94: #{tpu_custom_call.1} parent=67 // pred_check_branch
          %581 = sbr.rel (%p579) target = $region96
        $region95: #{tpu_custom_call.1} parent=67 // pred_region
          $region97: #{tpu_custom_call.1} parent=95
            #allocation20 [shape = 's32[1]{0}', space=sflag, size = 0x4, scoped, tag = 'scoped memory for tpu_custom_call.1']
            // Predicated region
            $region98: #{tpu_custom_call.1} parent=97 // pred_check
              _
            $region99: #{tpu_custom_call.1} parent=97 // pred_check_branch
              %583 = sbr.rel target = $region101
            $region100: #{tpu_custom_call.1} parent=97 // pred_region
              %584 = sst [smem:[#allocation23]] [#allocation22]
              %585 = sst [smem:[#allocation24]] [#allocation21]
            $region101: #{tpu_custom_call.1} parent=97 // pred_fallthru
              _
            %587 = shalt.err (0)
            %s589 = sshll.u32 [#allocation2], 4
            %s590 = int_to_ptr.vmem [resolvable:$true] %s589
            %592 = dma.hbm_to_vmem [thread:$0]  %s0, 1024, %s590, [#allocation20]
            %s593 = smul.u32 64, 1
            %s594 = sshll.u32 %s593, 4
            %595 = dma.done [#allocation20], %s594
          %v596 = vld [vmem:[%s1] sm:$0xff]
          %v597 = vld [vmem:[%s1 + $0x8] sm:$0xff]
          %598 = vst [vmem:[#allocation3] sm:$0xff] %v596
          %599 = vst [vmem:[#allocation3 + $0x8] sm:$0xff] %v597
          %600 = vst [vmem:[#allocation4] sm:$0xff] 0
          %601 = vst [vmem:[#allocation4 + $0x8] sm:$0xff] 0
          %602 = vst [vmem:[#allocation4 + $0x10] sm:$0xff] 0
          %603 = vst [vmem:[#allocation4 + $0x18] sm:$0xff] 0
          %604 = vst [vmem:[#allocation4 + $0x20] sm:$0xff] 0
          %605 = vst [vmem:[#allocation4 + $0x28] sm:$0xff] 0
          %606 = vst [vmem:[#allocation4 + $0x30] sm:$0xff] 0
          %607 = vst [vmem:[#allocation4 + $0x38] sm:$0xff] 0
          %v608 = vld [vmem:[%s1] sm:$0xff]
          %v609 = vld [vmem:[%s1 + $0x8] sm:$0xff]
          %v610 = vpack.c.bf16 %v609, %v608
          %v611 = vld [vmem:[%s5] sm:$0xff]
          %v612 = vld [vmem:[%s5 + $0x8] sm:$0xf]
          %v613 = vld [vmem:[%s5 + $0xc] sm:$0xff]
          %v614 = vld [vmem:[%s5 + $0x14] sm:$0xf]
          %v615 = vld [vmem:[%s5 + $0x18] sm:$0xff]
          %v616 = vld [vmem:[%s5 + $0x20] sm:$0xf]
          %v617 = vld [vmem:[%s5 + $0x24] sm:$0xff]
          %v618 = vld [vmem:[%s5 + $0x2c] sm:$0xf]
          %v619 = vld [vmem:[%s5 + $0x30] sm:$0xff]
          %v620 = vld [vmem:[%s5 + $0x38] sm:$0xf]
          %v621 = vld [vmem:[%s5 + $0x3c] sm:$0xff]
          %v622 = vld [vmem:[%s5 + $0x44] sm:$0xf]
          %v623 = vld [vmem:[%s5 + $0x48] sm:$0xff]
          %v624 = vld [vmem:[%s5 + $0x50] sm:$0xf]
          %v625 = vld [vmem:[%s5 + $0x54] sm:$0xff]
          %v626 = vld [vmem:[%s5 + $0x5c] sm:$0xf]
          %v627 = vld [vmem:[%s5 + $0x60] sm:$0xff]
          %v628 = vld [vmem:[%s5 + $0x68] sm:$0xf]
          %v629 = vld [vmem:[%s5 + $0x6c] sm:$0xff]
          %v630 = vld [vmem:[%s5 + $0x74] sm:$0xf]
          %v631 = vld [vmem:[%s5 + $0x78] sm:$0xff]
          %v632 = vld [vmem:[%s5 + $0x80] sm:$0xf]
          %v633 = vld [vmem:[%s5 + $0x84] sm:$0xff]
          %v634 = vld [vmem:[%s5 + $0x8c] sm:$0xf]
          %v635 = vld [vmem:[%s5 + $0x90] sm:$0xff]
          %v636 = vld [vmem:[%s5 + $0x98] sm:$0xf]
          %v637 = vld [vmem:[%s5 + $0x9c] sm:$0xff]
          %v638 = vld [vmem:[%s5 + $0xa4] sm:$0xf]
          %v639 = vld [vmem:[%s5 + $0xa8] sm:$0xff]
          %v640 = vld [vmem:[%s5 + $0xb0] sm:$0xf]
          %v641 = vld [vmem:[%s5 + $0xb4] sm:$0xff]
          %v642 = vld [vmem:[%s5 + $0xbc] sm:$0xf]
          %v643 = vld [vmem:[%s8] sm:$0x7]
          %v645 = vlaneseq
          %v646 = vshrl.u32 %v645, 7
          %v647 = vsub.s32 0, %v646
          %v648 = vrot.slane %v643, %v647
          %v649 = vlaneseq
          %v650 = vshrl.u32 %v649, 7
          %v651 = vsub.s32 1, %v650
          %v652 = vrot.slane %v643, %v651
          %v653 = vlaneseq
          %v654 = vshrl.u32 %v653, 7
          %v655 = vsub.s32 2, %v654
          %v656 = vrot.slane %v643, %v655
          %v692 = vunpack.c.l.b16 %v611
          %v693 = vunpack.c.h.b16 %v611
          %v694 = vunpack.c.l.b16 %v612
          %v695 = vunpack.c.l.b16 %v613
          %v696 = vunpack.c.h.b16 %v613
          %v697 = vunpack.c.l.b16 %v614
          %v698 = vunpack.c.l.b16 %v615
          %v699 = vunpack.c.h.b16 %v615
          %v700 = vunpack.c.l.b16 %v616
          %v701 = vunpack.c.l.b16 %v617
          %v702 = vunpack.c.h.b16 %v617
          %v703 = vunpack.c.l.b16 %v618
          %v704 = vunpack.c.l.b16 %v619
          %v705 = vunpack.c.h.b16 %v619
          %v706 = vunpack.c.l.b16 %v620
          %v707 = vunpack.c.l.b16 %v621
          %v708 = vunpack.c.h.b16 %v621
          %v709 = vunpack.c.l.b16 %v622
          %v710 = vunpack.c.l.b16 %v623
          %v711 = vunpack.c.h.b16 %v623
          %v712 = vunpack.c.l.b16 %v624
          %v713 = vunpack.c.l.b16 %v625
          %v714 = vunpack.c.h.b16 %v625
          %v715 = vunpack.c.l.b16 %v626
          %v716 = vunpack.c.l.b16 %v627
          %v717 = vunpack.c.h.b16 %v627
          %v718 = vunpack.c.l.b16 %v628
          %v719 = vunpack.c.l.b16 %v629
          %v720 = vunpack.c.h.b16 %v629
          %v721 = vunpack.c.l.b16 %v630
          %v722 = vunpack.c.l.b16 %v631
          %v723 = vunpack.c.h.b16 %v631
          %v724 = vunpack.c.l.b16 %v632
          %v725 = vunpack.c.l.b16 %v633
          %v726 = vunpack.c.h.b16 %v633
          %v727 = vunpack.c.l.b16 %v634
          %v728 = vunpack.c.l.b16 %v635
          %v729 = vunpack.c.h.b16 %v635
          %v730 = vunpack.c.l.b16 %v636
          %v731 = vunpack.c.l.b16 %v637
          %v732 = vunpack.c.h.b16 %v637
          %v733 = vunpack.c.l.b16 %v638
          %v734 = vunpack.c.l.b16 %v639
          %v735 = vunpack.c.h.b16 %v639
          %v736 = vunpack.c.l.b16 %v640
          %v737 = vunpack.c.l.b16 %v641
          %v738 = vunpack.c.h.b16 %v641
          %v739 = vunpack.c.l.b16 %v642
          %v740 = vpack.c.b16 %v695, %v692
          %v741 = vpack.c.b16 %v696, %v693
          %v742 = vpack.c.b16 %v697, %v694
          %v743 = vpack.c.b16 %v701, %v698
          %v744 = vpack.c.b16 %v702, %v699
          %v745 = vpack.c.b16 %v703, %v700
          %v746 = vpack.c.b16 %v707, %v704
          %v747 = vpack.c.b16 %v708, %v705
          %v748 = vpack.c.b16 %v709, %v706
          %v749 = vpack.c.b16 %v713, %v710
          %v750 = vpack.c.b16 %v714, %v711
          %v751 = vpack.c.b16 %v715, %v712
          %v752 = vpack.c.b16 %v719, %v716
          %v753 = vpack.c.b16 %v720, %v717
          %v754 = vpack.c.b16 %v721, %v718
          %v755 = vpack.c.b16 %v725, %v722
          %v756 = vpack.c.b16 %v726, %v723
          %v757 = vpack.c.b16 %v727, %v724
          %v758 = vpack.c.b16 %v731, %v728
          %v759 = vpack.c.b16 %v732, %v729
          %v760 = vpack.c.b16 %v733, %v730
          %v761 = vpack.c.b16 %v737, %v734
          %v762 = vpack.c.b16 %v738, %v735
          %v763 = vpack.c.b16 %v739, %v736
          %788 = vmatprep.subr.bf16.mxu0 %v741
          %789 = vmatpush1.bf16.msra.mxu0 %v740
          %790 = vmatprep.subr.bf16.mxu0 %v744
          %791 = vmatpush1.bf16.msra.mxu0 %v743
          %792 = vmatprep.subr.bf16.mxu0 %v747
          %793 = vmatpush1.bf16.msra.mxu0 %v746
          %794 = vmatprep.subr.bf16.mxu0 %v750
          %795 = vmatpush1.bf16.msra.mxu0 %v749
          %796 = vmatprep.subr.bf16.mxu0 %v753
          %797 = vmatpush1.bf16.msra.mxu0 %v752
          %798 = vmatprep.subr.bf16.mxu0 %v756
          %799 = vmatpush1.bf16.msra.mxu0 %v755
          %800 = vmatprep.subr.bf16.mxu0 %v759
          %801 = vmatpush1.bf16.msra.mxu0 %v758
          %802 = vmatprep.subr.bf16.mxu0 %v762
          %803 = vmatpush1.bf16.msra.mxu0 %v761
          %804 = vmatprep.subr.bf16.mxu0 0
          %805 = vmatpush1.bf16.msra.mxu0 0
          %806 = vmatprep.subr.bf16.mxu0 0
          %807 = vmatpush1.bf16.msra.mxu0 0
          %808 = vmatprep.subr.bf16.mxu0 0
          %809 = vmatpush1.bf16.msra.mxu0 0
          %810 = vmatprep.subr.bf16.mxu0 0
          %811 = vmatpush1.bf16.msra.mxu0 0
          %812 = vmatprep.subr.bf16.mxu0 0
          %813 = vmatpush1.bf16.msra.mxu0 0
          %814 = vmatprep.subr.bf16.mxu0 0
          %815 = vmatpush1.bf16.msra.mxu0 0
          %816 = vmatprep.subr.bf16.mxu0 0
          %817 = vmatpush1.bf16.msra.mxu0 0
          %818 = vmatprep.subr.bf16.mxu0 0
          %819 = vmatpush1.bf16.msra.mxu0 0
          %820 = vmatprep.mubr.bf16.mxu0 0
          %821 = vmatmul.mubr.bf16.gmra.mrb[0].mxu0 %v610
          %v822 = vpop.f32.mrb[0].mxu0
          %v823 = vadd.f32 %v648, %v822
          %v824 = vpop.f32.mrb[0].mxu0
          %v825 = vadd.f32 %v652, %v824
          %v826 = vpop.f32.mrb[0].mxu0
          %v827 = vadd.f32 %v648, %v826
          %v828 = vpop.f32.mrb[0].mxu0
          %v829 = vadd.f32 %v652, %v828
          %830 = vdwg.mxu0
          %831 = vmatprep.subr.bf16.mxu0 0
          %832 = vmatpush1.bf16.msra.mxu0 %v742
          %833 = vmatprep.subr.bf16.mxu0 0
          %834 = vmatpush1.bf16.msra.mxu0 %v745
          %835 = vmatprep.subr.bf16.mxu0 0
          %836 = vmatpush1.bf16.msra.mxu0 %v748
          %837 = vmatprep.subr.bf16.mxu0 0
          %838 = vmatpush1.bf16.msra.mxu0 %v751
          %839 = vmatprep.subr.bf16.mxu0 0
          %840 = vmatpush1.bf16.msra.mxu0 %v754
          %841 = vmatprep.subr.bf16.mxu0 0
          %842 = vmatpush1.bf16.msra.mxu0 %v757
          %843 = vmatprep.subr.bf16.mxu0 0
          %844 = vmatpush1.bf16.msra.mxu0 %v760
          %845 = vmatprep.subr.bf16.mxu0 0
          %846 = vmatpush1.bf16.msra.mxu0 %v763
          %847 = vmatprep.subr.bf16.mxu0 0
          %848 = vmatpush1.bf16.msra.mxu0 0
          %849 = vmatprep.subr.bf16.mxu0 0
          %850 = vmatpush1.bf16.msra.mxu0 0
          %851 = vmatprep.subr.bf16.mxu0 0
          %852 = vmatpush1.bf16.msra.mxu0 0
          %853 = vmatprep.subr.bf16.mxu0 0
          %854 = vmatpush1.bf16.msra.mxu0 0
          %855 = vmatprep.subr.bf16.mxu0 0
          %856 = vmatpush1.bf16.msra.mxu0 0
          %857 = vmatprep.subr.bf16.mxu0 0
          %858 = vmatpush1.bf16.msra.mxu0 0
          %859 = vmatprep.subr.bf16.mxu0 0
          %860 = vmatpush1.bf16.msra.mxu0 0
          %861 = vmatprep.subr.bf16.mxu0 0
          %862 = vmatpush1.bf16.msra.mxu0 0
          %863 = vmatprep.mubr.bf16.mxu0 0
          %864 = vmatmul.mubr.bf16.gmra.mrb[0].mxu0 %v610
          %v865 = vpop.f32.mrb[0].mxu0
          %v866 = vadd.f32 %v656, %v865
          %v867 = vpop.f32.mrb[0].mxu0
          %v868 = vpop.f32.mrb[0].mxu0
          %v869 = vadd.f32 %v656, %v868
          %v870 = vpop.f32.mrb[0].mxu0
          %871 = vdwg.mxu0
          %872 = vst [vmem:[#allocation5] sm:$0xff] %v823
          %873 = vst [vmem:[#allocation5 + $0x8] sm:$0xff] %v825
          %874 = vst [vmem:[#allocation5 + $0x10] sm:$0xff] %v866
          %875 = vst [vmem:[#allocation5 + $0x18] sm:$0xff] %v827
          %876 = vst [vmem:[#allocation5 + $0x20] sm:$0xff] %v829
          %877 = vst [vmem:[#allocation5 + $0x28] sm:$0xff] %v869
        $region96: #{tpu_custom_call.1} parent=67 // pred_fallthru
          _
        %v878 = vld [vmem:[#allocation2] sm:$0xff]
        %v879 = vld [vmem:[#allocation2 + $0x8] sm:$0xff]
        %v880 = vld [vmem:[#allocation2 + $0x10] sm:$0xff]
        %v881 = vld [vmem:[#allocation2 + $0x18] sm:$0xff]
        %v882 = vld [vmem:[#allocation2 + $0x20] sm:$0xff]
        %v883 = vld [vmem:[#allocation2 + $0x28] sm:$0xff]
        %v884 = vld [vmem:[#allocation2 + $0x30] sm:$0xff]
        %v885 = vld [vmem:[#allocation2 + $0x38] sm:$0xff]
        %v886 = vpack.c.bf16 %v879, %v878
        %v887 = vpack.c.bf16 %v881, %v880
        %v888 = vpack.c.bf16 %v883, %v882
        %v889 = vpack.c.bf16 %v885, %v884
        %v890 = vld [vmem:[#allocation3] sm:$0xff]
        %v891 = vld [vmem:[#allocation3 + $0x8] sm:$0xff]
        %v892 = vld [vmem:[%s503] sm:$0xf]
        %v893 = vld [vmem:[%s503 + $0x4] sm:$0xf]
        %v896 = vunpack.c.l.b16 %v892
        %v897 = vunpack.c.l.b16 %v893
        %v898 = vpack.c.b16 %v897, %v896
        %vm899 = vcmask 523264
        %v901 = vsel %vm899, %v898, 0
        %903 = vmatprep.subr.bf16.mxu0 0
        %904 = vmatpush1.bf16.msra.mxu0 %v886
        %905 = vmatprep.subr.bf16.mxu0 0
        %906 = vmatpush1.bf16.msra.mxu0 %v887
        %907 = vmatprep.subr.bf16.mxu0 0
        %908 = vmatpush1.bf16.msra.mxu0 %v888
        %909 = vmatprep.subr.bf16.mxu0 0
        %910 = vmatpush1.bf16.msra.mxu0 %v889
        %911 = vmatprep.subr.bf16.mxu0 0
        %912 = vmatpush1.bf16.msra.mxu0 0
        %913 = vmatprep.subr.bf16.mxu0 0
        %914 = vmatpush1.bf16.msra.mxu0 0
        %915 = vmatprep.subr.bf16.mxu0 0
        %916 = vmatpush1.bf16.msra.mxu0 0
        %917 = vmatprep.subr.bf16.mxu0 0
        %918 = vmatpush1.bf16.msra.mxu0 0
        %919 = vmatprep.subr.bf16.mxu0 0
        %920 = vmatpush1.bf16.msra.mxu0 0
        %921 = vmatprep.subr.bf16.mxu0 0
        %922 = vmatpush1.bf16.msra.mxu0 0
        %923 = vmatprep.subr.bf16.mxu0 0
        %924 = vmatpush1.bf16.msra.mxu0 0
        %925 = vmatprep.subr.bf16.mxu0 0
        %926 = vmatpush1.bf16.msra.mxu0 0
        %927 = vmatprep.subr.bf16.mxu0 0
        %928 = vmatpush1.bf16.msra.mxu0 0
        %929 = vmatprep.subr.bf16.mxu0 0
        %930 = vmatpush1.bf16.msra.mxu0 0
        %931 = vmatprep.subr.bf16.mxu0 0
        %932 = vmatpush1.bf16.msra.mxu0 0
        %933 = vmatprep.subr.bf16.mxu0 0
        %934 = vmatpush1.bf16.msra.mxu0 0
        %935 = vmatprep.mubr.bf16.mxu0 0
        %936 = vmatmul.mubr.bf16.gmra.mrb[0].mxu0 %v901
        %v937 = vpop.f32.mrb[0].mxu0
        %v938 = vadd.f32 0.0, %v937
        %v939 = vpop.f32.mrb[0].mxu0
        %v940 = vpop.f32.mrb[0].mxu0
        %v941 = vadd.f32 0.0, %v940
        %v942 = vpop.f32.mrb[0].mxu0
        %943 = vdwg.mxu0
        %v944 = vpack.c.bf16 %v941, %v938
        %v945 = vld [vmem:[#allocation11] sm:$0xff]
        %v946 = vld [vmem:[#allocation11 + $0x8] sm:$0xf]
        %v947 = vld [vmem:[#allocation11 + $0xc] sm:$0xff]
        %v948 = vld [vmem:[#allocation11 + $0x14] sm:$0xf]
        %v949 = vld [vmem:[#allocation11 + $0x18] sm:$0xff]
        %v950 = vld [vmem:[#allocation11 + $0x20] sm:$0xf]
        %v951 = vld [vmem:[#allocation11 + $0x24] sm:$0xff]
        %v952 = vld [vmem:[#allocation11 + $0x2c] sm:$0xf]
        %v953 = vld [vmem:[#allocation11 + $0x30] sm:$0xff]
        %v954 = vld [vmem:[#allocation11 + $0x38] sm:$0xf]
        %v955 = vld [vmem:[#allocation11 + $0x3c] sm:$0xff]
        %v956 = vld [vmem:[#allocation11 + $0x44] sm:$0xf]
        %v957 = vld [vmem:[#allocation11 + $0x48] sm:$0xff]
        %v958 = vld [vmem:[#allocation11 + $0x50] sm:$0xf]
        %v959 = vld [vmem:[#allocation11 + $0x54] sm:$0xff]
        %v960 = vld [vmem:[#allocation11 + $0x5c] sm:$0xf]
        %v961 = vld [vmem:[#allocation11 + $0x60] sm:$0xff]
        %v962 = vld [vmem:[#allocation11 + $0x68] sm:$0xf]
        %v963 = vld [vmem:[#allocation11 + $0x6c] sm:$0xff]
        %v964 = vld [vmem:[#allocation11 + $0x74] sm:$0xf]
        %v965 = vld [vmem:[#allocation11 + $0x78] sm:$0xff]
        %v966 = vld [vmem:[#allocation11 + $0x80] sm:$0xf]
        %v967 = vld [vmem:[#allocation11 + $0x84] sm:$0xff]
        %v968 = vld [vmem:[#allocation11 + $0x8c] sm:$0xf]
        %v969 = vld [vmem:[#allocation11 + $0x90] sm:$0xff]
        %v970 = vld [vmem:[#allocation11 + $0x98] sm:$0xf]
        %v971 = vld [vmem:[#allocation11 + $0x9c] sm:$0xff]
        %v972 = vld [vmem:[#allocation11 + $0xa4] sm:$0xf]
        %v973 = vld [vmem:[#allocation11 + $0xa8] sm:$0xff]
        %v974 = vld [vmem:[#allocation11 + $0xb0] sm:$0xf]
        %v975 = vld [vmem:[#allocation11 + $0xb4] sm:$0xff]
        %v976 = vld [vmem:[#allocation11 + $0xbc] sm:$0xf]
        %v977 = vld [vmem:[#allocation5] sm:$0xff]
        %v978 = vld [vmem:[#allocation5 + $0x8] sm:$0xff]
        %v979 = vld [vmem:[#allocation5 + $0x10] sm:$0xff]
        %v980 = vld [vmem:[#allocation5 + $0x18] sm:$0xff]
        %v981 = vld [vmem:[#allocation5 + $0x20] sm:$0xff]
        %v982 = vld [vmem:[#allocation5 + $0x28] sm:$0xff]
        %v1015 = vunpack.c.l.b16 %v945
        %v1016 = vunpack.c.h.b16 %v945
        %v1017 = vunpack.c.l.b16 %v946
        %v1018 = vunpack.c.l.b16 %v947
        %v1019 = vunpack.c.h.b16 %v947
        %v1020 = vunpack.c.l.b16 %v948
        %v1021 = vunpack.c.l.b16 %v949
        %v1022 = vunpack.c.h.b16 %v949
        %v1023 = vunpack.c.l.b16 %v950
        %v1024 = vunpack.c.l.b16 %v951
        %v1025 = vunpack.c.h.b16 %v951
        %v1026 = vunpack.c.l.b16 %v952
        %v1027 = vunpack.c.l.b16 %v953
        %v1028 = vunpack.c.h.b16 %v953
        %v1029 = vunpack.c.l.b16 %v954
        %v1030 = vunpack.c.l.b16 %v955
        %v1031 = vunpack.c.h.b16 %v955
        %v1032 = vunpack.c.l.b16 %v956
        %v1033 = vunpack.c.l.b16 %v957
        %v1034 = vunpack.c.h.b16 %v957
        %v1035 = vunpack.c.l.b16 %v958
        %v1036 = vunpack.c.l.b16 %v959
        %v1037 = vunpack.c.h.b16 %v959
        %v1038 = vunpack.c.l.b16 %v960
        %v1039 = vunpack.c.l.b16 %v961
        %v1040 = vunpack.c.h.b16 %v961
        %v1041 = vunpack.c.l.b16 %v962
        %v1042 = vunpack.c.l.b16 %v963
        %v1043 = vunpack.c.h.b16 %v963
        %v1044 = vunpack.c.l.b16 %v964
        %v1045 = vunpack.c.l.b16 %v965
        %v1046 = vunpack.c.h.b16 %v965
        %v1047 = vunpack.c.l.b16 %v966
        %v1048 = vunpack.c.l.b16 %v967
        %v1049 = vunpack.c.h.b16 %v967
        %v1050 = vunpack.c.l.b16 %v968
        %v1051 = vunpack.c.l.b16 %v969
        %v1052 = vunpack.c.h.b16 %v969
        %v1053 = vunpack.c.l.b16 %v970
        %v1054 = vunpack.c.l.b16 %v971
        %v1055 = vunpack.c.h.b16 %v971
        %v1056 = vunpack.c.l.b16 %v972
        %v1057 = vunpack.c.l.b16 %v973
        %v1058 = vunpack.c.h.b16 %v973
        %v1059 = vunpack.c.l.b16 %v974
        %v1060 = vunpack.c.l.b16 %v975
        %v1061 = vunpack.c.h.b16 %v975
        %v1062 = vunpack.c.l.b16 %v976
        %v1063 = vpack.c.b16 %v1018, %v1015
        %v1064 = vpack.c.b16 %v1019, %v1016
        %v1065 = vpack.c.b16 %v1020, %v1017
        %v1066 = vpack.c.b16 %v1024, %v1021
        %v1067 = vpack.c.b16 %v1025, %v1022
        %v1068 = vpack.c.b16 %v1026, %v1023
        %v1069 = vpack.c.b16 %v1030, %v1027
        %v1070 = vpack.c.b16 %v1031, %v1028
        %v1071 = vpack.c.b16 %v1032, %v1029
        %v1072 = vpack.c.b16 %v1036, %v1033
        %v1073 = vpack.c.b16 %v1037, %v1034
        %v1074 = vpack.c.b16 %v1038, %v1035
        %v1075 = vpack.c.b16 %v1042, %v1039
        %v1076 = vpack.c.b16 %v1043, %v1040
        %v1077 = vpack.c.b16 %v1044, %v1041
        %v1078 = vpack.c.b16 %v1048, %v1045
        %v1079 = vpack.c.b16 %v1049, %v1046
        %v1080 = vpack.c.b16 %v1050, %v1047
        %v1081 = vpack.c.b16 %v1054, %v1051
        %v1082 = vpack.c.b16 %v1055, %v1052
        %v1083 = vpack.c.b16 %v1056, %v1053
        %v1084 = vpack.c.b16 %v1060, %v1057
        %v1085 = vpack.c.b16 %v1061, %v1058
        %v1086 = vpack.c.b16 %v1062, %v1059
        %1111 = vmatprep.subr.bf16.mxu0 %v1064
        %1112 = vmatpush1.bf16.msra.mxu0 %v1063
        %1113 = vmatprep.subr.bf16.mxu0 %v1067
        %1114 = vmatpush1.bf16.msra.mxu0 %v1066
        %1115 = vmatprep.subr.bf16.mxu0 %v1070
        %1116 = vmatpush1.bf16.msra.mxu0 %v1069
        %1117 = vmatprep.subr.bf16.mxu0 %v1073
        %1118 = vmatpush1.bf16.msra.mxu0 %v1072
        %1119 = vmatprep.subr.bf16.mxu0 %v1076
        %1120 = vmatpush1.bf16.msra.mxu0 %v1075
        %1121 = vmatprep.subr.bf16.mxu0 %v1079
        %1122 = vmatpush1.bf16.msra.mxu0 %v1078
        %1123 = vmatprep.subr.bf16.mxu0 %v1082
        %1124 = vmatpush1.bf16.msra.mxu0 %v1081
        %1125 = vmatprep.subr.bf16.mxu0 %v1085
        %1126 = vmatpush1.bf16.msra.mxu0 %v1084
        %1127 = vmatprep.subr.bf16.mxu0 0
        %1128 = vmatpush1.bf16.msra.mxu0 0
        %1129 = vmatprep.subr.bf16.mxu0 0
        %1130 = vmatpush1.bf16.msra.mxu0 0
        %1131 = vmatprep.subr.bf16.mxu0 0
        %1132 = vmatpush1.bf16.msra.mxu0 0
        %1133 = vmatprep.subr.bf16.mxu0 0
        %1134 = vmatpush1.bf16.msra.mxu0 0
        %1135 = vmatprep.subr.bf16.mxu0 0
        %1136 = vmatpush1.bf16.msra.mxu0 0
        %1137 = vmatprep.subr.bf16.mxu0 0
        %1138 = vmatpush1.bf16.msra.mxu0 0
        %1139 = vmatprep.subr.bf16.mxu0 0
        %1140 = vmatpush1.bf16.msra.mxu0 0
        %1141 = vmatprep.subr.bf16.mxu0 0
        %1142 = vmatpush1.bf16.msra.mxu0 0
        %1143 = vmatprep.mubr.bf16.mxu0 0
        %1144 = vmatmul.mubr.bf16.gmra.mrb[0].mxu0 %v944
        %v1145 = vpop.f32.mrb[0].mxu0
        %v1146 = vadd.f32 %v977, %v1145
        %v1147 = vpop.f32.mrb[0].mxu0
        %v1148 = vadd.f32 %v978, %v1147
        %v1149 = vpop.f32.mrb[0].mxu0
        %v1150 = vadd.f32 %v980, %v1149
        %v1151 = vpop.f32.mrb[0].mxu0
        %v1152 = vadd.f32 %v981, %v1151
        %1153 = vdwg.mxu0
        %1154 = vmatprep.subr.bf16.mxu0 0
        %1155 = vmatpush1.bf16.msra.mxu0 %v1065
        %1156 = vmatprep.subr.bf16.mxu0 0
        %1157 = vmatpush1.bf16.msra.mxu0 %v1068
        %1158 = vmatprep.subr.bf16.mxu0 0
        %1159 = vmatpush1.bf16.msra.mxu0 %v1071
        %1160 = vmatprep.subr.bf16.mxu0 0
        %1161 = vmatpush1.bf16.msra.mxu0 %v1074
        %1162 = vmatprep.subr.bf16.mxu0 0
        %1163 = vmatpush1.bf16.msra.mxu0 %v1077
        %1164 = vmatprep.subr.bf16.mxu0 0
        %1165 = vmatpush1.bf16.msra.mxu0 %v1080
        %1166 = vmatprep.subr.bf16.mxu0 0
        %1167 = vmatpush1.bf16.msra.mxu0 %v1083
        %1168 = vmatprep.subr.bf16.mxu0 0
        %1169 = vmatpush1.bf16.msra.mxu0 %v1086
        %1170 = vmatprep.subr.bf16.mxu0 0
        %1171 = vmatpush1.bf16.msra.mxu0 0
        %1172 = vmatprep.subr.bf16.mxu0 0
        %1173 = vmatpush1.bf16.msra.mxu0 0
        %1174 = vmatprep.subr.bf16.mxu0 0
        %1175 = vmatpush1.bf16.msra.mxu0 0
        %1176 = vmatprep.subr.bf16.mxu0 0
        %1177 = vmatpush1.bf16.msra.mxu0 0
        %1178 = vmatprep.subr.bf16.mxu0 0
        %1179 = vmatpush1.bf16.msra.mxu0 0
        %1180 = vmatprep.subr.bf16.mxu0 0
        %1181 = vmatpush1.bf16.msra.mxu0 0
        %1182 = vmatprep.subr.bf16.mxu0 0
        %1183 = vmatpush1.bf16.msra.mxu0 0
        %1184 = vmatprep.subr.bf16.mxu0 0
        %1185 = vmatpush1.bf16.msra.mxu0 0
        %1186 = vmatprep.mubr.bf16.mxu0 0
        %1187 = vmatmul.mubr.bf16.gmra.mrb[0].mxu0 %v944
        %v1188 = vpop.f32.mrb[0].mxu0
        %v1189 = vadd.f32 %v979, %v1188
        %v1190 = vpop.f32.mrb[0].mxu0
        %v1191 = vpop.f32.mrb[0].mxu0
        %v1192 = vadd.f32 %v982, %v1191
        %v1193 = vpop.f32.mrb[0].mxu0
        %1194 = vdwg.mxu0
        %v1195 = vpack.c.bf16 %v891, %v890
        %v1196 = vld [vmem:[#allocation12] sm:$0xff]
        %v1197 = vld [vmem:[#allocation12 + $0x8] sm:$0xf]
        %v1198 = vld [vmem:[#allocation12 + $0xc] sm:$0xff]
        %v1199 = vld [vmem:[#allocation12 + $0x14] sm:$0xf]
        %v1200 = vld [vmem:[#allocation12 + $0x18] sm:$0xff]
        %v1201 = vld [vmem:[#allocation12 + $0x20] sm:$0xf]
        %v1202 = vld [vmem:[#allocation12 + $0x24] sm:$0xff]
        %v1203 = vld [vmem:[#allocation12 + $0x2c] sm:$0xf]
        %v1204 = vld [vmem:[#allocation12 + $0x30] sm:$0xff]
        %v1205 = vld [vmem:[#allocation12 + $0x38] sm:$0xf]
        %v1206 = vld [vmem:[#allocation12 + $0x3c] sm:$0xff]
        %v1207 = vld [vmem:[#allocation12 + $0x44] sm:$0xf]
        %v1208 = vld [vmem:[#allocation12 + $0x48] sm:$0xff]
        %v1209 = vld [vmem:[#allocation12 + $0x50] sm:$0xf]
        %v1210 = vld [vmem:[#allocation12 + $0x54] sm:$0xff]
        %v1211 = vld [vmem:[#allocation12 + $0x5c] sm:$0xf]
        %v1212 = vld [vmem:[#allocation12 + $0x60] sm:$0xff]
        %v1213 = vld [vmem:[#allocation12 + $0x68] sm:$0xf]
        %v1214 = vld [vmem:[#allocation12 + $0x6c] sm:$0xff]
        %v1215 = vld [vmem:[#allocation12 + $0x74] sm:$0xf]
        %v1216 = vld [vmem:[#allocation12 + $0x78] sm:$0xff]
        %v1217 = vld [vmem:[#allocation12 + $0x80] sm:$0xf]
        %v1218 = vld [vmem:[#allocation12 + $0x84] sm:$0xff]
        %v1219 = vld [vmem:[#allocation12 + $0x8c] sm:$0xf]
        %v1220 = vld [vmem:[#allocation12 + $0x90] sm:$0xff]
        %v1221 = vld [vmem:[#allocation12 + $0x98] sm:$0xf]
        %v1222 = vld [vmem:[#allocation12 + $0x9c] sm:$0xff]
        %v1223 = vld [vmem:[#allocation12 + $0xa4] sm:$0xf]
        %v1224 = vld [vmem:[#allocation12 + $0xa8] sm:$0xff]
        %v1225 = vld [vmem:[#allocation12 + $0xb0] sm:$0xf]
        %v1226 = vld [vmem:[#allocation12 + $0xb4] sm:$0xff]
        %v1227 = vld [vmem:[#allocation12 + $0xbc] sm:$0xf]
        %v1228 = vld [vmem:[%s9] sm:$0x7]
        %v1230 = vlaneseq
        %v1231 = vshrl.u32 %v1230, 7
        %v1232 = vsub.s32 0, %v1231
        %v1233 = vrot.slane %v1228, %v1232
        %v1234 = vlaneseq
        %v1235 = vshrl.u32 %v1234, 7
        %v1236 = vsub.s32 1, %v1235
        %v1237 = vrot.slane %v1228, %v1236
        %v1238 = vlaneseq
        %v1239 = vshrl.u32 %v1238, 7
        %v1240 = vsub.s32 2, %v1239
        %v1241 = vrot.slane %v1228, %v1240
        %v1277 = vunpack.c.l.b16 %v1196
        %v1278 = vunpack.c.h.b16 %v1196
        %v1279 = vunpack.c.l.b16 %v1197
        %v1280 = vunpack.c.l.b16 %v1198
        %v1281 = vunpack.c.h.b16 %v1198
        %v1282 = vunpack.c.l.b16 %v1199
        %v1283 = vunpack.c.l.b16 %v1200
        %v1284 = vunpack.c.h.b16 %v1200
        %v1285 = vunpack.c.l.b16 %v1201
        %v1286 = vunpack.c.l.b16 %v1202
        %v1287 = vunpack.c.h.b16 %v1202
        %v1288 = vunpack.c.l.b16 %v1203
        %v1289 = vunpack.c.l.b16 %v1204
        %v1290 = vunpack.c.h.b16 %v1204
        %v1291 = vunpack.c.l.b16 %v1205
        %v1292 = vunpack.c.l.b16 %v1206
        %v1293 = vunpack.c.h.b16 %v1206
        %v1294 = vunpack.c.l.b16 %v1207
        %v1295 = vunpack.c.l.b16 %v1208
        %v1296 = vunpack.c.h.b16 %v1208
        %v1297 = vunpack.c.l.b16 %v1209
        %v1298 = vunpack.c.l.b16 %v1210
        %v1299 = vunpack.c.h.b16 %v1210
        %v1300 = vunpack.c.l.b16 %v1211
        %v1301 = vunpack.c.l.b16 %v1212
        %v1302 = vunpack.c.h.b16 %v1212
        %v1303 = vunpack.c.l.b16 %v1213
        %v1304 = vunpack.c.l.b16 %v1214
        %v1305 = vunpack.c.h.b16 %v1214
        %v1306 = vunpack.c.l.b16 %v1215
        %v1307 = vunpack.c.l.b16 %v1216
        %v1308 = vunpack.c.h.b16 %v1216
        %v1309 = vunpack.c.l.b16 %v1217
        %v1310 = vunpack.c.l.b16 %v1218
        %v1311 = vunpack.c.h.b16 %v1218
        %v1312 = vunpack.c.l.b16 %v1219
        %v1313 = vunpack.c.l.b16 %v1220
        %v1314 = vunpack.c.h.b16 %v1220
        %v1315 = vunpack.c.l.b16 %v1221
        %v1316 = vunpack.c.l.b16 %v1222
        %v1317 = vunpack.c.h.b16 %v1222
        %v1318 = vunpack.c.l.b16 %v1223
        %v1319 = vunpack.c.l.b16 %v1224
        %v1320 = vunpack.c.h.b16 %v1224
        %v1321 = vunpack.c.l.b16 %v1225
        %v1322 = vunpack.c.l.b16 %v1226
        %v1323 = vunpack.c.h.b16 %v1226
        %v1324 = vunpack.c.l.b16 %v1227
        %v1325 = vpack.c.b16 %v1280, %v1277
        %v1326 = vpack.c.b16 %v1281, %v1278
        %v1327 = vpack.c.b16 %v1282, %v1279
        %v1328 = vpack.c.b16 %v1286, %v1283
        %v1329 = vpack.c.b16 %v1287, %v1284
        %v1330 = vpack.c.b16 %v1288, %v1285
        %v1331 = vpack.c.b16 %v1292, %v1289
        %v1332 = vpack.c.b16 %v1293, %v1290
        %v1333 = vpack.c.b16 %v1294, %v1291
        %v1334 = vpack.c.b16 %v1298, %v1295
        %v1335 = vpack.c.b16 %v1299, %v1296
        %v1336 = vpack.c.b16 %v1300, %v1297
        %v1337 = vpack.c.b16 %v1304, %v1301
        %v1338 = vpack.c.b16 %v1305, %v1302
        %v1339 = vpack.c.b16 %v1306, %v1303
        %v1340 = vpack.c.b16 %v1310, %v1307
        %v1341 = vpack.c.b16 %v1311, %v1308
        %v1342 = vpack.c.b16 %v1312, %v1309
        %v1343 = vpack.c.b16 %v1316, %v1313
        %v1344 = vpack.c.b16 %v1317, %v1314
        %v1345 = vpack.c.b16 %v1318, %v1315
        %v1346 = vpack.c.b16 %v1322, %v1319
        %v1347 = vpack.c.b16 %v1323, %v1320
        %v1348 = vpack.c.b16 %v1324, %v1321
        %1373 = vmatprep.subr.bf16.mxu0 %v1326
        %1374 = vmatpush1.bf16.msra.mxu0 %v1325
        %1375 = vmatprep.subr.bf16.mxu0 %v1329
        %1376 = vmatpush1.bf16.msra.mxu0 %v1328
        %1377 = vmatprep.subr.bf16.mxu0 %v1332
        %1378 = vmatpush1.bf16.msra.mxu0 %v1331
        %1379 = vmatprep.subr.bf16.mxu0 %v1335
        %1380 = vmatpush1.bf16.msra.mxu0 %v1334
        %1381 = vmatprep.subr.bf16.mxu0 %v1338
        %1382 = vmatpush1.bf16.msra.mxu0 %v1337
        %1383 = vmatprep.subr.bf16.mxu0 %v1341
        %1384 = vmatpush1.bf16.msra.mxu0 %v1340
        %1385 = vmatprep.subr.bf16.mxu0 %v1344
        %1386 = vmatpush1.bf16.msra.mxu0 %v1343
        %1387 = vmatprep.subr.bf16.mxu0 %v1347
        %1388 = vmatpush1.bf16.msra.mxu0 %v1346
        %1389 = vmatprep.subr.bf16.mxu0 0
        %1390 = vmatpush1.bf16.msra.mxu0 0
        %1391 = vmatprep.subr.bf16.mxu0 0
        %1392 = vmatpush1.bf16.msra.mxu0 0
        %1393 = vmatprep.subr.bf16.mxu0 0
        %1394 = vmatpush1.bf16.msra.mxu0 0
        %1395 = vmatprep.subr.bf16.mxu0 0
        %1396 = vmatpush1.bf16.msra.mxu0 0
        %1397 = vmatprep.subr.bf16.mxu0 0
        %1398 = vmatpush1.bf16.msra.mxu0 0
        %1399 = vmatprep.subr.bf16.mxu0 0
        %1400 = vmatpush1.bf16.msra.mxu0 0
        %1401 = vmatprep.subr.bf16.mxu0 0
        %1402 = vmatpush1.bf16.msra.mxu0 0
        %1403 = vmatprep.subr.bf16.mxu0 0
        %1404 = vmatpush1.bf16.msra.mxu0 0
        %1405 = vmatprep.mubr.bf16.mxu0 0
        %1406 = vmatmul.mubr.bf16.gmra.mrb[0].mxu0 %v1195
        %v1407 = vpop.f32.mrb[0].mxu0
        %v1408 = vadd.f32 %v1233, %v1407
        %v1409 = vpop.f32.mrb[0].mxu0
        %v1410 = vadd.f32 %v1237, %v1409
        %v1411 = vpop.f32.mrb[0].mxu0
        %v1412 = vadd.f32 %v1233, %v1411
        %v1413 = vpop.f32.mrb[0].mxu0
        %v1414 = vadd.f32 %v1237, %v1413
        %1415 = vdwg.mxu0
        %1416 = vmatprep.subr.bf16.mxu0 0
        %1417 = vmatpush1.bf16.msra.mxu0 %v1327
        %1418 = vmatprep.subr.bf16.mxu0 0
        %1419 = vmatpush1.bf16.msra.mxu0 %v1330
        %1420 = vmatprep.subr.bf16.mxu0 0
        %1421 = vmatpush1.bf16.msra.mxu0 %v1333
        %1422 = vmatprep.subr.bf16.mxu0 0
        %1423 = vmatpush1.bf16.msra.mxu0 %v1336
        %1424 = vmatprep.subr.bf16.mxu0 0
        %1425 = vmatpush1.bf16.msra.mxu0 %v1339
        %1426 = vmatprep.subr.bf16.mxu0 0
        %1427 = vmatpush1.bf16.msra.mxu0 %v1342
        %1428 = vmatprep.subr.bf16.mxu0 0
        %1429 = vmatpush1.bf16.msra.mxu0 %v1345
        %1430 = vmatprep.subr.bf16.mxu0 0
        %1431 = vmatpush1.bf16.msra.mxu0 %v1348
        %1432 = vmatprep.subr.bf16.mxu0 0
        %1433 = vmatpush1.bf16.msra.mxu0 0
        %1434 = vmatprep.subr.bf16.mxu0 0
        %1435 = vmatpush1.bf16.msra.mxu0 0
        %1436 = vmatprep.subr.bf16.mxu0 0
        %1437 = vmatpush1.bf16.msra.mxu0 0
        %1438 = vmatprep.subr.bf16.mxu0 0
        %1439 = vmatpush1.bf16.msra.mxu0 0
        %1440 = vmatprep.subr.bf16.mxu0 0
        %1441 = vmatpush1.bf16.msra.mxu0 0
        %1442 = vmatprep.subr.bf16.mxu0 0
        %1443 = vmatpush1.bf16.msra.mxu0 0
        %1444 = vmatprep.subr.bf16.mxu0 0
        %1445 = vmatpush1.bf16.msra.mxu0 0
        %1446 = vmatprep.subr.bf16.mxu0 0
        %1447 = vmatpush1.bf16.msra.mxu0 0
        %1448 = vmatprep.mubr.bf16.mxu0 0
        %1449 = vmatmul.mubr.bf16.gmra.mrb[0].mxu0 %v1195
        %v1450 = vpop.f32.mrb[0].mxu0
        %v1451 = vadd.f32 %v1241, %v1450
        %v1452 = vpop.f32.mrb[0].mxu0
        %v1453 = vpop.f32.mrb[0].mxu0
        %v1454 = vadd.f32 %v1241, %v1453
        %v1455 = vpop.f32.mrb[0].mxu0
        %1456 = vdwg.mxu0
        %v1457 = vadd.f32 %v1146, %v1408
        %v1458 = vadd.f32 %v1150, %v1412
        %v1459 = vxor.u32 %v1457, 2147483648
        %v1460 = vxor.u32 %v1458, 2147483648
        %v1461 = vmul.f32 %v1459, 1.442695
        %v1462 = vpow.pop %v1461
        %v1463 = vmul.f32 %v1460, 1.442695
        %v1464 = vpow.pop %v1463
        %v1465 = vadd.f32 %v1462, 1.0
        %v1466 = vadd.f32 %v1464, 1.0
        %v1467 = vrcp.pop %v1465
        %v1468 = vmul.f32 1.0, %v1467
        %v1469 = vrcp.pop %v1466
        %v1470 = vmul.f32 1.0, %v1469
        %v1471 = vadd.f32 %v1148, %v1410
        %v1472 = vadd.f32 %v1152, %v1414
        %v1473 = vxor.u32 %v1471, 2147483648
        %v1474 = vxor.u32 %v1472, 2147483648
        %v1475 = vmul.f32 %v1473, 1.442695
        %v1476 = vpow.pop %v1475
        %v1477 = vmul.f32 %v1474, 1.442695
        %v1478 = vpow.pop %v1477
        %v1479 = vadd.f32 %v1476, 1.0
        %v1480 = vadd.f32 %v1478, 1.0
        %v1481 = vrcp.pop %v1479
        %v1482 = vmul.f32 1.0, %v1481
        %v1483 = vrcp.pop %v1480
        %v1484 = vmul.f32 1.0, %v1483
        %v1485 = vmul.f32 %v1468, %v1451
        %v1486 = vmul.f32 %v1470, %v1454
        %v1487 = vadd.f32 %v1189, %v1485
        %v1488 = vadd.f32 %v1192, %v1486
        %v1489 = vtanh.pop %v1487
        %v1490 = vtanh.pop %v1488
        %v1491 = vsub.f32 1.0, %v1482
        %v1492 = vsub.f32 1.0, %v1484
        %v1493 = vmul.f32 %v1491, %v1489
        %v1494 = vmul.f32 %v1492, %v1490
        %v1495 = vmul.f32 %v1482, %v890
        %v1496 = vmul.f32 %v1484, %v891
        %v1497 = vadd.f32 %v1493, %v1495
        %v1498 = vadd.f32 %v1494, %v1496
        %v1499 = vmul.f32 %v1497, %v1497
        %v1500 = vmul.f32 %v1498, %v1498
        %1501 = vadd.xlane.f32.xlu0 %v1499
        %v1502 = vpop.xlane.xlu0 %1501
        %1503 = vadd.xlane.f32.xlu0 %v1500
        %v1504 = vpop.xlane.xlu0 %1503
        %v1505 = vadd.f32 %v1502, 1e-24
        %v1506 = vadd.f32 %v1504, 1e-24
        %v1507 = vrsqrt.pop %v1505
        %v1508 = vrsqrt.pop %v1506
        %v1509 = vmul.f32 %v1497, %v1507
        %v1510 = vmul.f32 %v1498, %v1508
        %1511 = vst [vmem:[#allocation3] sm:$0xff] %v1509
        %1512 = vst [vmem:[#allocation3 + $0x8] sm:$0xff] %v1510
        %p1513 = scmp.eq.s32.totalorder %s38, 2
        // Predicated region
        $region102: #{tpu_custom_call.1} parent=67 // pred_check
          %p1514 = pneg %p1513
        $region103: #{tpu_custom_call.1} parent=67 // pred_check_branch
          %1516 = sbr.rel (%p1514) target = $region105
        $region104: #{tpu_custom_call.1} parent=67 // pred_region
          %1517 = vst [vmem:[#allocation18] sm:$0xff] %v1509
          %1518 = vst [vmem:[#allocation18 + $0x8] sm:$0xff] %v1510
        $region105: #{tpu_custom_call.1} parent=67 // pred_fallthru
          _
        %v1519 = vld [vmem:[%s576] sm:$0xff]
        %v1520 = vld [vmem:[%s576 + $0x8] sm:$0xff]
        %v1521 = vld [vmem:[%s576 + $0x10] sm:$0xff]
        %v1522 = vld [vmem:[%s576 + $0x18] sm:$0xff]
        %v1523 = vld [vmem:[%s576 + $0x20] sm:$0xff]
        %v1524 = vld [vmem:[%s576 + $0x28] sm:$0xff]
        %v1525 = vld [vmem:[%s576 + $0x30] sm:$0xff]
        %v1526 = vld [vmem:[%s576 + $0x38] sm:$0xff]
        %v1527 = vpack.c.bf16 %v1510, %v1509
        %1528 = vst [vmem:[#allocation4 + $0x20] sm:$0xff] %v1527
        %1529 = vst [vmem:[#allocation4] sm:$0xff] %v886
        %1530 = vst [vmem:[#allocation4 + $0x8] sm:$0xff] %v887
        %1531 = vst [vmem:[#allocation4 + $0x10] sm:$0xff] %v888
        %1532 = vst [vmem:[#allocation4 + $0x18] sm:$0xff] %v889
        %v1533 = vld [vmem:[%s494] sm:$0xf]
        %v1534 = vld [vmem:[%s494 + $0x4] sm:$0xf]
        %v1535 = vld [vmem:[%s494 + $0x8] sm:$0xf]
        %v1536 = vld [vmem:[%s494 + $0xc] sm:$0xf]
        %v1537 = vld [vmem:[%s494 + $0x10] sm:$0xf]
        %v1538 = vld [vmem:[%s494 + $0x14] sm:$0xf]
        %v1539 = vld [vmem:[%s494 + $0x18] sm:$0xf]
        %v1540 = vld [vmem:[%s494 + $0x1c] sm:$0xf]
        %v1541 = vld [vmem:[#allocation4] sm:$0xff]
        %v1542 = vld [vmem:[#allocation4 + $0x8] sm:$0xff]
        %v1543 = vld [vmem:[#allocation4 + $0x10] sm:$0xff]
        %v1544 = vld [vmem:[#allocation4 + $0x18] sm:$0xff]
        %v1545 = vld [vmem:[#allocation4 + $0x20] sm:$0xff]
        %v1546 = vld [vmem:[#allocation4 + $0x28] sm:$0xff]
        %v1547 = vld [vmem:[#allocation4 + $0x30] sm:$0xff]
        %v1548 = vld [vmem:[#allocation4 + $0x38] sm:$0xff]
        %v1557 = vunpack.c.l.b16 %v1533
        %v1558 = vunpack.c.l.b16 %v1534
        %v1559 = vunpack.c.l.b16 %v1535
        %v1560 = vunpack.c.l.b16 %v1536
        %v1561 = vunpack.c.l.b16 %v1537
        %v1562 = vunpack.c.l.b16 %v1538
        %v1563 = vunpack.c.l.b16 %v1539
        %v1564 = vunpack.c.l.b16 %v1540
        %v1565 = vpack.c.b16 %v1558, %v1557
        %v1566 = vpack.c.b16 %v1560, %v1559
        %v1567 = vpack.c.b16 %v1562, %v1561
        %v1568 = vpack.c.b16 %v1564, %v1563
        %1573 = vmatprep.subr.bf16.mxu0 0
        %1574 = vmatpush1.bf16.msra.mxu0 %v1541
        %1575 = vmatprep.subr.bf16.mxu0 0
        %1576 = vmatpush1.bf16.msra.mxu0 %v1542
        %1577 = vmatprep.subr.bf16.mxu0 0
        %1578 = vmatpush1.bf16.msra.mxu0 %v1543
        %1579 = vmatprep.subr.bf16.mxu0 0
        %1580 = vmatpush1.bf16.msra.mxu0 %v1544
        %1581 = vmatprep.subr.bf16.mxu0 0
        %1582 = vmatpush1.bf16.msra.mxu0 %v1545
        %1583 = vmatprep.subr.bf16.mxu0 0
        %1584 = vmatpush1.bf16.msra.mxu0 %v1546
        %1585 = vmatprep.subr.bf16.mxu0 0
        %1586 = vmatpush1.bf16.msra.mxu0 %v1547
        %1587 = vmatprep.subr.bf16.mxu0 0
        %1588 = vmatpush1.bf16.msra.mxu0 %v1548
        %1589 = vmatprep.subr.bf16.mxu0 0
        %1590 = vmatpush1.bf16.msra.mxu0 0
        %1591 = vmatprep.subr.bf16.mxu0 0
        %1592 = vmatpush1.bf16.msra.mxu0 0
        %1593 = vmatprep.subr.bf16.mxu0 0
        %1594 = vmatpush1.bf16.msra.mxu0 0
        %1595 = vmatprep.subr.bf16.mxu0 0
        %1596 = vmatpush1.bf16.msra.mxu0 0
        %1597 = vmatprep.subr.bf16.mxu0 0
        %1598 = vmatpush1.bf16.msra.mxu0 0
        %1599 = vmatprep.subr.bf16.mxu0 0
        %1600 = vmatpush1.bf16.msra.mxu0 0
        %1601 = vmatprep.subr.bf16.mxu0 0
        %1602 = vmatpush1.bf16.msra.mxu0 0
        %1603 = vmatprep.subr.bf16.mxu0 0
        %1604 = vmatpush1.bf16.msra.mxu0 0
        %1605 = vmatprep.mubr.bf16.mxu0 0
        %1606 = vmatmul.mubr.bf16.gmra.mrb[0].mxu0 %v1565
        %v1607 = vpop.f32.mrb[0].mxu0
        %v1608 = vadd.f32 0.0, %v1607
        %v1609 = vpop.f32.mrb[0].mxu0
        %v1610 = vpop.f32.mrb[0].mxu0
        %v1611 = vadd.f32 0.0, %v1610
        %v1612 = vpop.f32.mrb[0].mxu0
        %1613 = vmatprep.mubr.bf16.mxu0 0
        %1614 = vmatmul.mubr.bf16.gmra.mrb[0].mxu0 %v1566
        %v1615 = vpop.f32.mrb[0].mxu0
        %v1616 = vadd.f32 0.0, %v1615
        %v1617 = vpop.f32.mrb[0].mxu0
        %v1618 = vpop.f32.mrb[0].mxu0
        %v1619 = vadd.f32 0.0, %v1618
        %v1620 = vpop.f32.mrb[0].mxu0
        %1621 = vmatprep.mubr.bf16.mxu0 0
        %1622 = vmatmul.mubr.bf16.gmra.mrb[0].mxu0 %v1567
        %v1623 = vpop.f32.mrb[0].mxu0
        %v1624 = vadd.f32 0.0, %v1623
        %v1625 = vpop.f32.mrb[0].mxu0
        %v1626 = vpop.f32.mrb[0].mxu0
        %v1627 = vadd.f32 0.0, %v1626
        %v1628 = vpop.f32.mrb[0].mxu0
        %1629 = vmatprep.mubr.bf16.mxu0 0
        %1630 = vmatmul.mubr.bf16.gmra.mrb[0].mxu0 %v1568
        %v1631 = vpop.f32.mrb[0].mxu0
        %v1632 = vadd.f32 0.0, %v1631
        %v1633 = vpop.f32.mrb[0].mxu0
        %v1634 = vpop.f32.mrb[0].mxu0
        %v1635 = vadd.f32 0.0, %v1634
        %v1636 = vpop.f32.mrb[0].mxu0
        %1637 = vdwg.mxu0
        %v1638 = vpack.c.bf16 %v1611, %v1608
        %v1639 = vpack.c.bf16 %v1619, %v1616
        %v1640 = vpack.c.bf16 %v1627, %v1624
        %v1641 = vpack.c.bf16 %v1635, %v1632
        %v1642 = vld [vmem:[#allocation14] sm:$0xf]
        %v1643 = vld [vmem:[#allocation14 + $0x4] sm:$0xf]
        %v1644 = vld [vmem:[#allocation14 + $0x8] sm:$0xf]
        %v1645 = vld [vmem:[#allocation14 + $0xc] sm:$0xf]
        %v1646 = vld [vmem:[#allocation14 + $0x10] sm:$0xf]
        %v1647 = vld [vmem:[#allocation14 + $0x14] sm:$0xf]
        %v1648 = vld [vmem:[#allocation14 + $0x18] sm:$0xf]
        %v1649 = vld [vmem:[#allocation14 + $0x1c] sm:$0xf]
        %v1650 = vld [vmem:[#allocation14 + $0x20] sm:$0xf]
        %v1651 = vld [vmem:[#allocation14 + $0x24] sm:$0xf]
        %v1652 = vld [vmem:[#allocation14 + $0x28] sm:$0xf]
        %v1653 = vld [vmem:[#allocation14 + $0x2c] sm:$0xf]
        %v1654 = vld [vmem:[#allocation14 + $0x30] sm:$0xf]
        %v1655 = vld [vmem:[#allocation14 + $0x34] sm:$0xf]
        %v1656 = vld [vmem:[#allocation14 + $0x38] sm:$0xf]
        %v1657 = vld [vmem:[#allocation14 + $0x3c] sm:$0xf]
        %v1658 = vld [vmem:[#allocation15] sm:$0xff]
        %v1659 = vld [vmem:[#allocation15 + $0x8] sm:$0xf]
        %v1660 = vld [vmem:[#allocation15 + $0xc] sm:$0xff]
        %v1661 = vld [vmem:[#allocation15 + $0x14] sm:$0xf]
        %v1662 = vld [vmem:[#allocation15 + $0x18] sm:$0xff]
        %v1663 = vld [vmem:[#allocation15 + $0x20] sm:$0xf]
        %v1664 = vld [vmem:[#allocation15 + $0x24] sm:$0xff]
        %v1665 = vld [vmem:[#allocation15 + $0x2c] sm:$0xf]
        %v1666 = vld [vmem:[#allocation15 + $0x30] sm:$0xff]
        %v1667 = vld [vmem:[#allocation15 + $0x38] sm:$0xf]
        %v1668 = vld [vmem:[#allocation15 + $0x3c] sm:$0xff]
        %v1669 = vld [vmem:[#allocation15 + $0x44] sm:$0xf]
        %v1670 = vld [vmem:[#allocation15 + $0x48] sm:$0xff]
        %v1671 = vld [vmem:[#allocation15 + $0x50] sm:$0xf]
        %v1672 = vld [vmem:[#allocation15 + $0x54] sm:$0xff]
        %v1673 = vld [vmem:[#allocation15 + $0x5c] sm:$0xf]
        %v1674 = vld [vmem:[#allocation15 + $0x60] sm:$0xff]
        %v1675 = vld [vmem:[#allocation15 + $0x68] sm:$0xf]
        %v1676 = vld [vmem:[#allocation15 + $0x6c] sm:$0xff]
        %v1677 = vld [vmem:[#allocation15 + $0x74] sm:$0xf]
        %v1678 = vld [vmem:[#allocation15 + $0x78] sm:$0xff]
        %v1679 = vld [vmem:[#allocation15 + $0x80] sm:$0xf]
        %v1680 = vld [vmem:[#allocation15 + $0x84] sm:$0xff]
        %v1681 = vld [vmem:[#allocation15 + $0x8c] sm:$0xf]
        %v1682 = vld [vmem:[#allocation15 + $0x90] sm:$0xff]
        %v1683 = vld [vmem:[#allocation15 + $0x98] sm:$0xf]
        %v1684 = vld [vmem:[#allocation15 + $0x9c] sm:$0xff]
        %v1685 = vld [vmem:[#allocation15 + $0xa4] sm:$0xf]
        %v1686 = vld [vmem:[#allocation15 + $0xa8] sm:$0xff]
        %v1687 = vld [vmem:[#allocation15 + $0xb0] sm:$0xf]
        %v1688 = vld [vmem:[#allocation15 + $0xb4] sm:$0xff]
        %v1689 = vld [vmem:[#allocation15 + $0xbc] sm:$0xf]
        %v1722 = vunpack.c.l.b16 %v1658
        %v1723 = vunpack.c.h.b16 %v1658
        %v1724 = vunpack.c.l.b16 %v1659
        %v1725 = vunpack.c.l.b16 %v1660
        %v1726 = vunpack.c.h.b16 %v1660
        %v1727 = vunpack.c.l.b16 %v1661
        %v1728 = vunpack.c.l.b16 %v1662
        %v1729 = vunpack.c.h.b16 %v1662
        %v1730 = vunpack.c.l.b16 %v1663
        %v1731 = vunpack.c.l.b16 %v1664
        %v1732 = vunpack.c.h.b16 %v1664
        %v1733 = vunpack.c.l.b16 %v1665
        %v1734 = vunpack.c.l.b16 %v1666
        %v1735 = vunpack.c.h.b16 %v1666
        %v1736 = vunpack.c.l.b16 %v1667
        %v1737 = vunpack.c.l.b16 %v1668
        %v1738 = vunpack.c.h.b16 %v1668
        %v1739 = vunpack.c.l.b16 %v1669
        %v1740 = vunpack.c.l.b16 %v1670
        %v1741 = vunpack.c.h.b16 %v1670
        %v1742 = vunpack.c.l.b16 %v1671
        %v1743 = vunpack.c.l.b16 %v1672
        %v1744 = vunpack.c.h.b16 %v1672
        %v1745 = vunpack.c.l.b16 %v1673
        %v1746 = vunpack.c.l.b16 %v1674
        %v1747 = vunpack.c.h.b16 %v1674
        %v1748 = vunpack.c.l.b16 %v1675
        %v1749 = vunpack.c.l.b16 %v1676
        %v1750 = vunpack.c.h.b16 %v1676
        %v1751 = vunpack.c.l.b16 %v1677
        %v1752 = vunpack.c.l.b16 %v1678
        %v1753 = vunpack.c.h.b16 %v1678
        %v1754 = vunpack.c.l.b16 %v1679
        %v1755 = vunpack.c.l.b16 %v1680
        %v1756 = vunpack.c.h.b16 %v1680
        %v1757 = vunpack.c.l.b16 %v1681
        %v1758 = vunpack.c.l.b16 %v1682
        %v1759 = vunpack.c.h.b16 %v1682
        %v1760 = vunpack.c.l.b16 %v1683
        %v1761 = vunpack.c.l.b16 %v1684
        %v1762 = vunpack.c.h.b16 %v1684
        %v1763 = vunpack.c.l.b16 %v1685
        %v1764 = vunpack.c.l.b16 %v1686
        %v1765 = vunpack.c.h.b16 %v1686
        %v1766 = vunpack.c.l.b16 %v1687
        %v1767 = vunpack.c.l.b16 %v1688
        %v1768 = vunpack.c.h.b16 %v1688
        %v1769 = vunpack.c.l.b16 %v1689
        %v1770 = vpack.c.b16 %v1725, %v1722
        %v1771 = vpack.c.b16 %v1726, %v1723
        %v1772 = vpack.c.b16 %v1727, %v1724
        %v1773 = vpack.c.b16 %v1731, %v1728
        %v1774 = vpack.c.b16 %v1732, %v1729
        %v1775 = vpack.c.b16 %v1733, %v1730
        %v1776 = vpack.c.b16 %v1737, %v1734
        %v1777 = vpack.c.b16 %v1738, %v1735
        %v1778 = vpack.c.b16 %v1739, %v1736
        %v1779 = vpack.c.b16 %v1743, %v1740
        %v1780 = vpack.c.b16 %v1744, %v1741
        %v1781 = vpack.c.b16 %v1745, %v1742
        %v1782 = vpack.c.b16 %v1749, %v1746
        %v1783 = vpack.c.b16 %v1750, %v1747
        %v1784 = vpack.c.b16 %v1751, %v1748
        %v1785 = vpack.c.b16 %v1755, %v1752
        %v1786 = vpack.c.b16 %v1756, %v1753
        %v1787 = vpack.c.b16 %v1757, %v1754
        %v1788 = vpack.c.b16 %v1761, %v1758
        %v1789 = vpack.c.b16 %v1762, %v1759
        %v1790 = vpack.c.b16 %v1763, %v1760
        %v1791 = vpack.c.b16 %v1767, %v1764
        %v1792 = vpack.c.b16 %v1768, %v1765
        %v1793 = vpack.c.b16 %v1769, %v1766
        %1818 = vmatprep.subr.bf16.mxu0 %v1771
        %1819 = vmatpush1.bf16.msra.mxu0 %v1770
        %1820 = vmatprep.subr.bf16.mxu0 %v1774
        %1821 = vmatpush1.bf16.msra.mxu0 %v1773
        %1822 = vmatprep.subr.bf16.mxu0 %v1777
        %1823 = vmatpush1.bf16.msra.mxu0 %v1776
        %1824 = vmatprep.subr.bf16.mxu0 %v1780
        %1825 = vmatpush1.bf16.msra.mxu0 %v1779
        %1826 = vmatprep.subr.bf16.mxu0 %v1783
        %1827 = vmatpush1.bf16.msra.mxu0 %v1782
        %1828 = vmatprep.subr.bf16.mxu0 %v1786
        %1829 = vmatpush1.bf16.msra.mxu0 %v1785
        %1830 = vmatprep.subr.bf16.mxu0 %v1789
        %1831 = vmatpush1.bf16.msra.mxu0 %v1788
        %1832 = vmatprep.subr.bf16.mxu0 %v1792
        %1833 = vmatpush1.bf16.msra.mxu0 %v1791
        %1834 = vmatprep.subr.bf16.mxu0 0
        %1835 = vmatpush1.bf16.msra.mxu0 0
        %1836 = vmatprep.subr.bf16.mxu0 0
        %1837 = vmatpush1.bf16.msra.mxu0 0
        %1838 = vmatprep.subr.bf16.mxu0 0
        %1839 = vmatpush1.bf16.msra.mxu0 0
        %1840 = vmatprep.subr.bf16.mxu0 0
        %1841 = vmatpush1.bf16.msra.mxu0 0
        %1842 = vmatprep.subr.bf16.mxu0 0
        %1843 = vmatpush1.bf16.msra.mxu0 0
        %1844 = vmatprep.subr.bf16.mxu0 0
        %1845 = vmatpush1.bf16.msra.mxu0 0
        %1846 = vmatprep.subr.bf16.mxu0 0
        %1847 = vmatpush1.bf16.msra.mxu0 0
        %1848 = vmatprep.subr.bf16.mxu0 0
        %1849 = vmatpush1.bf16.msra.mxu0 0
        %1850 = vmatprep.mubr.bf16.mxu0 0
        %1851 = vmatmul.mubr.bf16.gmra.mrb[0].mxu0 %v886
        %v1852 = vpop.f32.mrb[0].mxu0
        %v1853 = vadd.f32 0.0, %v1852
        %v1854 = vpop.f32.mrb[0].mxu0
        %v1855 = vadd.f32 0.0, %v1854
        %v1856 = vpop.f32.mrb[0].mxu0
        %v1857 = vadd.f32 0.0, %v1856
        %v1858 = vpop.f32.mrb[0].mxu0
        %v1859 = vadd.f32 0.0, %v1858
        %1860 = vmatprep.mubr.bf16.mxu0 0
        %1861 = vmatmul.mubr.bf16.gmra.mrb[0].mxu0 %v887
        %v1862 = vpop.f32.mrb[0].mxu0
        %v1863 = vadd.f32 0.0, %v1862
        %v1864 = vpop.f32.mrb[0].mxu0
        %v1865 = vadd.f32 0.0, %v1864
        %v1866 = vpop.f32.mrb[0].mxu0
        %v1867 = vadd.f32 0.0, %v1866
        %v1868 = vpop.f32.mrb[0].mxu0
        %v1869 = vadd.f32 0.0, %v1868
        %1870 = vmatprep.mubr.bf16.mxu0 0
        %1871 = vmatmul.mubr.bf16.gmra.mrb[0].mxu0 %v888
        %v1872 = vpop.f32.mrb[0].mxu0
        %v1873 = vadd.f32 0.0, %v1872
        %v1874 = vpop.f32.mrb[0].mxu0
        %v1875 = vadd.f32 0.0, %v1874
        %v1876 = vpop.f32.mrb[0].mxu0
        %v1877 = vadd.f32 0.0, %v1876
        %v1878 = vpop.f32.mrb[0].mxu0
        %v1879 = vadd.f32 0.0, %v1878
        %1880 = vmatprep.mubr.bf16.mxu0 0
        %1881 = vmatmul.mubr.bf16.gmra.mrb[0].mxu0 %v889
        %v1882 = vpop.f32.mrb[0].mxu0
        %v1883 = vadd.f32 0.0, %v1882
        %v1884 = vpop.f32.mrb[0].mxu0
        %v1885 = vadd.f32 0.0, %v1884
        %v1886 = vpop.f32.mrb[0].mxu0
        %v1887 = vadd.f32 0.0, %v1886
        %v1888 = vpop.f32.mrb[0].mxu0
        %v1889 = vadd.f32 0.0, %v1888
        %1890 = vdwg.mxu0
        %1891 = vmatprep.subr.bf16.mxu0 0
        %1892 = vmatpush1.bf16.msra.mxu0 %v1772
        %1893 = vmatprep.subr.bf16.mxu0 0
        %1894 = vmatpush1.bf16.msra.mxu0 %v1775
        %1895 = vmatprep.subr.bf16.mxu0 0
        %1896 = vmatpush1.bf16.msra.mxu0 %v1778
        %1897 = vmatprep.subr.bf16.mxu0 0
        %1898 = vmatpush1.bf16.msra.mxu0 %v1781
        %1899 = vmatprep.subr.bf16.mxu0 0
        %1900 = vmatpush1.bf16.msra.mxu0 %v1784
        %1901 = vmatprep.subr.bf16.mxu0 0
        %1902 = vmatpush1.bf16.msra.mxu0 %v1787
        %1903 = vmatprep.subr.bf16.mxu0 0
        %1904 = vmatpush1.bf16.msra.mxu0 %v1790
        %1905 = vmatprep.subr.bf16.mxu0 0
        %1906 = vmatpush1.bf16.msra.mxu0 %v1793
        %1907 = vmatprep.subr.bf16.mxu0 0
        %1908 = vmatpush1.bf16.msra.mxu0 0
        %1909 = vmatprep.subr.bf16.mxu0 0
        %1910 = vmatpush1.bf16.msra.mxu0 0
        %1911 = vmatprep.subr.bf16.mxu0 0
        %1912 = vmatpush1.bf16.msra.mxu0 0
        %1913 = vmatprep.subr.bf16.mxu0 0
        %1914 = vmatpush1.bf16.msra.mxu0 0
        %1915 = vmatprep.subr.bf16.mxu0 0
        %1916 = vmatpush1.bf16.msra.mxu0 0
        %1917 = vmatprep.subr.bf16.mxu0 0
        %1918 = vmatpush1.bf16.msra.mxu0 0
        %1919 = vmatprep.subr.bf16.mxu0 0
        %1920 = vmatpush1.bf16.msra.mxu0 0
        %1921 = vmatprep.subr.bf16.mxu0 0
        %1922 = vmatpush1.bf16.msra.mxu0 0
        %1923 = vmatprep.mubr.bf16.mxu0 0
        %1924 = vmatmul.mubr.bf16.gmra.mrb[0].mxu0 %v886
        %v1925 = vpop.f32.mrb[0].mxu0
        %v1926 = vadd.f32 0.0, %v1925
        %v1927 = vpop.f32.mrb[0].mxu0
        %v1928 = vpop.f32.mrb[0].mxu0
        %v1929 = vadd.f32 0.0, %v1928
        %v1930 = vpop.f32.mrb[0].mxu0
        %1931 = vmatprep.mubr.bf16.mxu0 0
        %1932 = vmatmul.mubr.bf16.gmra.mrb[0].mxu0 %v887
        %v1933 = vpop.f32.mrb[0].mxu0
        %v1934 = vadd.f32 0.0, %v1933
        %v1935 = vpop.f32.mrb[0].mxu0
        %v1936 = vpop.f32.mrb[0].mxu0
        %v1937 = vadd.f32 0.0, %v1936
        %v1938 = vpop.f32.mrb[0].mxu0
        %1939 = vmatprep.mubr.bf16.mxu0 0
        %1940 = vmatmul.mubr.bf16.gmra.mrb[0].mxu0 %v888
        %v1941 = vpop.f32.mrb[0].mxu0
        %v1942 = vadd.f32 0.0, %v1941
        %v1943 = vpop.f32.mrb[0].mxu0
        %v1944 = vpop.f32.mrb[0].mxu0
        %v1945 = vadd.f32 0.0, %v1944
        %v1946 = vpop.f32.mrb[0].mxu0
        %1947 = vmatprep.mubr.bf16.mxu0 0
        %1948 = vmatmul.mubr.bf16.gmra.mrb[0].mxu0 %v889
        %v1949 = vpop.f32.mrb[0].mxu0
        %v1950 = vadd.f32 0.0, %v1949
        %v1951 = vpop.f32.mrb[0].mxu0
        %v1952 = vpop.f32.mrb[0].mxu0
        %v1953 = vadd.f32 0.0, %v1952
        %v1954 = vpop.f32.mrb[0].mxu0
        %1955 = vdwg.mxu0
        %v1956 = vld [vmem:[%s12] sm:$0x1]
        %v1958 = vlaneseq
        %v1959 = vshrl.u32 %v1958, 7
        %v1960 = vsub.s32 0, %v1959
        %v1961 = vrot.slane %v1956, %v1960
        %v1963 = vadd.f32 %v1926, %v1961
        %v1964 = vadd.f32 %v1929, %v1961
        %v1965 = vadd.f32 %v1934, %v1961
        %v1966 = vadd.f32 %v1937, %v1961
        %v1967 = vadd.f32 %v1942, %v1961
        %v1968 = vadd.f32 %v1945, %v1961
        %v1969 = vadd.f32 %v1950, %v1961
        %v1970 = vadd.f32 %v1953, %v1961
        %v1971 = vxor.u32 %v1963, 2147483648
        %v1972 = vxor.u32 %v1964, 2147483648
        %v1973 = vxor.u32 %v1965, 2147483648
        %v1974 = vxor.u32 %v1966, 2147483648
        %v1975 = vxor.u32 %v1967, 2147483648
        %v1976 = vxor.u32 %v1968, 2147483648
        %v1977 = vxor.u32 %v1969, 2147483648
        %v1978 = vxor.u32 %v1970, 2147483648
        %v1979 = vmul.f32 %v1971, 1.442695
        %v1980 = vpow.pop %v1979
        %v1981 = vmul.f32 %v1972, 1.442695
        %v1982 = vpow.pop %v1981
        %v1983 = vmul.f32 %v1973, 1.442695
        %v1984 = vpow.pop %v1983
        %v1985 = vmul.f32 %v1974, 1.442695
        %v1986 = vpow.pop %v1985
        %v1987 = vmul.f32 %v1975, 1.442695
        %v1988 = vpow.pop %v1987
        %v1989 = vmul.f32 %v1976, 1.442695
        %v1990 = vpow.pop %v1989
        %v1991 = vmul.f32 %v1977, 1.442695
        %v1992 = vpow.pop %v1991
        %v1993 = vmul.f32 %v1978, 1.442695
        %v1994 = vpow.pop %v1993
        %v1995 = vadd.f32 %v1980, 1.0
        %v1996 = vadd.f32 %v1982, 1.0
        %v1997 = vadd.f32 %v1984, 1.0
        %v1998 = vadd.f32 %v1986, 1.0
        %v1999 = vadd.f32 %v1988, 1.0
        %v2000 = vadd.f32 %v1990, 1.0
        %v2001 = vadd.f32 %v1992, 1.0
        %v2002 = vadd.f32 %v1994, 1.0
        %v2003 = vrcp.pop %v1995
        %v2004 = vmul.f32 1.0, %v2003
        %v2005 = vrcp.pop %v1996
        %v2006 = vmul.f32 1.0, %v2005
        %v2007 = vrcp.pop %v1997
        %v2008 = vmul.f32 1.0, %v2007
        %v2009 = vrcp.pop %v1998
        %v2010 = vmul.f32 1.0, %v2009
        %v2011 = vrcp.pop %v1999
        %v2012 = vmul.f32 1.0, %v2011
        %v2013 = vrcp.pop %v2000
        %v2014 = vmul.f32 1.0, %v2013
        %v2015 = vrcp.pop %v2001
        %v2016 = vmul.f32 1.0, %v2015
        %v2017 = vrcp.pop %v2002
        %v2018 = vmul.f32 1.0, %v2017
        %2020 = vset.pattern.permute.xlu0 0
        %2021 = vperm.xlu0 %2020, %v1519
        %v2022 = vpop.permute.xlu0 %2021
        %2025 = vset.pattern.permute.xlu0 0
        %2026 = vperm.xlu0 %2025, %v1520
        %v2027 = vpop.permute.xlu0 %2026
        %2030 = vset.pattern.permute.xlu0 0
        %2031 = vperm.xlu0 %2030, %v1521
        %v2032 = vpop.permute.xlu0 %2031
        %2035 = vset.pattern.permute.xlu0 0
        %2036 = vperm.xlu0 %2035, %v1522
        %v2037 = vpop.permute.xlu0 %2036
        %2040 = vset.pattern.permute.xlu0 0
        %2041 = vperm.xlu0 %2040, %v1523
        %v2042 = vpop.permute.xlu0 %2041
        %2045 = vset.pattern.permute.xlu0 0
        %2046 = vperm.xlu0 %2045, %v1524
        %v2047 = vpop.permute.xlu0 %2046
        %2050 = vset.pattern.permute.xlu0 0
        %2051 = vperm.xlu0 %2050, %v1525
        %v2052 = vpop.permute.xlu0 %2051
        %2055 = vset.pattern.permute.xlu0 0
        %2056 = vperm.xlu0 %2055, %v1526
        %v2057 = vpop.permute.xlu0 %2056
        %v2059 = vmul.f32 %v2022, %v1853
        %v2060 = vmul.f32 %v2027, %v1857
        %v2061 = vmul.f32 %v2032, %v1863
        %v2062 = vmul.f32 %v2037, %v1867
        %v2063 = vmul.f32 %v2042, %v1873
        %v2064 = vmul.f32 %v2047, %v1877
        %v2065 = vmul.f32 %v2052, %v1883
        %v2066 = vmul.f32 %v2057, %v1887
        %v2067 = vsub.f32 1.0, %v1519
        %v2068 = vsub.f32 1.0, %v1520
        %v2069 = vsub.f32 1.0, %v1521
        %v2070 = vsub.f32 1.0, %v1522
        %v2071 = vsub.f32 1.0, %v1523
        %v2072 = vsub.f32 1.0, %v1524
        %v2073 = vsub.f32 1.0, %v1525
        %v2074 = vsub.f32 1.0, %v1526
        %2076 = vset.pattern.permute.xlu0 0
        %2077 = vperm.xlu0 %2076, %v2067
        %v2078 = vpop.permute.xlu0 %2077
        %2081 = vset.pattern.permute.xlu0 0
        %2082 = vperm.xlu0 %2081, %v2068
        %v2083 = vpop.permute.xlu0 %2082
        %2086 = vset.pattern.permute.xlu0 0
        %2087 = vperm.xlu0 %2086, %v2069
        %v2088 = vpop.permute.xlu0 %2087
        %2091 = vset.pattern.permute.xlu0 0
        %2092 = vperm.xlu0 %2091, %v2070
        %v2093 = vpop.permute.xlu0 %2092
        %2096 = vset.pattern.permute.xlu0 0
        %2097 = vperm.xlu0 %2096, %v2071
        %v2098 = vpop.permute.xlu0 %2097
        %2101 = vset.pattern.permute.xlu0 0
        %2102 = vperm.xlu0 %2101, %v2072
        %v2103 = vpop.permute.xlu0 %2102
        %2106 = vset.pattern.permute.xlu0 0
        %2107 = vperm.xlu0 %2106, %v2073
        %v2108 = vpop.permute.xlu0 %2107
        %2111 = vset.pattern.permute.xlu0 0
        %2112 = vperm.xlu0 %2111, %v2074
        %v2113 = vpop.permute.xlu0 %2112
        %v2115 = vmul.f32 %v2078, %v1855
        %v2116 = vmul.f32 %v2083, %v1859
        %v2117 = vmul.f32 %v2088, %v1865
        %v2118 = vmul.f32 %v2093, %v1869
        %v2119 = vmul.f32 %v2098, %v1875
        %v2120 = vmul.f32 %v2103, %v1879
        %v2121 = vmul.f32 %v2108, %v1885
        %v2122 = vmul.f32 %v2113, %v1889
        %v2123 = vadd.f32 %v2059, %v2115
        %v2124 = vadd.f32 %v2060, %v2116
        %v2125 = vadd.f32 %v2061, %v2117
        %v2126 = vadd.f32 %v2062, %v2118
        %v2127 = vadd.f32 %v2063, %v2119
        %v2128 = vadd.f32 %v2064, %v2120
        %v2129 = vadd.f32 %v2065, %v2121
        %v2130 = vadd.f32 %v2066, %v2122
        %v2147 = vunpack.c.l.b16 %v1642
        %v2148 = vunpack.c.l.b16 %v1643
        %v2149 = vunpack.c.l.b16 %v1644
        %v2150 = vunpack.c.l.b16 %v1645
        %v2151 = vunpack.c.l.b16 %v1646
        %v2152 = vunpack.c.l.b16 %v1647
        %v2153 = vunpack.c.l.b16 %v1648
        %v2154 = vunpack.c.l.b16 %v1649
        %v2155 = vunpack.c.l.b16 %v1650
        %v2156 = vunpack.c.l.b16 %v1651
        %v2157 = vunpack.c.l.b16 %v1652
        %v2158 = vunpack.c.l.b16 %v1653
        %v2159 = vunpack.c.l.b16 %v1654
        %v2160 = vunpack.c.l.b16 %v1655
        %v2161 = vunpack.c.l.b16 %v1656
        %v2162 = vunpack.c.l.b16 %v1657
        %v2163 = vpack.c.b16 %v2148, %v2147
        %v2164 = vpack.c.b16 %v2150, %v2149
        %v2165 = vpack.c.b16 %v2152, %v2151
        %v2166 = vpack.c.b16 %v2154, %v2153
        %v2167 = vpack.c.b16 %v2156, %v2155
        %v2168 = vpack.c.b16 %v2158, %v2157
        %v2169 = vpack.c.b16 %v2160, %v2159
        %v2170 = vpack.c.b16 %v2162, %v2161
        %2179 = vmatprep.subr.bf16.mxu0 0
        %2180 = vmatpush1.bf16.msra.mxu0 %v2163
        %2181 = vmatprep.subr.bf16.mxu0 0
        %2182 = vmatpush1.bf16.msra.mxu0 %v2164
        %2183 = vmatprep.subr.bf16.mxu0 0
        %2184 = vmatpush1.bf16.msra.mxu0 %v2165
        %2185 = vmatprep.subr.bf16.mxu0 0
        %2186 = vmatpush1.bf16.msra.mxu0 %v2166
        %2187 = vmatprep.subr.bf16.mxu0 0
        %2188 = vmatpush1.bf16.msra.mxu0 %v2167
        %2189 = vmatprep.subr.bf16.mxu0 0
        %2190 = vmatpush1.bf16.msra.mxu0 %v2168
        %2191 = vmatprep.subr.bf16.mxu0 0
        %2192 = vmatpush1.bf16.msra.mxu0 %v2169
        %2193 = vmatprep.subr.bf16.mxu0 0
        %2194 = vmatpush1.bf16.msra.mxu0 %v2170
        %2195 = vmatprep.subr.bf16.mxu0 0
        %2196 = vmatpush1.bf16.msra.mxu0 0
        %2197 = vmatprep.subr.bf16.mxu0 0
        %2198 = vmatpush1.bf16.msra.mxu0 0
        %2199 = vmatprep.subr.bf16.mxu0 0
        %2200 = vmatpush1.bf16.msra.mxu0 0
        %2201 = vmatprep.subr.bf16.mxu0 0
        %2202 = vmatpush1.bf16.msra.mxu0 0
        %2203 = vmatprep.subr.bf16.mxu0 0
        %2204 = vmatpush1.bf16.msra.mxu0 0
        %2205 = vmatprep.subr.bf16.mxu0 0
        %2206 = vmatpush1.bf16.msra.mxu0 0
        %2207 = vmatprep.subr.bf16.mxu0 0
        %2208 = vmatpush1.bf16.msra.mxu0 0
        %2209 = vmatprep.subr.bf16.mxu0 0
        %2210 = vmatpush1.bf16.msra.mxu0 0
        %2211 = vmatprep.mubr.bf16.mxu0 0
        %2212 = vmatmul.mubr.bf16.gmra.mrb[0].mxu0 %v1638
        %v2213 = vpop.f32.mrb[0].mxu0
        %v2214 = vadd.f32 %v2123, %v2213
        %v2215 = vpop.f32.mrb[0].mxu0
        %v2216 = vpop.f32.mrb[0].mxu0
        %v2217 = vadd.f32 %v2124, %v2216
        %v2218 = vpop.f32.mrb[0].mxu0
        %2219 = vmatprep.mubr.bf16.mxu0 0
        %2220 = vmatmul.mubr.bf16.gmra.mrb[0].mxu0 %v1639
        %v2221 = vpop.f32.mrb[0].mxu0
        %v2222 = vadd.f32 %v2125, %v2221
        %v2223 = vpop.f32.mrb[0].mxu0
        %v2224 = vpop.f32.mrb[0].mxu0
        %v2225 = vadd.f32 %v2126, %v2224
        %v2226 = vpop.f32.mrb[0].mxu0
        %2227 = vmatprep.mubr.bf16.mxu0 0
        %2228 = vmatmul.mubr.bf16.gmra.mrb[0].mxu0 %v1640
        %v2229 = vpop.f32.mrb[0].mxu0
        %v2230 = vadd.f32 %v2127, %v2229
        %v2231 = vpop.f32.mrb[0].mxu0
        %v2232 = vpop.f32.mrb[0].mxu0
        %v2233 = vadd.f32 %v2128, %v2232
        %v2234 = vpop.f32.mrb[0].mxu0
        %2235 = vmatprep.mubr.bf16.mxu0 0
        %2236 = vmatmul.mubr.bf16.gmra.mrb[0].mxu0 %v1641
        %v2237 = vpop.f32.mrb[0].mxu0
        %v2238 = vadd.f32 %v2129, %v2237
        %v2239 = vpop.f32.mrb[0].mxu0
        %v2240 = vpop.f32.mrb[0].mxu0
        %v2241 = vadd.f32 %v2130, %v2240
        %v2242 = vpop.f32.mrb[0].mxu0
        %2243 = vdwg.mxu0
        %vm2244 = vcmp.ge.f32.partialorder %v2214, 0.0
        %vm2245 = vcmp.ge.f32.partialorder %v2217, 0.0
        %vm2246 = vcmp.ge.f32.partialorder %v2222, 0.0
        %vm2247 = vcmp.ge.f32.partialorder %v2225, 0.0
        %vm2248 = vcmp.ge.f32.partialorder %v2230, 0.0
        %vm2249 = vcmp.ge.f32.partialorder %v2233, 0.0
        %vm2250 = vcmp.ge.f32.partialorder %v2238, 0.0
        %vm2251 = vcmp.ge.f32.partialorder %v2241, 0.0
        %v2252 = vmul.f32 %v2214, 0.22916667
        %v2253 = vmul.f32 %v2217, 0.22916667
        %v2254 = vmul.f32 %v2222, 0.22916667
        %v2255 = vmul.f32 %v2225, 0.22916667
        %v2256 = vmul.f32 %v2230, 0.22916667
        %v2257 = vmul.f32 %v2233, 0.22916667
        %v2258 = vmul.f32 %v2238, 0.22916667
        %v2259 = vmul.f32 %v2241, 0.22916667
        %v2260 = vsel %vm2244, %v2214, %v2252
        %v2261 = vsel %vm2245, %v2217, %v2253
        %v2262 = vsel %vm2246, %v2222, %v2254
        %v2263 = vsel %vm2247, %v2225, %v2255
        %v2264 = vsel %vm2248, %v2230, %v2256
        %v2265 = vsel %vm2249, %v2233, %v2257
        %v2266 = vsel %vm2250, %v2238, %v2258
        %v2267 = vsel %vm2251, %v2241, %v2259
        %v2268 = vpack.c.bf16 %v2261, %v2260
        %v2269 = vpack.c.bf16 %v2263, %v2262
        %v2270 = vpack.c.bf16 %v2265, %v2264
        %v2271 = vpack.c.bf16 %v2267, %v2266
        %2272 = vst [vmem:[#allocation4] sm:$0xff] %v2268
        %2273 = vst [vmem:[#allocation4 + $0x8] sm:$0xff] %v2269
        %2274 = vst [vmem:[#allocation4 + $0x10] sm:$0xff] %v2270
        %2275 = vst [vmem:[#allocation4 + $0x18] sm:$0xff] %v2271
        %v2276 = vld [vmem:[%s494] sm:$0xf]
        %v2277 = vld [vmem:[%s494 + $0x4] sm:$0xf]
        %v2278 = vld [vmem:[%s494 + $0x8] sm:$0xf]
        %v2279 = vld [vmem:[%s494 + $0xc] sm:$0xf]
        %v2280 = vld [vmem:[%s494 + $0x10] sm:$0xf]
        %v2281 = vld [vmem:[%s494 + $0x14] sm:$0xf]
        %v2282 = vld [vmem:[%s494 + $0x18] sm:$0xf]
        %v2283 = vld [vmem:[%s494 + $0x1c] sm:$0xf]
        %v2284 = vld [vmem:[#allocation4] sm:$0xff]
        %v2285 = vld [vmem:[#allocation4 + $0x8] sm:$0xff]
        %v2286 = vld [vmem:[#allocation4 + $0x10] sm:$0xff]
        %v2287 = vld [vmem:[#allocation4 + $0x18] sm:$0xff]
        %v2288 = vld [vmem:[#allocation4 + $0x20] sm:$0xff]
        %v2289 = vld [vmem:[#allocation4 + $0x28] sm:$0xff]
        %v2290 = vld [vmem:[#allocation4 + $0x30] sm:$0xff]
        %v2291 = vld [vmem:[#allocation4 + $0x38] sm:$0xff]
        %v2300 = vunpack.c.l.b16 %v2276
        %v2301 = vunpack.c.l.b16 %v2277
        %v2302 = vunpack.c.l.b16 %v2278
        %v2303 = vunpack.c.l.b16 %v2279
        %v2304 = vunpack.c.l.b16 %v2280
        %v2305 = vunpack.c.l.b16 %v2281
        %v2306 = vunpack.c.l.b16 %v2282
        %v2307 = vunpack.c.l.b16 %v2283
        %v2308 = vpack.c.b16 %v2301, %v2300
        %v2309 = vpack.c.b16 %v2303, %v2302
        %v2310 = vpack.c.b16 %v2305, %v2304
        %v2311 = vpack.c.b16 %v2307, %v2306
        %2316 = vmatprep.subr.bf16.mxu0 0
        %2317 = vmatpush1.bf16.msra.mxu0 %v2284
        %2318 = vmatprep.subr.bf16.mxu0 0
        %2319 = vmatpush1.bf16.msra.mxu0 %v2285
        %2320 = vmatprep.subr.bf16.mxu0 0
        %2321 = vmatpush1.bf16.msra.mxu0 %v2286
        %2322 = vmatprep.subr.bf16.mxu0 0
        %2323 = vmatpush1.bf16.msra.mxu0 %v2287
        %2324 = vmatprep.subr.bf16.mxu0 0
        %2325 = vmatpush1.bf16.msra.mxu0 %v2288
        %2326 = vmatprep.subr.bf16.mxu0 0
        %2327 = vmatpush1.bf16.msra.mxu0 %v2289
        %2328 = vmatprep.subr.bf16.mxu0 0
        %2329 = vmatpush1.bf16.msra.mxu0 %v2290
        %2330 = vmatprep.subr.bf16.mxu0 0
        %2331 = vmatpush1.bf16.msra.mxu0 %v2291
        %2332 = vmatprep.subr.bf16.mxu0 0
        %2333 = vmatpush1.bf16.msra.mxu0 0
        %2334 = vmatprep.subr.bf16.mxu0 0
        %2335 = vmatpush1.bf16.msra.mxu0 0
        %2336 = vmatprep.subr.bf16.mxu0 0
        %2337 = vmatpush1.bf16.msra.mxu0 0
        %2338 = vmatprep.subr.bf16.mxu0 0
        %2339 = vmatpush1.bf16.msra.mxu0 0
        %2340 = vmatprep.subr.bf16.mxu0 0
        %2341 = vmatpush1.bf16.msra.mxu0 0
        %2342 = vmatprep.subr.bf16.mxu0 0
        %2343 = vmatpush1.bf16.msra.mxu0 0
        %2344 = vmatprep.subr.bf16.mxu0 0
        %2345 = vmatpush1.bf16.msra.mxu0 0
        %2346 = vmatprep.subr.bf16.mxu0 0
        %2347 = vmatpush1.bf16.msra.mxu0 0
        %2348 = vmatprep.mubr.bf16.mxu0 0
        %2349 = vmatmul.mubr.bf16.gmra.mrb[0].mxu0 %v2308
        %v2350 = vpop.f32.mrb[0].mxu0
        %v2351 = vadd.f32 0.0, %v2350
        %v2352 = vpop.f32.mrb[0].mxu0
        %v2353 = vpop.f32.mrb[0].mxu0
        %v2354 = vadd.f32 0.0, %v2353
        %v2355 = vpop.f32.mrb[0].mxu0
        %2356 = vmatprep.mubr.bf16.mxu0 0
        %2357 = vmatmul.mubr.bf16.gmra.mrb[0].mxu0 %v2309
        %v2358 = vpop.f32.mrb[0].mxu0
        %v2359 = vadd.f32 0.0, %v2358
        %v2360 = vpop.f32.mrb[0].mxu0
        %v2361 = vpop.f32.mrb[0].mxu0
        %v2362 = vadd.f32 0.0, %v2361
        %v2363 = vpop.f32.mrb[0].mxu0
        %2364 = vmatprep.mubr.bf16.mxu0 0
        %2365 = vmatmul.mubr.bf16.gmra.mrb[0].mxu0 %v2310
        %v2366 = vpop.f32.mrb[0].mxu0
        %v2367 = vadd.f32 0.0, %v2366
        %v2368 = vpop.f32.mrb[0].mxu0
        %v2369 = vpop.f32.mrb[0].mxu0
        %v2370 = vadd.f32 0.0, %v2369
        %v2371 = vpop.f32.mrb[0].mxu0
        %2372 = vmatprep.mubr.bf16.mxu0 0
        %2373 = vmatmul.mubr.bf16.gmra.mrb[0].mxu0 %v2311
        %v2374 = vpop.f32.mrb[0].mxu0
        %v2375 = vadd.f32 0.0, %v2374
        %v2376 = vpop.f32.mrb[0].mxu0
        %v2377 = vpop.f32.mrb[0].mxu0
        %v2378 = vadd.f32 0.0, %v2377
        %v2379 = vpop.f32.mrb[0].mxu0
        %2380 = vdwg.mxu0
        %v2381 = vpack.c.bf16 %v2354, %v2351
        %v2382 = vpack.c.bf16 %v2362, %v2359
        %v2383 = vpack.c.bf16 %v2370, %v2367
        %v2384 = vpack.c.bf16 %v2378, %v2375
        %s2385 = scalar_lea.vmem [#allocation14], 64
        %v2386 = vld [vmem:[%s2385] sm:$0xf]
        %v2387 = vld [vmem:[%s2385 + $0x4] sm:$0xf]
        %v2388 = vld [vmem:[%s2385 + $0x8] sm:$0xf]
        %v2389 = vld [vmem:[%s2385 + $0xc] sm:$0xf]
        %v2390 = vld [vmem:[%s2385 + $0x10] sm:$0xf]
        %v2391 = vld [vmem:[%s2385 + $0x14] sm:$0xf]
        %v2392 = vld [vmem:[%s2385 + $0x18] sm:$0xf]
        %v2393 = vld [vmem:[%s2385 + $0x1c] sm:$0xf]
        %v2394 = vld [vmem:[%s2385 + $0x20] sm:$0xf]
        %v2395 = vld [vmem:[%s2385 + $0x24] sm:$0xf]
        %v2396 = vld [vmem:[%s2385 + $0x28] sm:$0xf]
        %v2397 = vld [vmem:[%s2385 + $0x2c] sm:$0xf]
        %v2398 = vld [vmem:[%s2385 + $0x30] sm:$0xf]
        %v2399 = vld [vmem:[%s2385 + $0x34] sm:$0xf]
        %v2400 = vld [vmem:[%s2385 + $0x38] sm:$0xf]
        %v2401 = vld [vmem:[%s2385 + $0x3c] sm:$0xf]
        %s2402 = scalar_lea.vmem [#allocation15], 192
        %v2403 = vld [vmem:[%s2402] sm:$0xff]
        %v2404 = vld [vmem:[%s2402 + $0xc] sm:$0xff]
        %v2405 = vld [vmem:[%s2402 + $0x18] sm:$0xff]
        %v2406 = vld [vmem:[%s2402 + $0x24] sm:$0xff]
        %v2407 = vld [vmem:[%s2402 + $0x30] sm:$0xff]
        %v2408 = vld [vmem:[%s2402 + $0x3c] sm:$0xff]
        %v2409 = vld [vmem:[%s2402 + $0x48] sm:$0xff]
        %v2410 = vld [vmem:[%s2402 + $0x54] sm:$0xff]
        %v2411 = vld [vmem:[%s2402 + $0x60] sm:$0xff]
        %v2412 = vld [vmem:[%s2402 + $0x6c] sm:$0xff]
        %v2413 = vld [vmem:[%s2402 + $0x78] sm:$0xff]
        %v2414 = vld [vmem:[%s2402 + $0x84] sm:$0xff]
        %v2415 = vld [vmem:[%s2402 + $0x90] sm:$0xff]
        %v2416 = vld [vmem:[%s2402 + $0x9c] sm:$0xff]
        %v2417 = vld [vmem:[%s2402 + $0xa8] sm:$0xff]
        %v2418 = vld [vmem:[%s2402 + $0xb4] sm:$0xff]
        %v2435 = vunpack.c.l.b16 %v2403
        %v2436 = vunpack.c.h.b16 %v2403
        %v2437 = vunpack.c.l.b16 %v2404
        %v2438 = vunpack.c.h.b16 %v2404
        %v2439 = vunpack.c.l.b16 %v2405
        %v2440 = vunpack.c.h.b16 %v2405
        %v2441 = vunpack.c.l.b16 %v2406
        %v2442 = vunpack.c.h.b16 %v2406
        %v2443 = vunpack.c.l.b16 %v2407
        %v2444 = vunpack.c.h.b16 %v2407
        %v2445 = vunpack.c.l.b16 %v2408
        %v2446 = vunpack.c.h.b16 %v2408
        %v2447 = vunpack.c.l.b16 %v2409
        %v2448 = vunpack.c.h.b16 %v2409
        %v2449 = vunpack.c.l.b16 %v2410
        %v2450 = vunpack.c.h.b16 %v2410
        %v2451 = vunpack.c.l.b16 %v2411
        %v2452 = vunpack.c.h.b16 %v2411
        %v2453 = vunpack.c.l.b16 %v2412
        %v2454 = vunpack.c.h.b16 %v2412
        %v2455 = vunpack.c.l.b16 %v2413
        %v2456 = vunpack.c.h.b16 %v2413
        %v2457 = vunpack.c.l.b16 %v2414
        %v2458 = vunpack.c.h.b16 %v2414
        %v2459 = vunpack.c.l.b16 %v2415
        %v2460 = vunpack.c.h.b16 %v2415
        %v2461 = vunpack.c.l.b16 %v2416
        %v2462 = vunpack.c.h.b16 %v2416
        %v2463 = vunpack.c.l.b16 %v2417
        %v2464 = vunpack.c.h.b16 %v2417
        %v2465 = vunpack.c.l.b16 %v2418
        %v2466 = vunpack.c.h.b16 %v2418
        %v2467 = vpack.c.b16 %v2437, %v2435
        %v2468 = vpack.c.b16 %v2438, %v2436
        %v2469 = vpack.c.b16 %v2441, %v2439
        %v2470 = vpack.c.b16 %v2442, %v2440
        %v2471 = vpack.c.b16 %v2445, %v2443
        %v2472 = vpack.c.b16 %v2446, %v2444
        %v2473 = vpack.c.b16 %v2449, %v2447
        %v2474 = vpack.c.b16 %v2450, %v2448
        %v2475 = vpack.c.b16 %v2453, %v2451
        %v2476 = vpack.c.b16 %v2454, %v2452
        %v2477 = vpack.c.b16 %v2457, %v2455
        %v2478 = vpack.c.b16 %v2458, %v2456
        %v2479 = vpack.c.b16 %v2461, %v2459
        %v2480 = vpack.c.b16 %v2462, %v2460
        %v2481 = vpack.c.b16 %v2465, %v2463
        %v2482 = vpack.c.b16 %v2466, %v2464
        %2499 = vmatprep.subr.bf16.mxu0 %v2468
        %2500 = vmatpush1.bf16.msra.mxu0 %v2467
        %2501 = vmatprep.subr.bf16.mxu0 %v2470
        %2502 = vmatpush1.bf16.msra.mxu0 %v2469
        %2503 = vmatprep.subr.bf16.mxu0 %v2472
        %2504 = vmatpush1.bf16.msra.mxu0 %v2471
        %2505 = vmatprep.subr.bf16.mxu0 %v2474
        %2506 = vmatpush1.bf16.msra.mxu0 %v2473
        %2507 = vmatprep.subr.bf16.mxu0 %v2476
        %2508 = vmatpush1.bf16.msra.mxu0 %v2475
        %2509 = vmatprep.subr.bf16.mxu0 %v2478
        %2510 = vmatpush1.bf16.msra.mxu0 %v2477
        %2511 = vmatprep.subr.bf16.mxu0 %v2480
        %2512 = vmatpush1.bf16.msra.mxu0 %v2479
        %2513 = vmatprep.subr.bf16.mxu0 %v2482
        %2514 = vmatpush1.bf16.msra.mxu0 %v2481
        %2515 = vmatprep.subr.bf16.mxu0 0
        %2516 = vmatpush1.bf16.msra.mxu0 0
        %2517 = vmatprep.subr.bf16.mxu0 0
        %2518 = vmatpush1.bf16.msra.mxu0 0
        %2519 = vmatprep.subr.bf16.mxu0 0
        %2520 = vmatpush1.bf16.msra.mxu0 0
        %2521 = vmatprep.subr.bf16.mxu0 0
        %2522 = vmatpush1.bf16.msra.mxu0 0
        %2523 = vmatprep.subr.bf16.mxu0 0
        %2524 = vmatpush1.bf16.msra.mxu0 0
        %2525 = vmatprep.subr.bf16.mxu0 0
        %2526 = vmatpush1.bf16.msra.mxu0 0
        %2527 = vmatprep.subr.bf16.mxu0 0
        %2528 = vmatpush1.bf16.msra.mxu0 0
        %2529 = vmatprep.subr.bf16.mxu0 0
        %2530 = vmatpush1.bf16.msra.mxu0 0
        %2531 = vmatprep.mubr.bf16.mxu0 0
        %2532 = vmatmul.mubr.bf16.gmra.mrb[0].mxu0 %v2268
        %v2533 = vpop.f32.mrb[0].mxu0
        %v2534 = vadd.f32 0.0, %v2533
        %v2535 = vpop.f32.mrb[0].mxu0
        %v2536 = vadd.f32 0.0, %v2535
        %v2537 = vpop.f32.mrb[0].mxu0
        %v2538 = vadd.f32 0.0, %v2537
        %v2539 = vpop.f32.mrb[0].mxu0
        %v2540 = vadd.f32 0.0, %v2539
        %2541 = vmatprep.mubr.bf16.mxu0 0
        %2542 = vmatmul.mubr.bf16.gmra.mrb[0].mxu0 %v2269
        %v2543 = vpop.f32.mrb[0].mxu0
        %v2544 = vadd.f32 0.0, %v2543
        %v2545 = vpop.f32.mrb[0].mxu0
        %v2546 = vadd.f32 0.0, %v2545
        %v2547 = vpop.f32.mrb[0].mxu0
        %v2548 = vadd.f32 0.0, %v2547
        %v2549 = vpop.f32.mrb[0].mxu0
        %v2550 = vadd.f32 0.0, %v2549
        %2551 = vmatprep.mubr.bf16.mxu0 0
        %2552 = vmatmul.mubr.bf16.gmra.mrb[0].mxu0 %v2270
        %v2553 = vpop.f32.mrb[0].mxu0
        %v2554 = vadd.f32 0.0, %v2553
        %v2555 = vpop.f32.mrb[0].mxu0
        %v2556 = vadd.f32 0.0, %v2555
        %v2557 = vpop.f32.mrb[0].mxu0
        %v2558 = vadd.f32 0.0, %v2557
        %v2559 = vpop.f32.mrb[0].mxu0
        %v2560 = vadd.f32 0.0, %v2559
        %2561 = vmatprep.mubr.bf16.mxu0 0
        %2562 = vmatmul.mubr.bf16.gmra.mrb[0].mxu0 %v2271
        %v2563 = vpop.f32.mrb[0].mxu0
        %v2564 = vadd.f32 0.0, %v2563
        %v2565 = vpop.f32.mrb[0].mxu0
        %v2566 = vadd.f32 0.0, %v2565
        %v2567 = vpop.f32.mrb[0].mxu0
        %v2568 = vadd.f32 0.0, %v2567
        %v2569 = vpop.f32.mrb[0].mxu0
        %v2570 = vadd.f32 0.0, %v2569
        %2571 = vdwg.mxu0
        %v2572 = vmul.f32 %v2022, %v2534
        %v2573 = vmul.f32 %v2027, %v2538
        %v2574 = vmul.f32 %v2032, %v2544
        %v2575 = vmul.f32 %v2037, %v2548
        %v2576 = vmul.f32 %v2042, %v2554
        %v2577 = vmul.f32 %v2047, %v2558
        %v2578 = vmul.f32 %v2052, %v2564
        %v2579 = vmul.f32 %v2057, %v2568
        %v2580 = vmul.f32 %v2078, %v2536
        %v2581 = vmul.f32 %v2083, %v2540
        %v2582 = vmul.f32 %v2088, %v2546
        %v2583 = vmul.f32 %v2093, %v2550
        %v2584 = vmul.f32 %v2098, %v2556
        %v2585 = vmul.f32 %v2103, %v2560
        %v2586 = vmul.f32 %v2108, %v2566
        %v2587 = vmul.f32 %v2113, %v2570
        %v2588 = vadd.f32 %v2572, %v2580
        %v2589 = vadd.f32 %v2573, %v2581
        %v2590 = vadd.f32 %v2574, %v2582
        %v2591 = vadd.f32 %v2575, %v2583
        %v2592 = vadd.f32 %v2576, %v2584
        %v2593 = vadd.f32 %v2577, %v2585
        %v2594 = vadd.f32 %v2578, %v2586
        %v2595 = vadd.f32 %v2579, %v2587
        %v2612 = vunpack.c.l.b16 %v2386
        %v2613 = vunpack.c.l.b16 %v2387
        %v2614 = vunpack.c.l.b16 %v2388
        %v2615 = vunpack.c.l.b16 %v2389
        %v2616 = vunpack.c.l.b16 %v2390
        %v2617 = vunpack.c.l.b16 %v2391
        %v2618 = vunpack.c.l.b16 %v2392
        %v2619 = vunpack.c.l.b16 %v2393
        %v2620 = vunpack.c.l.b16 %v2394
        %v2621 = vunpack.c.l.b16 %v2395
        %v2622 = vunpack.c.l.b16 %v2396
        %v2623 = vunpack.c.l.b16 %v2397
        %v2624 = vunpack.c.l.b16 %v2398
        %v2625 = vunpack.c.l.b16 %v2399
        %v2626 = vunpack.c.l.b16 %v2400
        %v2627 = vunpack.c.l.b16 %v2401
        %v2628 = vpack.c.b16 %v2613, %v2612
        %v2629 = vpack.c.b16 %v2615, %v2614
        %v2630 = vpack.c.b16 %v2617, %v2616
        %v2631 = vpack.c.b16 %v2619, %v2618
        %v2632 = vpack.c.b16 %v2621, %v2620
        %v2633 = vpack.c.b16 %v2623, %v2622
        %v2634 = vpack.c.b16 %v2625, %v2624
        %v2635 = vpack.c.b16 %v2627, %v2626
        %2644 = vmatprep.subr.bf16.mxu0 0
        %2645 = vmatpush1.bf16.msra.mxu0 %v2628
        %2646 = vmatprep.subr.bf16.mxu0 0
        %2647 = vmatpush1.bf16.msra.mxu0 %v2629
        %2648 = vmatprep.subr.bf16.mxu0 0
        %2649 = vmatpush1.bf16.msra.mxu0 %v2630
        %2650 = vmatprep.subr.bf16.mxu0 0
        %2651 = vmatpush1.bf16.msra.mxu0 %v2631
        %2652 = vmatprep.subr.bf16.mxu0 0
        %2653 = vmatpush1.bf16.msra.mxu0 %v2632
        %2654 = vmatprep.subr.bf16.mxu0 0
        %2655 = vmatpush1.bf16.msra.mxu0 %v2633
        %2656 = vmatprep.subr.bf16.mxu0 0
        %2657 = vmatpush1.bf16.msra.mxu0 %v2634
        %2658 = vmatprep.subr.bf16.mxu0 0
        %2659 = vmatpush1.bf16.msra.mxu0 %v2635
        %2660 = vmatprep.subr.bf16.mxu0 0
        %2661 = vmatpush1.bf16.msra.mxu0 0
        %2662 = vmatprep.subr.bf16.mxu0 0
        %2663 = vmatpush1.bf16.msra.mxu0 0
        %2664 = vmatprep.subr.bf16.mxu0 0
        %2665 = vmatpush1.bf16.msra.mxu0 0
        %2666 = vmatprep.subr.bf16.mxu0 0
        %2667 = vmatpush1.bf16.msra.mxu0 0
        %2668 = vmatprep.subr.bf16.mxu0 0
        %2669 = vmatpush1.bf16.msra.mxu0 0
        %2670 = vmatprep.subr.bf16.mxu0 0
        %2671 = vmatpush1.bf16.msra.mxu0 0
        %2672 = vmatprep.subr.bf16.mxu0 0
        %2673 = vmatpush1.bf16.msra.mxu0 0
        %2674 = vmatprep.subr.bf16.mxu0 0
        %2675 = vmatpush1.bf16.msra.mxu0 0
        %2676 = vmatprep.mubr.bf16.mxu0 0
        %2677 = vmatmul.mubr.bf16.gmra.mrb[0].mxu0 %v2381
        %v2678 = vpop.f32.mrb[0].mxu0
        %v2679 = vadd.f32 %v2588, %v2678
        %v2680 = vpop.f32.mrb[0].mxu0
        %v2681 = vpop.f32.mrb[0].mxu0
        %v2682 = vadd.f32 %v2589, %v2681
        %v2683 = vpop.f32.mrb[0].mxu0
        %2684 = vmatprep.mubr.bf16.mxu0 0
        %2685 = vmatmul.mubr.bf16.gmra.mrb[0].mxu0 %v2382
        %v2686 = vpop.f32.mrb[0].mxu0
        %v2687 = vadd.f32 %v2590, %v2686
        %v2688 = vpop.f32.mrb[0].mxu0
        %v2689 = vpop.f32.mrb[0].mxu0
        %v2690 = vadd.f32 %v2591, %v2689
        %v2691 = vpop.f32.mrb[0].mxu0
        %2692 = vmatprep.mubr.bf16.mxu0 0
        %2693 = vmatmul.mubr.bf16.gmra.mrb[0].mxu0 %v2383
        %v2694 = vpop.f32.mrb[0].mxu0
        %v2695 = vadd.f32 %v2592, %v2694
        %v2696 = vpop.f32.mrb[0].mxu0
        %v2697 = vpop.f32.mrb[0].mxu0
        %v2698 = vadd.f32 %v2593, %v2697
        %v2699 = vpop.f32.mrb[0].mxu0
        %2700 = vmatprep.mubr.bf16.mxu0 0
        %2701 = vmatmul.mubr.bf16.gmra.mrb[0].mxu0 %v2384
        %v2702 = vpop.f32.mrb[0].mxu0
        %v2703 = vadd.f32 %v2594, %v2702
        %v2704 = vpop.f32.mrb[0].mxu0
        %v2705 = vpop.f32.mrb[0].mxu0
        %v2706 = vadd.f32 %v2595, %v2705
        %v2707 = vpop.f32.mrb[0].mxu0
        %2708 = vdwg.mxu0
        %vm2709 = vcmp.ge.f32.partialorder %v2679, 0.0
        %vm2710 = vcmp.ge.f32.partialorder %v2682, 0.0
        %vm2711 = vcmp.ge.f32.partialorder %v2687, 0.0
        %vm2712 = vcmp.ge.f32.partialorder %v2690, 0.0
        %vm2713 = vcmp.ge.f32.partialorder %v2695, 0.0
        %vm2714 = vcmp.ge.f32.partialorder %v2698, 0.0
        %vm2715 = vcmp.ge.f32.partialorder %v2703, 0.0
        %vm2716 = vcmp.ge.f32.partialorder %v2706, 0.0
        %v2717 = vmul.f32 %v2679, 0.22916667
        %v2718 = vmul.f32 %v2682, 0.22916667
        %v2719 = vmul.f32 %v2687, 0.22916667
        %v2720 = vmul.f32 %v2690, 0.22916667
        %v2721 = vmul.f32 %v2695, 0.22916667
        %v2722 = vmul.f32 %v2698, 0.22916667
        %v2723 = vmul.f32 %v2703, 0.22916667
        %v2724 = vmul.f32 %v2706, 0.22916667
        %v2725 = vsel %vm2709, %v2679, %v2717
        %v2726 = vsel %vm2710, %v2682, %v2718
        %v2727 = vsel %vm2711, %v2687, %v2719
        %v2728 = vsel %vm2712, %v2690, %v2720
        %v2729 = vsel %vm2713, %v2695, %v2721
        %v2730 = vsel %vm2714, %v2698, %v2722
        %v2731 = vsel %vm2715, %v2703, %v2723
        %v2732 = vsel %vm2716, %v2706, %v2724
        %v2733 = vmul.f32 %v2725, %v2725
        %v2734 = vmul.f32 %v2726, %v2726
        %v2735 = vmul.f32 %v2727, %v2727
        %v2736 = vmul.f32 %v2728, %v2728
        %v2737 = vmul.f32 %v2729, %v2729
        %v2738 = vmul.f32 %v2730, %v2730
        %v2739 = vmul.f32 %v2731, %v2731
        %v2740 = vmul.f32 %v2732, %v2732
        %2741 = vadd.xlane.f32.xlu0 %v2733
        %v2742 = vpop.xlane.xlu0 %2741
        %2743 = vadd.xlane.f32.xlu0 %v2734
        %v2744 = vpop.xlane.xlu0 %2743
        %2745 = vadd.xlane.f32.xlu0 %v2735
        %v2746 = vpop.xlane.xlu0 %2745
        %2747 = vadd.xlane.f32.xlu0 %v2736
        %v2748 = vpop.xlane.xlu0 %2747
        %2749 = vadd.xlane.f32.xlu0 %v2737
        %v2750 = vpop.xlane.xlu0 %2749
        %2751 = vadd.xlane.f32.xlu0 %v2738
        %v2752 = vpop.xlane.xlu0 %2751
        %2753 = vadd.xlane.f32.xlu0 %v2739
        %v2754 = vpop.xlane.xlu0 %2753
        %2755 = vadd.xlane.f32.xlu0 %v2740
        %v2756 = vpop.xlane.xlu0 %2755
        %v2757 = vadd.f32 %v2742, 1e-24
        %v2758 = vadd.f32 %v2744, 1e-24
        %v2759 = vadd.f32 %v2746, 1e-24
        %v2760 = vadd.f32 %v2748, 1e-24
        %v2761 = vadd.f32 %v2750, 1e-24
        %v2762 = vadd.f32 %v2752, 1e-24
        %v2763 = vadd.f32 %v2754, 1e-24
        %v2764 = vadd.f32 %v2756, 1e-24
        %v2765 = vrsqrt.pop %v2757
        %v2766 = vrsqrt.pop %v2758
        %v2767 = vrsqrt.pop %v2759
        %v2768 = vrsqrt.pop %v2760
        %v2769 = vrsqrt.pop %v2761
        %v2770 = vrsqrt.pop %v2762
        %v2771 = vrsqrt.pop %v2763
        %v2772 = vrsqrt.pop %v2764
        %v2773 = vmul.f32 %v2725, %v2765
        %v2774 = vmul.f32 %v2726, %v2766
        %v2775 = vmul.f32 %v2727, %v2767
        %v2776 = vmul.f32 %v2728, %v2768
        %v2777 = vmul.f32 %v2729, %v2769
        %v2778 = vmul.f32 %v2730, %v2770
        %v2779 = vmul.f32 %v2731, %v2771
        %v2780 = vmul.f32 %v2732, %v2772
        %v2781 = vmul.f32 %v2004, %v2773
        %v2782 = vmul.f32 %v2006, %v2774
        %v2783 = vmul.f32 %v2008, %v2775
        %v2784 = vmul.f32 %v2010, %v2776
        %v2785 = vmul.f32 %v2012, %v2777
        %v2786 = vmul.f32 %v2014, %v2778
        %v2787 = vmul.f32 %v2016, %v2779
        %v2788 = vmul.f32 %v2018, %v2780
        %v2789 = vsub.f32 1.0, %v2004
        %v2790 = vsub.f32 1.0, %v2006
        %v2791 = vsub.f32 1.0, %v2008
        %v2792 = vsub.f32 1.0, %v2010
        %v2793 = vsub.f32 1.0, %v2012
        %v2794 = vsub.f32 1.0, %v2014
        %v2795 = vsub.f32 1.0, %v2016
        %v2796 = vsub.f32 1.0, %v2018
        %v2797 = vmul.f32 %v2789, %v878
        %v2798 = vmul.f32 %v2790, %v879
        %v2799 = vmul.f32 %v2791, %v880
        %v2800 = vmul.f32 %v2792, %v881
        %v2801 = vmul.f32 %v2793, %v882
        %v2802 = vmul.f32 %v2794, %v883
        %v2803 = vmul.f32 %v2795, %v884
        %v2804 = vmul.f32 %v2796, %v885
        %v2805 = vadd.f32 %v2781, %v2797
        %v2806 = vadd.f32 %v2782, %v2798
        %v2807 = vadd.f32 %v2783, %v2799
        %v2808 = vadd.f32 %v2784, %v2800
        %v2809 = vadd.f32 %v2785, %v2801
        %v2810 = vadd.f32 %v2786, %v2802
        %v2811 = vadd.f32 %v2787, %v2803
        %v2812 = vadd.f32 %v2788, %v2804
        %2813 = vst [vmem:[#allocation2] sm:$0xff] %v2805
        %2814 = vst [vmem:[#allocation2 + $0x8] sm:$0xff] %v2806
        %2815 = vst [vmem:[#allocation2 + $0x10] sm:$0xff] %v2807
        %2816 = vst [vmem:[#allocation2 + $0x18] sm:$0xff] %v2808
        %2817 = vst [vmem:[#allocation2 + $0x20] sm:$0xff] %v2809
        %2818 = vst [vmem:[#allocation2 + $0x28] sm:$0xff] %v2810
        %2819 = vst [vmem:[#allocation2 + $0x30] sm:$0xff] %v2811
        %2820 = vst [vmem:[#allocation2 + $0x38] sm:$0xff] %v2812
        %v2821 = vpack.c.bf16 %v2806, %v2805
        %v2822 = vpack.c.bf16 %v2808, %v2807
        %v2823 = vpack.c.bf16 %v2810, %v2809
        %v2824 = vpack.c.bf16 %v2812, %v2811
        %v2829 = vunpack.c.l.b16 %v2821
        %v2830 = vunpack.c.h.b16 %v2821
        %v2831 = vunpack.c.l.b16 %v2822
        %v2832 = vunpack.c.h.b16 %v2822
        %v2833 = vunpack.c.l.b16 %v2823
        %v2834 = vunpack.c.h.b16 %v2823
        %v2835 = vunpack.c.l.b16 %v2824
        %v2836 = vunpack.c.h.b16 %v2824
        %v2837 = vpack.c.b16 %v2829, %v2829
        %v2838 = vpack.c.b16 %v2830, %v2830
        %v2839 = vpack.c.b16 %v2831, %v2831
        %v2840 = vpack.c.b16 %v2832, %v2832
        %v2841 = vpack.c.b16 %v2833, %v2833
        %v2842 = vpack.c.b16 %v2834, %v2834
        %v2843 = vpack.c.b16 %v2835, %v2835
        %v2844 = vpack.c.b16 %v2836, %v2836
        %2853 = vst [vmem:[%s569] sm:$0xf] %v2837
        %2854 = vst [vmem:[%s569 + $0x4] sm:$0xf] %v2838
        %2855 = vst [vmem:[%s569 + $0x8] sm:$0xf] %v2839
        %2856 = vst [vmem:[%s569 + $0xc] sm:$0xf] %v2840
        %2857 = vst [vmem:[%s569 + $0x10] sm:$0xf] %v2841
        %2858 = vst [vmem:[%s569 + $0x14] sm:$0xf] %v2842
        %2859 = vst [vmem:[%s569 + $0x18] sm:$0xf] %v2843
        %2860 = vst [vmem:[%s569 + $0x1c] sm:$0xf] %v2844
        %s2861 = sand.u32 %s313, 1
        %s2862 = scalar_lea.sflag [#allocation8], %s2861
        %s2863 = sand.u32 %s313, 1
        %s2864 = smul.addr %s2863, 32
        %s2865 = scalar_lea.vmem [#allocation17], %s2864
        // Predicated region
        $region106: #{tpu_custom_call.1} parent=67 // pred_check
          %p2866 = pneg %p323
        $region107: #{tpu_custom_call.1} parent=67 // pred_check_branch
          %2868 = sbr.rel (%p2866) target = $region109
        $region108: #{tpu_custom_call.1} parent=67 // pred_region
          %s2870 = ssub.s32 512, 512
          %2871 = vsyncadd %s2862, %s2870
          %s2872 = smul.addr %s38, 8
          %s2873 = smul.addr %s2872, 64
          %s2874 = scalar_lea.hbm %s13, %s2873
          %s2875 = sshll.u32 %s2865, 4
          %s2876 = int_to_ptr.vmem [resolvable:$true] %s2875
          %2881 = dma.vmem_to_hbm [thread:$0]  %s2876, 512, %s2874, %s2862, 64, 64, 4
        $region109: #{tpu_custom_call.1} parent=67 // pred_fallthru
          _
        // Predicated region
        $region110: #{tpu_custom_call.1} parent=67 // pred_check
          %p2882 = pneg %p344
        $region111: #{tpu_custom_call.1} parent=67 // pred_check_branch
          %2884 = sbr.rel (%p2882) target = $region113
        $region112: #{tpu_custom_call.1} parent=67 // pred_region
          %s2886 = ssub.s32 256, 256
          %2887 = vsyncadd [#allocation19], %s2886
          %s2888 = sshll.u32 [#allocation18], 4
          %s2889 = int_to_ptr.vmem [resolvable:$true] %s2888
          %2894 = dma.vmem_to_hbm [thread:$0]  %s2889, 256, %s14, [#allocation19], 128, 128, 8
        $region113: #{tpu_custom_call.1} parent=67 // pred_fallthru
          _
        // Predicated region
        $region114: #{tpu_custom_call.1} parent=67 // pred_check
          %p2895 = pneg %p344
        $region115: #{tpu_custom_call.1} parent=67 // pred_check_branch
          %2897 = sbr.rel (%p2895) target = $region117
        $region116: #{tpu_custom_call.1} parent=67 // pred_region
          %2898 = dma.done [#allocation19], 256
        $region117: #{tpu_custom_call.1} parent=67 // pred_fallthru
          _
      $region68: #{tpu_custom_call.1} parent=5 // pred_fallthru
        _
      %p2899 = scmp.le.s32.totalorder 2, %s33
      // Predicated region
      $region118: #{tpu_custom_call.1} parent=5 // pred_check
        %p2900 = pneg %p2899
      $region119: #{tpu_custom_call.1} parent=5 // pred_check_branch
        %2902 = sbr.rel (%p2900) target = $region121
      $region120: #{tpu_custom_call.1} parent=5 // pred_region
        %s2903 = ssub.s32 %s33, 2
        // Predicated region
        $region122: #{tpu_custom_call.1} parent=120 // pred_check
          %p2904 = pneg %p329
        $region123: #{tpu_custom_call.1} parent=120 // pred_check_branch
          %2906 = sbr.rel (%p2904) target = $region125
        $region124: #{tpu_custom_call.1} parent=120 // pred_region
          %s2907 = sand.u32 %s314, 1
          %s2908 = scalar_lea.sflag [#allocation8], %s2907
          %s2909 = sand.u32 %s314, 1
          %s2910 = smul.addr %s2909, 32
          %s2911 = scalar_lea.vmem [#allocation17], %s2910
          %2912 = dma.done %s2908, 512
        $region125: #{tpu_custom_call.1} parent=120 // pred_fallthru
          _
      $region121: #{tpu_custom_call.1} parent=5 // pred_fallthru
        _
    $region6: #{tpu_custom_call.1} parent=1 // loop_footer
      %s37 = sadd.s32 1, %s33
    $region7: #{tpu_custom_call.1} parent=1 // loop_footer_branch
      %32 = sbr.rel target = $region3
    $region8: #{tpu_custom_call.1} parent=1 // loop_exit
      _
    %2913 = vsyncpa [#allocation7], 1
    %s2914 = scalar_lea.sflag [#allocation7], 1
    %2915 = vsyncpa %s2914, 1
    %2916 = vsyncpa [#allocation10], 1
    %s2917 = scalar_lea.sflag [#allocation10], 1
    %2918 = vsyncpa %s2917, 1
    %2919 = vsyncpa [#allocation13], 1
    %2920 = vsyncpa [#allocation16], 1
    %2921 = vsyncpa [#allocation8], 1
    %s2922 = scalar_lea.sflag [#allocation8], 1
    %2923 = vsyncpa %s2922, 1
    %2924 = vsyncpa [#allocation19], 1

</llo_original>
